<compile_context>
chip_gen: v7x
topology: tpu7x:2x2x1
jax: 0.10.0
libtpu: 0.0.40
codegen_flags: <defaults>
</compile_context>

<pallas_src>
import functools
import math

import jax
import jax.numpy as jnp
from jax import lax
from jax.experimental import pallas as pl
from jax.experimental.pallas import tpu as pltpu


PARAM_ORDER = ("wq", "bq", "wk", "bk", "wv", "bv", "wo", "bo",
               "g1", "be1", "w1", "b1", "w2", "b2", "g2", "be2")
_BF16_KEYS = {"wq", "wk", "wv", "wo", "w1", "w2"}
_STREAMED = {"w1", "b1", "w2"}          # tiled along the d_ff grid axis


def _layernorm(x, gamma, beta, eps=1e-5):
    mean = jnp.mean(x, axis=-1, keepdims=True)
    var = jnp.mean((x - mean) ** 2, axis=-1, keepdims=True)
    return (x - mean) * lax.rsqrt(var + eps) * gamma + beta


def encoder_block_kernel(num_head,
                         xq_ref, xkv_ref,
                         wq_ref, bq_ref, wk_ref, bk_ref, wv_ref, bv_ref,
                         wo_ref, bo_ref, g1_ref, be1_ref,
                         w1_ref, b1_ref, w2_ref, b2_ref, g2_ref, be2_ref,
                         o_ref,
                         k16_ref, v16_ref, y_ref, z_ref):
    """Grid = (batch, query tile, d_ff chunk)."""
    qi = pl.program_id(1)
    fc = pl.program_id(2)
    n_fc = pl.num_programs(2)

    D = xq_ref.shape[2]
    dh = D // num_head
    scale = 1.0 / math.sqrt(dh)

    # ---- K/V projection: once per batch, carried in bf16 VMEM scratch --------
    @pl.when(jnp.logical_and(qi == 0, fc == 0))
    def _():
        xkv16 = xkv_ref[0]                                # (S, D) bf16 stream
        k = jnp.dot(xkv16, wk_ref[...], preferred_element_type=jnp.float32) + bk_ref[...]
        v = jnp.dot(xkv16, wv_ref[...], preferred_element_type=jnp.float32) + bv_ref[...]
        k16_ref[...] = k.astype(jnp.bfloat16)
        v16_ref[...] = v.astype(jnp.bfloat16)

    # ---- Attention + AddNorm1: once per (batch, query tile) ------------------
    @pl.when(fc == 0)
    def _():
        x_q32 = xq_ref[0]                                 # (tS, D) f32 residual
        x_q16 = x_q32.astype(jnp.bfloat16)
        q = jnp.dot(x_q16, wq_ref[...], preferred_element_type=jnp.float32) + bq_ref[...]
        q16 = (q * scale).astype(jnp.bfloat16)            # fold 1/sqrt(dh) into q
        k16 = k16_ref[...]
        v16 = v16_ref[...]

        heads = []
        for h in range(num_head):                         # static loop over heads
            sl = slice(h * dh, (h + 1) * dh)
            s = lax.dot_general(q16[:, sl], k16[:, sl], (((1,), (1,)), ((), ())),
                                preferred_element_type=jnp.float32)    # (tS, S)
            s = s - jnp.max(s, axis=-1, keepdims=True)
            p = jnp.exp(s)
            denom = jnp.sum(p, axis=-1, keepdims=True)
            o_h = jnp.dot(p.astype(jnp.bfloat16), v16[:, sl],
                          preferred_element_type=jnp.float32)           # (tS, dh)
            heads.append(o_h * pl.reciprocal(denom, approx=True))

        # Single full-depth (K = D) output projection on the MXU.
        ctx16 = jnp.concatenate(heads, axis=-1).astype(jnp.bfloat16)    # (tS, D)
        attn = jnp.dot(ctx16, wo_ref[...], preferred_element_type=jnp.float32) + bo_ref[...]

        y_ref[...] = _layernorm(x_q32 + attn, g1_ref[...], be1_ref[...])
        z_ref[...] = jnp.zeros_like(z_ref)

    # ---- FFN chunk over the d_ff grid axis (streamed w1/w2 blocks) ------------
    y16 = y_ref[...].astype(jnp.bfloat16)
    h1 = jnp.dot(y16, w1_ref[...], preferred_element_type=jnp.float32) + b1_ref[...]
    h1 = jnp.maximum(h1, 0.0).astype(jnp.bfloat16)
    z_ref[...] += jnp.dot(h1, w2_ref[...], preferred_element_type=jnp.float32)

    # ---- AddNorm2 + single write per (batch, query tile) ----------------------
    @pl.when(fc == n_fc - 1)
    def _():
        z = z_ref[...] + b2_ref[...]
        out = _layernorm(y_ref[...] + z, g2_ref[...], be2_ref[...])
        o_ref[0] = out.astype(o_ref.dtype)


def _vmem_limit_bytes():
    try:
        return int(pltpu.get_tpu_info().vmem_capacity_bytes * 3 // 4)
    except Exception:
        return 48 * 1024 * 1024


def _pick_seq_tile(S, vmem_limit):
    # Largest tile whose ~3 live (tS, S) f32 score/softmax temporaries fit in a
    # modest slice of VMEM (smaller tiles on v7x's 64 MiB, larger on v5e/v6e).
    budget = max(vmem_limit // 6, 2 * 1024 * 1024)
    cap = max(8, budget // (3 * 4 * S))
    for t in (512, 256, 128, 64, 32, 16, 8):
        if t <= cap and S % t == 0:
            return t
    return S        # tiny or undividable S: whole sequence as one tile


def _pick_ff_chunk(d_ff):
    if d_ff <= 512:
        return d_ff
    for c in (512, 256, 128):
        if d_ff % c == 0:
            return c
    return d_ff


def _param_spec(name, arr, ffc, single_buffer):
    if name == "w1":
        return pl.BlockSpec((arr.shape[0], ffc), lambda b, qi, fc: (0, fc))
    if name == "b1":
        return pl.BlockSpec((1, ffc), lambda b, qi, fc: (0, fc))
    if name == "w2":
        return pl.BlockSpec((ffc, arr.shape[1]), lambda b, qi, fc: (fc, 0))
    ndim = arr.ndim
    idx = lambda b, qi, fc: (0,) * ndim
    if single_buffer:
        # Constant-index block: single buffering halves resident weight VMEM.
        return pl.BlockSpec(arr.shape, idx, pipeline_mode=pl.Buffered(1))
    return pl.BlockSpec(arr.shape, idx)


def transformer_encoder_block(x, params, num_head):
    B, S, D = x.shape
    assert D % num_head == 0, "d_model must be divisible by num_head"
    d_ff = params["w1"].shape[1]

    vmem_limit = _vmem_limit_bytes()
    tS = _pick_seq_tile(S, vmem_limit)
    ffc = _pick_ff_chunk(d_ff)
    n_fc = d_ff // ffc
    n_q = S // tS

    # Matmul weights go to HBM as bf16; biases / LN params stay f32.
    weights = [params[k].astype(jnp.bfloat16) if k in _BF16_KEYS else params[k]
               for k in PARAM_ORDER]
    x_kv16 = x.astype(jnp.bfloat16)     # bf16 K/V stream (halves per-batch KV DMA)

    # Cost hint: K/V projection is now computed once per batch (not per tile),
    # FFN weights are streamed once per (batch, query tile).
    flops = int(8 * B * S * D * D + 4 * B * S * S * D + 4 * B * S * D * d_ff)
    transcendentals = int(B * num_head * S * S)
    bytes_w_small = sum(int(params[k].size) * (2 if k in _BF16_KEYS else 4)
                        for k in PARAM_ORDER if k not in _STREAMED)
    bytes_w_ffn = int(B * n_q * (D * d_ff * 2 + d_ff * 4 + d_ff * D * 2))
    bytes_accessed = int(x.size * 4 + x.size * 2 + x.size * 4
                         + bytes_w_small + bytes_w_ffn)

    def run(single_buffer):
        in_specs = [
            pl.BlockSpec((1, tS, D), lambda b, qi, fc: (b, qi, 0)),   # f32 query tile
            pl.BlockSpec((1, S, D), lambda b, qi, fc: (b, 0, 0)),     # bf16 K/V stream
        ]
        in_specs += [_param_spec(k, w, ffc, single_buffer)
                     for k, w in zip(PARAM_ORDER, weights)]
        kernel = functools.partial(encoder_block_kernel, num_head)
        return pl.pallas_call(
            kernel,
            out_shape=jax.ShapeDtypeStruct((B, S, D), x.dtype),
            grid_spec=pltpu.PrefetchScalarGridSpec(
                num_scalar_prefetch=0,
                grid=(B, n_q, n_fc),
                in_specs=in_specs,
                out_specs=pl.BlockSpec((1, tS, D), lambda b, qi, fc: (b, qi, 0)),
                scratch_shapes=[
                    pltpu.VMEM((S, D), jnp.bfloat16),   # k16 (per-batch carry)
                    pltpu.VMEM((S, D), jnp.bfloat16),   # v16 (per-batch carry)
                    pltpu.VMEM((tS, D), jnp.float32),   # y   (post AddNorm1)
                    pltpu.VMEM((tS, D), jnp.float32),   # z   (FFN accumulator)
                ]),
            compiler_params=pltpu.CompilerParams(
                # batch stays parallel (dual-TC / megacore); qi & fc carry scratch.
                dimension_semantics=("parallel", "arbitrary", "arbitrary"),
                vmem_limit_bytes=vmem_limit,
            ),
            cost_estimate=pl.CostEstimate(flops=flops,
                                          transcendentals=transcendentals,
                                          bytes_accessed=bytes_accessed),
        )(x, x_kv16, *weights)

    try:
        return jax.block_until_ready(run(single_buffer=True))
    except Exception:
        # Fallback if this jax version rejects pl.Buffered(1) on input blocks.
        return jax.block_until_ready(run(single_buffer=False))


def init_params(key, d_model, d_ff):
    ks = jax.random.split(key, 6)

    def lin(k, fan_in, fan_out):
        return (jax.random.normal(k, (fan_in, fan_out), jnp.float32)
                / jnp.sqrt(jnp.float32(fan_in)))

    return {
        "wq": lin(ks[0], d_model, d_model), "bq": jnp.zeros((1, d_model), jnp.float32),
        "wk": lin(ks[1], d_model, d_model), "bk": jnp.zeros((1, d_model), jnp.float32),
        "wv": lin(ks[2], d_model, d_model), "bv": jnp.zeros((1, d_model), jnp.float32),
        "wo": lin(ks[3], d_model, d_model), "bo": jnp.zeros((1, d_model), jnp.float32),
        "g1": jnp.ones((1, d_model), jnp.float32), "be1": jnp.zeros((1, d_model), jnp.float32),
        "w1": lin(ks[4], d_model, d_ff), "b1": jnp.zeros((1, d_ff), jnp.float32),
        "w2": lin(ks[5], d_ff, d_model), "b2": jnp.zeros((1, d_model), jnp.float32),
        "g2": jnp.ones((1, d_model), jnp.float32), "be2": jnp.zeros((1, d_model), jnp.float32),
    }


def reference(x, p, num_head):
    """Pure-JAX f32 reference with identical semantics (eval-mode PyTorch module)."""
    B, S, D = x.shape
    dh = D // num_head

    def ln(t, g, b, eps=1e-5):
        m = jnp.mean(t, axis=-1, keepdims=True)
        v = jnp.mean((t - m) ** 2, axis=-1, keepdims=True)
        return (t - m) / jnp.sqrt(v + eps) * g + b

    q = x @ p["wq"] + p["bq"][0]
    k = x @ p["wk"] + p["bk"][0]
    v = x @ p["wv"] + p["bv"][0]
    q = q.reshape(B, S, num_head, dh).transpose(0, 2, 1, 3)
    k = k.reshape(B, S, num_head, dh).transpose(0, 2, 1, 3)
    v = v.reshape(B, S, num_head, dh).transpose(0, 2, 1, 3)
    scores = jnp.einsum("bhqd,bhkd->bhqk", q, k) / jnp.sqrt(jnp.float32(dh))
    attn = jax.nn.softmax(scores, axis=-1)
    o = jnp.einsum("bhqk,bhkd->bhqd", attn, v).transpose(0, 2, 1, 3).reshape(B, S, D)
    o = o @ p["wo"] + p["bo"][0]
    y = ln(x + o, p["g1"][0], p["be1"][0])
    h1 = jax.nn.relu(y @ p["w1"] + p["b1"][0])
    z = h1 @ p["w2"] + p["b2"][0]
    return ln(y + z, p["g2"][0], p["be2"][0])


if __name__ == "__main__":
    B, S, d_model, num_head, d_ff = 2, 8, 32, 4, 64

    key = jax.random.PRNGKey(0)
    kx, kp = jax.random.split(key)
    x = jax.random.normal(kx, (B, S, d_model), jnp.float32)
    params = init_params(kp, d_model, d_ff)

    out = transformer_encoder_block(x, params, num_head)
    out = jax.block_until_ready(out)

    ref = reference(x, params, num_head)
    assert out.shape == (B, S, d_model)
    assert jnp.allclose(out, ref, atol=5e-2, rtol=5e-2), float(jnp.max(jnp.abs(out - ref)))
    print("KERNEL_OK")
</pallas_src>

<mosaic_0001>
module attributes {stable_mosaic.version = 11 : i64} {
  func.func @encoder_block_kernel(%arg0: i32, %arg1: i32, %arg2: i32, %arg3: memref<1x8x32xf32, #tpu.memory_space<vmem>>, %arg4: memref<1x8x32xbf16, #tpu.memory_space<vmem>>, %arg5: memref<32x32xbf16, #tpu.memory_space<vmem>>, %arg6: memref<1x32xf32, #tpu.memory_space<vmem>>, %arg7: memref<32x32xbf16, #tpu.memory_space<vmem>>, %arg8: memref<1x32xf32, #tpu.memory_space<vmem>>, %arg9: memref<32x32xbf16, #tpu.memory_space<vmem>>, %arg10: memref<1x32xf32, #tpu.memory_space<vmem>>, %arg11: memref<32x32xbf16, #tpu.memory_space<vmem>>, %arg12: memref<1x32xf32, #tpu.memory_space<vmem>>, %arg13: memref<1x32xf32, #tpu.memory_space<vmem>>, %arg14: memref<1x32xf32, #tpu.memory_space<vmem>>, %arg15: memref<32x64xbf16, #tpu.memory_space<vmem>>, %arg16: memref<1x64xf32, #tpu.memory_space<vmem>>, %arg17: memref<64x32xbf16, #tpu.memory_space<vmem>>, %arg18: memref<1x32xf32, #tpu.memory_space<vmem>>, %arg19: memref<1x32xf32, #tpu.memory_space<vmem>>, %arg20: memref<1x32xf32, #tpu.memory_space<vmem>>, %arg21: memref<1x8x32xf32, #tpu.memory_space<vmem>>, %arg22: memref<8x32xbf16, #tpu.memory_space<vmem>>, %arg23: memref<8x32xbf16, #tpu.memory_space<vmem>>, %arg24: memref<8x32xf32, #tpu.memory_space<vmem>>, %arg25: memref<8x32xf32, #tpu.memory_space<vmem>>) attributes {dimension_semantics = [#tpu.dimension_semantics<parallel>, #tpu.dimension_semantics<arbitrary>, #tpu.dimension_semantics<arbitrary>], iteration_bounds = array<i64: 2, 1, 1>, scalar_prefetch = 0 : i64, scratch_operands = 4 : i64, tpu.core_type = #tpu.core_type<tc>, window_params = [{transform_indices = @transform_0, window_bounds = array<i64: 1, 8, 32>}, {transform_indices = @transform_1, window_bounds = array<i64: 1, 8, 32>}, {pipeline_mode = #tpu.pipeline_mode<synchronous>, transform_indices = @transform_2, window_bounds = array<i64: 32, 32>}, {pipeline_mode = #tpu.pipeline_mode<synchronous>, transform_indices = @transform_3, window_bounds = array<i64: 1, 32>}, {pipeline_mode = #tpu.pipeline_mode<synchronous>, transform_indices = @transform_4, window_bounds = array<i64: 32, 32>}, {pipeline_mode = #tpu.pipeline_mode<synchronous>, transform_indices = @transform_5, window_bounds = array<i64: 1, 32>}, {pipeline_mode = #tpu.pipeline_mode<synchronous>, transform_indices = @transform_6, window_bounds = array<i64: 32, 32>}, {pipeline_mode = #tpu.pipeline_mode<synchronous>, transform_indices = @transform_7, window_bounds = array<i64: 1, 32>}, {pipeline_mode = #tpu.pipeline_mode<synchronous>, transform_indices = @transform_8, window_bounds = array<i64: 32, 32>}, {pipeline_mode = #tpu.pipeline_mode<synchronous>, transform_indices = @transform_9, window_bounds = array<i64: 1, 32>}, {pipeline_mode = #tpu.pipeline_mode<synchronous>, transform_indices = @transform_10, window_bounds = array<i64: 1, 32>}, {pipeline_mode = #tpu.pipeline_mode<synchronous>, transform_indices = @transform_11, window_bounds = array<i64: 1, 32>}, {transform_indices = @transform_12, window_bounds = array<i64: 32, 64>}, {transform_indices = @transform_13, window_bounds = array<i64: 1, 64>}, {transform_indices = @transform_14, window_bounds = array<i64: 64, 32>}, {pipeline_mode = #tpu.pipeline_mode<synchronous>, transform_indices = @transform_15, window_bounds = array<i64: 1, 32>}, {pipeline_mode = #tpu.pipeline_mode<synchronous>, transform_indices = @transform_16, window_bounds = array<i64: 1, 32>}, {pipeline_mode = #tpu.pipeline_mode<synchronous>, transform_indices = @transform_17, window_bounds = array<i64: 1, 32>}, {transform_indices = @transform_18, window_bounds = array<i64: 1, 8, 32>}]} {
    %c0_i32 = arith.constant 0 : i32
    %0 = arith.cmpi eq, %arg1, %c0_i32 : i32
    %c0_i32_0 = arith.constant 0 : i32
    %1 = arith.cmpi eq, %arg2, %c0_i32_0 : i32
    %2 = arith.andi %0, %1 : i1
    %3 = arith.extui %2 : i1 to i32
    %c0_i32_1 = arith.constant 0 : i32
    %4 = arith.cmpi ne, %3, %c0_i32_1 : i32
    scf.if %4 {
      %c0_19 = arith.constant 0 : index
      %c0_20 = arith.constant 0 : index
      %c0_21 = arith.constant 0 : index
      %26 = vector.load %arg4[%c0_19, %c0_20, %c0_21] : memref<1x8x32xbf16, #tpu.memory_space<vmem>>, vector<1x8x32xbf16>
      %27 = vector.shape_cast %26 : vector<1x8x32xbf16> to vector<8x32xbf16>
      %c0_22 = arith.constant 0 : index
      %c0_23 = arith.constant 0 : index
      %28 = vector.load %arg7[%c0_22, %c0_23] : memref<32x32xbf16, #tpu.memory_space<vmem>>, vector<32x32xbf16>
      %cst_24 = arith.constant dense<0.000000e+00> : vector<8x32xf32>
      %29 = tpu.matmul %27, %28, %cst_24 {dimension_numbers = #tpu.dot_dimension_numbers<[1], [0], [0], [1], [0, 0, 1, 1], [], []>} : vector<8x32xbf16>, vector<32x32xbf16>, vector<8x32xf32> -> vector<8x32xf32>
      %c0_25 = arith.constant 0 : index
      %c0_26 = arith.constant 0 : index
      %30 = vector.load %arg8[%c0_25, %c0_26] : memref<1x32xf32, #tpu.memory_space<vmem>>, vector<1x32xf32>
      %31 = vector.broadcast %30 : vector<1x32xf32> to vector<8x32xf32>
      %32 = arith.addf %29, %31 : vector<8x32xf32>
      %c0_27 = arith.constant 0 : index
      %c0_28 = arith.constant 0 : index
      %33 = vector.load %arg9[%c0_27, %c0_28] : memref<32x32xbf16, #tpu.memory_space<vmem>>, vector<32x32xbf16>
      %cst_29 = arith.constant dense<0.000000e+00> : vector<8x32xf32>
      %34 = tpu.matmul %27, %33, %cst_29 {dimension_numbers = #tpu.dot_dimension_numbers<[1], [0], [0], [1], [0, 0, 1, 1], [], []>} : vector<8x32xbf16>, vector<32x32xbf16>, vector<8x32xf32> -> vector<8x32xf32>
      %c0_30 = arith.constant 0 : index
      %c0_31 = arith.constant 0 : index
      %35 = vector.load %arg10[%c0_30, %c0_31] : memref<1x32xf32, #tpu.memory_space<vmem>>, vector<1x32xf32>
      %36 = vector.broadcast %35 : vector<1x32xf32> to vector<8x32xf32>
      %37 = arith.addf %34, %36 : vector<8x32xf32>
      %38 = arith.truncf %32 : vector<8x32xf32> to vector<8x32xbf16>
      %c0_32 = arith.constant 0 : index
      %c0_33 = arith.constant 0 : index
      %39 = vector.load %arg22[%c0_32, %c0_33] : memref<8x32xbf16, #tpu.memory_space<vmem>>, vector<8x32xbf16>
      tpu.vector_store %arg22[%c0_32, %c0_33], %38 {strides = array<i32>} : memref<8x32xbf16, #tpu.memory_space<vmem>>, vector<8x32xbf16>,
      %40 = arith.truncf %37 : vector<8x32xf32> to vector<8x32xbf16>
      %c0_34 = arith.constant 0 : index
      %c0_35 = arith.constant 0 : index
      %41 = vector.load %arg23[%c0_34, %c0_35] : memref<8x32xbf16, #tpu.memory_space<vmem>>, vector<8x32xbf16>
      tpu.vector_store %arg23[%c0_34, %c0_35], %40 {strides = array<i32>} : memref<8x32xbf16, #tpu.memory_space<vmem>>, vector<8x32xbf16>,
    } else {
    }
    %c0_i32_2 = arith.constant 0 : i32
    %5 = arith.cmpi eq, %arg2, %c0_i32_2 : i32
    %6 = arith.extui %5 : i1 to i32
    %c0_i32_3 = arith.constant 0 : i32
    %7 = arith.cmpi ne, %6, %c0_i32_3 : i32
    scf.if %7 {
      %c0_19 = arith.constant 0 : index
      %c0_20 = arith.constant 0 : index
      %c0_21 = arith.constant 0 : index
      %26 = vector.load %arg3[%c0_19, %c0_20, %c0_21] : memref<1x8x32xf32, #tpu.memory_space<vmem>>, vector<1x8x32xf32>
      %27 = vector.shape_cast %26 : vector<1x8x32xf32> to vector<8x32xf32>
      %28 = arith.truncf %27 : vector<8x32xf32> to vector<8x32xbf16>
      %c0_22 = arith.constant 0 : index
      %c0_23 = arith.constant 0 : index
      %29 = vector.load %arg5[%c0_22, %c0_23] : memref<32x32xbf16, #tpu.memory_space<vmem>>, vector<32x32xbf16>
      %cst_24 = arith.constant dense<0.000000e+00> : vector<8x32xf32>
      %30 = tpu.matmul %28, %29, %cst_24 {dimension_numbers = #tpu.dot_dimension_numbers<[1], [0], [0], [1], [0, 0, 1, 1], [], []>} : vector<8x32xbf16>, vector<32x32xbf16>, vector<8x32xf32> -> vector<8x32xf32>
      %c0_25 = arith.constant 0 : index
      %c0_26 = arith.constant 0 : index
      %31 = vector.load %arg6[%c0_25, %c0_26] : memref<1x32xf32, #tpu.memory_space<vmem>>, vector<1x32xf32>
      %32 = vector.broadcast %31 : vector<1x32xf32> to vector<8x32xf32>
      %33 = arith.addf %30, %32 : vector<8x32xf32>
      %cst_27 = arith.constant 0.353553385 : f32
      %34 = vector.broadcast %cst_27 : f32 to vector<8x32xf32>
      %35 = arith.mulf %33, %34 : vector<8x32xf32>
      %36 = arith.truncf %35 : vector<8x32xf32> to vector<8x32xbf16>
      %c0_28 = arith.constant 0 : index
      %c0_29 = arith.constant 0 : index
      %37 = vector.load %arg22[%c0_28, %c0_29] : memref<8x32xbf16, #tpu.memory_space<vmem>>, vector<8x32xbf16>
      %c0_30 = arith.constant 0 : index
      %c0_31 = arith.constant 0 : index
      %38 = vector.load %arg23[%c0_30, %c0_31] : memref<8x32xbf16, #tpu.memory_space<vmem>>, vector<8x32xbf16>
      %39 = vector.extract_strided_slice %36 {offsets = [0, 0], sizes = [8, 8], strides = [1, 1]} : vector<8x32xbf16> to vector<8x8xbf16>
      %40 = vector.extract_strided_slice %37 {offsets = [0, 0], sizes = [8, 8], strides = [1, 1]} : vector<8x32xbf16> to vector<8x8xbf16>
      %cst_32 = arith.constant dense<0.000000e+00> : vector<8x8xf32>
      %41 = tpu.matmul %39, %40, %cst_32 {dimension_numbers = #tpu.dot_dimension_numbers<[1], [1], [0], [0], [0, 0, 1, 0], [], []>} : vector<8x8xbf16>, vector<8x8xbf16>, vector<8x8xf32> -> vector<8x8xf32>
      %cst_33 = arith.constant dense<0xFF800000> : vector<8xf32>
      %42 = vector.multi_reduction <maximumf>, %41, %cst_33 [1] : vector<8x8xf32> to vector<8xf32>
      %43 = vector.shape_cast %42 : vector<8xf32> to vector<8x1xf32>
      %44 = vector.broadcast %43 : vector<8x1xf32> to vector<8x8xf32>
      %45 = arith.subf %41, %44 : vector<8x8xf32>
      %46 = math.exp %45 : vector<8x8xf32>
      %cst_34 = arith.constant dense<0.000000e+00> : vector<8xf32>
      %47 = vector.multi_reduction <add>, %46, %cst_34 [1] : vector<8x8xf32> to vector<8xf32>
      %48 = vector.shape_cast %47 : vector<8xf32> to vector<8x1xf32>
      %49 = arith.truncf %46 : vector<8x8xf32> to vector<8x8xbf16>
      %50 = vector.extract_strided_slice %38 {offsets = [0, 0], sizes = [8, 8], strides = [1, 1]} : vector<8x32xbf16> to vector<8x8xbf16>
      %cst_35 = arith.constant dense<0.000000e+00> : vector<8x8xf32>
      %51 = tpu.matmul %49, %50, %cst_35 {dimension_numbers = #tpu.dot_dimension_numbers<[1], [0], [0], [1], [0, 0, 1, 1], [], []>} : vector<8x8xbf16>, vector<8x8xbf16>, vector<8x8xf32> -> vector<8x8xf32>
      %52 = tpu.reciprocal %48 {approx = true} : vector<8x1xf32> -> vector<8x1xf32>
      %53 = vector.broadcast %52 : vector<8x1xf32> to vector<8x8xf32>
      %54 = arith.mulf %51, %53 : vector<8x8xf32>
      %55 = vector.extract_strided_slice %36 {offsets = [0, 8], sizes = [8, 8], strides = [1, 1]} : vector<8x32xbf16> to vector<8x8xbf16>
      %56 = vector.extract_strided_slice %37 {offsets = [0, 8], sizes = [8, 8], strides = [1, 1]} : vector<8x32xbf16> to vector<8x8xbf16>
      %cst_36 = arith.constant dense<0.000000e+00> : vector<8x8xf32>
      %57 = tpu.matmul %55, %56, %cst_36 {dimension_numbers = #tpu.dot_dimension_numbers<[1], [1], [0], [0], [0, 0, 1, 0], [], []>} : vector<8x8xbf16>, vector<8x8xbf16>, vector<8x8xf32> -> vector<8x8xf32>
      %cst_37 = arith.constant dense<0xFF800000> : vector<8xf32>
      %58 = vector.multi_reduction <maximumf>, %57, %cst_37 [1] : vector<8x8xf32> to vector<8xf32>
      %59 = vector.shape_cast %58 : vector<8xf32> to vector<8x1xf32>
      %60 = vector.broadcast %59 : vector<8x1xf32> to vector<8x8xf32>
      %61 = arith.subf %57, %60 : vector<8x8xf32>
      %62 = math.exp %61 : vector<8x8xf32>
      %cst_38 = arith.constant dense<0.000000e+00> : vector<8xf32>
      %63 = vector.multi_reduction <add>, %62, %cst_38 [1] : vector<8x8xf32> to vector<8xf32>
      %64 = vector.shape_cast %63 : vector<8xf32> to vector<8x1xf32>
      %65 = arith.truncf %62 : vector<8x8xf32> to vector<8x8xbf16>
      %66 = vector.extract_strided_slice %38 {offsets = [0, 8], sizes = [8, 8], strides = [1, 1]} : vector<8x32xbf16> to vector<8x8xbf16>
      %cst_39 = arith.constant dense<0.000000e+00> : vector<8x8xf32>
      %67 = tpu.matmul %65, %66, %cst_39 {dimension_numbers = #tpu.dot_dimension_numbers<[1], [0], [0], [1], [0, 0, 1, 1], [], []>} : vector<8x8xbf16>, vector<8x8xbf16>, vector<8x8xf32> -> vector<8x8xf32>
      %68 = tpu.reciprocal %64 {approx = true} : vector<8x1xf32> -> vector<8x1xf32>
      %69 = vector.broadcast %68 : vector<8x1xf32> to vector<8x8xf32>
      %70 = arith.mulf %67, %69 : vector<8x8xf32>
      %71 = vector.extract_strided_slice %36 {offsets = [0, 16], sizes = [8, 8], strides = [1, 1]} : vector<8x32xbf16> to vector<8x8xbf16>
      %72 = vector.extract_strided_slice %37 {offsets = [0, 16], sizes = [8, 8], strides = [1, 1]} : vector<8x32xbf16> to vector<8x8xbf16>
      %cst_40 = arith.constant dense<0.000000e+00> : vector<8x8xf32>
      %73 = tpu.matmul %71, %72, %cst_40 {dimension_numbers = #tpu.dot_dimension_numbers<[1], [1], [0], [0], [0, 0, 1, 0], [], []>} : vector<8x8xbf16>, vector<8x8xbf16>, vector<8x8xf32> -> vector<8x8xf32>
      %cst_41 = arith.constant dense<0xFF800000> : vector<8xf32>
      %74 = vector.multi_reduction <maximumf>, %73, %cst_41 [1] : vector<8x8xf32> to vector<8xf32>
      %75 = vector.shape_cast %74 : vector<8xf32> to vector<8x1xf32>
      %76 = vector.broadcast %75 : vector<8x1xf32> to vector<8x8xf32>
      %77 = arith.subf %73, %76 : vector<8x8xf32>
      %78 = math.exp %77 : vector<8x8xf32>
      %cst_42 = arith.constant dense<0.000000e+00> : vector<8xf32>
      %79 = vector.multi_reduction <add>, %78, %cst_42 [1] : vector<8x8xf32> to vector<8xf32>
      %80 = vector.shape_cast %79 : vector<8xf32> to vector<8x1xf32>
      %81 = arith.truncf %78 : vector<8x8xf32> to vector<8x8xbf16>
      %82 = vector.extract_strided_slice %38 {offsets = [0, 16], sizes = [8, 8], strides = [1, 1]} : vector<8x32xbf16> to vector<8x8xbf16>
      %cst_43 = arith.constant dense<0.000000e+00> : vector<8x8xf32>
      %83 = tpu.matmul %81, %82, %cst_43 {dimension_numbers = #tpu.dot_dimension_numbers<[1], [0], [0], [1], [0, 0, 1, 1], [], []>} : vector<8x8xbf16>, vector<8x8xbf16>, vector<8x8xf32> -> vector<8x8xf32>
      %84 = tpu.reciprocal %80 {approx = true} : vector<8x1xf32> -> vector<8x1xf32>
      %85 = vector.broadcast %84 : vector<8x1xf32> to vector<8x8xf32>
      %86 = arith.mulf %83, %85 : vector<8x8xf32>
      %87 = vector.extract_strided_slice %36 {offsets = [0, 24], sizes = [8, 8], strides = [1, 1]} : vector<8x32xbf16> to vector<8x8xbf16>
      %88 = vector.extract_strided_slice %37 {offsets = [0, 24], sizes = [8, 8], strides = [1, 1]} : vector<8x32xbf16> to vector<8x8xbf16>
      %cst_44 = arith.constant dense<0.000000e+00> : vector<8x8xf32>
      %89 = tpu.matmul %87, %88, %cst_44 {dimension_numbers = #tpu.dot_dimension_numbers<[1], [1], [0], [0], [0, 0, 1, 0], [], []>} : vector<8x8xbf16>, vector<8x8xbf16>, vector<8x8xf32> -> vector<8x8xf32>
      %cst_45 = arith.constant dense<0xFF800000> : vector<8xf32>
      %90 = vector.multi_reduction <maximumf>, %89, %cst_45 [1] : vector<8x8xf32> to vector<8xf32>
      %91 = vector.shape_cast %90 : vector<8xf32> to vector<8x1xf32>
      %92 = vector.broadcast %91 : vector<8x1xf32> to vector<8x8xf32>
      %93 = arith.subf %89, %92 : vector<8x8xf32>
      %94 = math.exp %93 : vector<8x8xf32>
      %cst_46 = arith.constant dense<0.000000e+00> : vector<8xf32>
      %95 = vector.multi_reduction <add>, %94, %cst_46 [1] : vector<8x8xf32> to vector<8xf32>
      %96 = vector.shape_cast %95 : vector<8xf32> to vector<8x1xf32>
      %97 = arith.truncf %94 : vector<8x8xf32> to vector<8x8xbf16>
      %98 = vector.extract_strided_slice %38 {offsets = [0, 24], sizes = [8, 8], strides = [1, 1]} : vector<8x32xbf16> to vector<8x8xbf16>
      %cst_47 = arith.constant dense<0.000000e+00> : vector<8x8xf32>
      %99 = tpu.matmul %97, %98, %cst_47 {dimension_numbers = #tpu.dot_dimension_numbers<[1], [0], [0], [1], [0, 0, 1, 1], [], []>} : vector<8x8xbf16>, vector<8x8xbf16>, vector<8x8xf32> -> vector<8x8xf32>
      %100 = tpu.reciprocal %96 {approx = true} : vector<8x1xf32> -> vector<8x1xf32>
      %101 = vector.broadcast %100 : vector<8x1xf32> to vector<8x8xf32>
      %102 = arith.mulf %99, %101 : vector<8x8xf32>
      %103 = tpu.concatenate %54, %70, %86, %102 in 1 : vector<8x8xf32>, vector<8x8xf32>, vector<8x8xf32>, vector<8x8xf32> -> vector<8x32xf32>
      %104 = arith.truncf %103 : vector<8x32xf32> to vector<8x32xbf16>
      %c0_48 = arith.constant 0 : index
      %c0_49 = arith.constant 0 : index
      %105 = vector.load %arg11[%c0_48, %c0_49] : memref<32x32xbf16, #tpu.memory_space<vmem>>, vector<32x32xbf16>
      %cst_50 = arith.constant dense<0.000000e+00> : vector<8x32xf32>
      %106 = tpu.matmul %104, %105, %cst_50 {dimension_numbers = #tpu.dot_dimension_numbers<[1], [0], [0], [1], [0, 0, 1, 1], [], []>} : vector<8x32xbf16>, vector<32x32xbf16>, vector<8x32xf32> -> vector<8x32xf32>
      %c0_51 = arith.constant 0 : index
      %c0_52 = arith.constant 0 : index
      %107 = vector.load %arg12[%c0_51, %c0_52] : memref<1x32xf32, #tpu.memory_space<vmem>>, vector<1x32xf32>
      %108 = vector.broadcast %107 : vector<1x32xf32> to vector<8x32xf32>
      %109 = arith.addf %106, %108 : vector<8x32xf32>
      %110 = arith.addf %27, %109 : vector<8x32xf32>
      %c0_53 = arith.constant 0 : index
      %c0_54 = arith.constant 0 : index
      %111 = vector.load %arg13[%c0_53, %c0_54] : memref<1x32xf32, #tpu.memory_space<vmem>>, vector<1x32xf32>
      %c0_55 = arith.constant 0 : index
      %c0_56 = arith.constant 0 : index
      %112 = vector.load %arg14[%c0_55, %c0_56] : memref<1x32xf32, #tpu.memory_space<vmem>>, vector<1x32xf32>
      %cst_57 = arith.constant dense<0.000000e+00> : vector<8xf32>
      %113 = vector.multi_reduction <add>, %110, %cst_57 [1] : vector<8x32xf32> to vector<8xf32>
      %114 = vector.shape_cast %113 : vector<8xf32> to vector<8x1xf32>
      %cst_58 = arith.constant 3.200000e+01 : f32
      %115 = vector.broadcast %cst_58 : f32 to vector<8x1xf32>
      %116 = arith.divf %114, %115 : vector<8x1xf32>
      %117 = vector.broadcast %116 : vector<8x1xf32> to vector<8x32xf32>
      %118 = arith.subf %110, %117 : vector<8x32xf32>
      %119 = arith.mulf %118, %118 : vector<8x32xf32>
      %cst_59 = arith.constant dense<0.000000e+00> : vector<8xf32>
      %120 = vector.multi_reduction <add>, %119, %cst_59 [1] : vector<8x32xf32> to vector<8xf32>
      %121 = vector.shape_cast %120 : vector<8xf32> to vector<8x1xf32>
      %cst_60 = arith.constant 3.200000e+01 : f32
      %122 = vector.broadcast %cst_60 : f32 to vector<8x1xf32>
      %123 = arith.divf %121, %122 : vector<8x1xf32>
      %124 = vector.broadcast %116 : vector<8x1xf32> to vector<8x32xf32>
      %125 = arith.subf %110, %124 : vector<8x32xf32>
      %cst_61 = arith.constant 9.99999974E-6 : f32
      %126 = vector.broadcast %cst_61 : f32 to vector<8x1xf32>
      %127 = arith.addf %123, %126 : vector<8x1xf32>
      %128 = math.rsqrt %127 : vector<8x1xf32>
      %129 = vector.broadcast %128 : vector<8x1xf32> to vector<8x32xf32>
      %130 = arith.mulf %125, %129 : vector<8x32xf32>
      %131 = vector.broadcast %111 : vector<1x32xf32> to vector<8x32xf32>
      %132 = arith.mulf %130, %131 : vector<8x32xf32>
      %133 = vector.broadcast %112 : vector<1x32xf32> to vector<8x32xf32>
      %134 = arith.addf %132, %133 : vector<8x32xf32>
      %c0_62 = arith.constant 0 : index
      %c0_63 = arith.constant 0 : index
      %135 = vector.load %arg24[%c0_62, %c0_63] : memref<8x32xf32, #tpu.memory_space<vmem>>, vector<8x32xf32>
      tpu.vector_store %arg24[%c0_62, %c0_63], %134 {strides = array<i32>} : memref<8x32xf32, #tpu.memory_space<vmem>>, vector<8x32xf32>,
      %cst_64 = arith.constant 0.000000e+00 : f32
      %136 = vector.broadcast %cst_64 : f32 to vector<8x32xf32>
      %c0_65 = arith.constant 0 : index
      %c0_66 = arith.constant 0 : index
      %137 = vector.load %arg25[%c0_65, %c0_66] : memref<8x32xf32, #tpu.memory_space<vmem>>, vector<8x32xf32>
      tpu.vector_store %arg25[%c0_65, %c0_66], %136 {strides = array<i32>} : memref<8x32xf32, #tpu.memory_space<vmem>>, vector<8x32xf32>,
    } else {
    }
    %c0 = arith.constant 0 : index
    %c0_4 = arith.constant 0 : index
    %8 = vector.load %arg24[%c0, %c0_4] : memref<8x32xf32, #tpu.memory_space<vmem>>, vector<8x32xf32>
    %9 = arith.truncf %8 : vector<8x32xf32> to vector<8x32xbf16>
    %c0_5 = arith.constant 0 : index
    %c0_6 = arith.constant 0 : index
    %10 = vector.load %arg15[%c0_5, %c0_6] : memref<32x64xbf16, #tpu.memory_space<vmem>>, vector<32x64xbf16>
    %cst = arith.constant dense<0.000000e+00> : vector<8x64xf32>
    %11 = tpu.matmul %9, %10, %cst {dimension_numbers = #tpu.dot_dimension_numbers<[1], [0], [0], [1], [0, 0, 1, 1], [], []>} : vector<8x32xbf16>, vector<32x64xbf16>, vector<8x64xf32> -> vector<8x64xf32>
    %c0_7 = arith.constant 0 : index
    %c0_8 = arith.constant 0 : index
    %12 = vector.load %arg16[%c0_7, %c0_8] : memref<1x64xf32, #tpu.memory_space<vmem>>, vector<1x64xf32>
    %13 = vector.broadcast %12 : vector<1x64xf32> to vector<8x64xf32>
    %14 = arith.addf %11, %13 : vector<8x64xf32>
    %cst_9 = arith.constant 0.000000e+00 : f32
    %15 = vector.broadcast %cst_9 : f32 to vector<8x64xf32>
    %16 = arith.maximumf %14, %15 : vector<8x64xf32>
    %17 = arith.truncf %16 : vector<8x64xf32> to vector<8x64xbf16>
    %c0_10 = arith.constant 0 : index
    %c0_11 = arith.constant 0 : index
    %18 = vector.load %arg25[%c0_10, %c0_11] : memref<8x32xf32, #tpu.memory_space<vmem>>, vector<8x32xf32>
    %c0_12 = arith.constant 0 : index
    %c0_13 = arith.constant 0 : index
    %19 = vector.load %arg17[%c0_12, %c0_13] : memref<64x32xbf16, #tpu.memory_space<vmem>>, vector<64x32xbf16>
    %cst_14 = arith.constant dense<0.000000e+00> : vector<8x32xf32>
    %20 = tpu.matmul %17, %19, %cst_14 {dimension_numbers = #tpu.dot_dimension_numbers<[1], [0], [0], [1], [0, 0, 1, 1], [], []>} : vector<8x64xbf16>, vector<64x32xbf16>, vector<8x32xf32> -> vector<8x32xf32>
    %21 = arith.addf %18, %20 : vector<8x32xf32>
    %c0_15 = arith.constant 0 : index
    %c0_16 = arith.constant 0 : index
    %22 = vector.load %arg25[%c0_15, %c0_16] : memref<8x32xf32, #tpu.memory_space<vmem>>, vector<8x32xf32>
    tpu.vector_store %arg25[%c0_15, %c0_16], %21 {strides = array<i32>} : memref<8x32xf32, #tpu.memory_space<vmem>>, vector<8x32xf32>,
    %c0_i32_17 = arith.constant 0 : i32
    %23 = arith.cmpi eq, %arg2, %c0_i32_17 : i32
    %24 = arith.extui %23 : i1 to i32
    %c0_i32_18 = arith.constant 0 : i32
    %25 = arith.cmpi ne, %24, %c0_i32_18 : i32
    scf.if %25 {
      %c0_19 = arith.constant 0 : index
      %c0_20 = arith.constant 0 : index
      %26 = vector.load %arg25[%c0_19, %c0_20] : memref<8x32xf32, #tpu.memory_space<vmem>>, vector<8x32xf32>
      %c0_21 = arith.constant 0 : index
      %c0_22 = arith.constant 0 : index
      %27 = vector.load %arg18[%c0_21, %c0_22] : memref<1x32xf32, #tpu.memory_space<vmem>>, vector<1x32xf32>
      %28 = vector.broadcast %27 : vector<1x32xf32> to vector<8x32xf32>
      %29 = arith.addf %26, %28 : vector<8x32xf32>
      %c0_23 = arith.constant 0 : index
      %c0_24 = arith.constant 0 : index
      %30 = vector.load %arg24[%c0_23, %c0_24] : memref<8x32xf32, #tpu.memory_space<vmem>>, vector<8x32xf32>
      %31 = arith.addf %30, %29 : vector<8x32xf32>
      %c0_25 = arith.constant 0 : index
      %c0_26 = arith.constant 0 : index
      %32 = vector.load %arg19[%c0_25, %c0_26] : memref<1x32xf32, #tpu.memory_space<vmem>>, vector<1x32xf32>
      %c0_27 = arith.constant 0 : index
      %c0_28 = arith.constant 0 : index
      %33 = vector.load %arg20[%c0_27, %c0_28] : memref<1x32xf32, #tpu.memory_space<vmem>>, vector<1x32xf32>
      %cst_29 = arith.constant dense<0.000000e+00> : vector<8xf32>
      %34 = vector.multi_reduction <add>, %31, %cst_29 [1] : vector<8x32xf32> to vector<8xf32>
      %35 = vector.shape_cast %34 : vector<8xf32> to vector<8x1xf32>
      %cst_30 = arith.constant 3.200000e+01 : f32
      %36 = vector.broadcast %cst_30 : f32 to vector<8x1xf32>
      %37 = arith.divf %35, %36 : vector<8x1xf32>
      %38 = vector.broadcast %37 : vector<8x1xf32> to vector<8x32xf32>
      %39 = arith.subf %31, %38 : vector<8x32xf32>
      %40 = arith.mulf %39, %39 : vector<8x32xf32>
      %cst_31 = arith.constant dense<0.000000e+00> : vector<8xf32>
      %41 = vector.multi_reduction <add>, %40, %cst_31 [1] : vector<8x32xf32> to vector<8xf32>
      %42 = vector.shape_cast %41 : vector<8xf32> to vector<8x1xf32>
      %cst_32 = arith.constant 3.200000e+01 : f32
      %43 = vector.broadcast %cst_32 : f32 to vector<8x1xf32>
      %44 = arith.divf %42, %43 : vector<8x1xf32>
      %45 = vector.broadcast %37 : vector<8x1xf32> to vector<8x32xf32>
      %46 = arith.subf %31, %45 : vector<8x32xf32>
      %cst_33 = arith.constant 9.99999974E-6 : f32
      %47 = vector.broadcast %cst_33 : f32 to vector<8x1xf32>
      %48 = arith.addf %44, %47 : vector<8x1xf32>
      %49 = math.rsqrt %48 : vector<8x1xf32>
      %50 = vector.broadcast %49 : vector<8x1xf32> to vector<8x32xf32>
      %51 = arith.mulf %46, %50 : vector<8x32xf32>
      %52 = vector.broadcast %32 : vector<1x32xf32> to vector<8x32xf32>
      %53 = arith.mulf %51, %52 : vector<8x32xf32>
      %54 = vector.broadcast %33 : vector<1x32xf32> to vector<8x32xf32>
      %55 = arith.addf %53, %54 : vector<8x32xf32>
      %c0_34 = arith.constant 0 : index
      %c0_35 = arith.constant 0 : index
      %c0_36 = arith.constant 0 : index
      %56 = vector.load %arg21[%c0_34, %c0_35, %c0_36] : memref<1x8x32xf32, #tpu.memory_space<vmem>>, vector<1x8x32xf32>
      %57 = vector.shape_cast %56 : vector<1x8x32xf32> to vector<8x32xf32>
      %58 = vector.shape_cast %55 : vector<8x32xf32> to vector<1x8x32xf32>
      tpu.vector_store %arg21[%c0_34, %c0_35, %c0_36], %58 {strides = array<i32>} : memref<1x8x32xf32, #tpu.memory_space<vmem>>, vector<1x8x32xf32>,
    } else {
    }
    return
  }
  func.func @transform_0(%arg0: i32, %arg1: i32, %arg2: i32) -> (i32, i32, i32) {
    %c0_i32 = arith.constant 0 : i32
    %c0_i32_0 = arith.constant 0 : i32
    return %arg0, %arg1, %c0_i32 : i32, i32, i32
  }
  func.func @transform_1(%arg0: i32, %arg1: i32, %arg2: i32) -> (i32, i32, i32) {
    %c0_i32 = arith.constant 0 : i32
    %c0_i32_0 = arith.constant 0 : i32
    %c0_i32_1 = arith.constant 0 : i32
    return %arg0, %c0_i32, %c0_i32_0 : i32, i32, i32
  }
  func.func @transform_2(%arg0: i32, %arg1: i32, %arg2: i32) -> (i32, i32) {
    %c0_i32 = arith.constant 0 : i32
    %c0_i32_0 = arith.constant 0 : i32
    %c0_i32_1 = arith.constant 0 : i32
    return %c0_i32, %c0_i32_0 : i32, i32
  }
  func.func @transform_3(%arg0: i32, %arg1: i32, %arg2: i32) -> (i32, i32) {
    %c0_i32 = arith.constant 0 : i32
    %c0_i32_0 = arith.constant 0 : i32
    %c0_i32_1 = arith.constant 0 : i32
    return %c0_i32, %c0_i32_0 : i32, i32
  }
  func.func @transform_4(%arg0: i32, %arg1: i32, %arg2: i32) -> (i32, i32) {
    %c0_i32 = arith.constant 0 : i32
    %c0_i32_0 = arith.constant 0 : i32
    %c0_i32_1 = arith.constant 0 : i32
    return %c0_i32, %c0_i32_0 : i32, i32
  }
  func.func @transform_5(%arg0: i32, %arg1: i32, %arg2: i32) -> (i32, i32) {
    %c0_i32 = arith.constant 0 : i32
    %c0_i32_0 = arith.constant 0 : i32
    %c0_i32_1 = arith.constant 0 : i32
    return %c0_i32, %c0_i32_0 : i32, i32
  }
  func.func @transform_6(%arg0: i32, %arg1: i32, %arg2: i32) -> (i32, i32) {
    %c0_i32 = arith.constant 0 : i32
    %c0_i32_0 = arith.constant 0 : i32
    %c0_i32_1 = arith.constant 0 : i32
    return %c0_i32, %c0_i32_0 : i32, i32
  }
  func.func @transform_7(%arg0: i32, %arg1: i32, %arg2: i32) -> (i32, i32) {
    %c0_i32 = arith.constant 0 : i32
    %c0_i32_0 = arith.constant 0 : i32
    %c0_i32_1 = arith.constant 0 : i32
    return %c0_i32, %c0_i32_0 : i32, i32
  }
  func.func @transform_8(%arg0: i32, %arg1: i32, %arg2: i32) -> (i32, i32) {
    %c0_i32 = arith.constant 0 : i32
    %c0_i32_0 = arith.constant 0 : i32
    %c0_i32_1 = arith.constant 0 : i32
    return %c0_i32, %c0_i32_0 : i32, i32
  }
  func.func @transform_9(%arg0: i32, %arg1: i32, %arg2: i32) -> (i32, i32) {
    %c0_i32 = arith.constant 0 : i32
    %c0_i32_0 = arith.constant 0 : i32
    %c0_i32_1 = arith.constant 0 : i32
    return %c0_i32, %c0_i32_0 : i32, i32
  }
  func.func @transform_10(%arg0: i32, %arg1: i32, %arg2: i32) -> (i32, i32) {
    %c0_i32 = arith.constant 0 : i32
    %c0_i32_0 = arith.constant 0 : i32
    %c0_i32_1 = arith.constant 0 : i32
    return %c0_i32, %c0_i32_0 : i32, i32
  }
  func.func @transform_11(%arg0: i32, %arg1: i32, %arg2: i32) -> (i32, i32) {
    %c0_i32 = arith.constant 0 : i32
    %c0_i32_0 = arith.constant 0 : i32
    %c0_i32_1 = arith.constant 0 : i32
    return %c0_i32, %c0_i32_0 : i32, i32
  }
  func.func @transform_12(%arg0: i32, %arg1: i32, %arg2: i32) -> (i32, i32) {
    %c0_i32 = arith.constant 0 : i32
    %c0_i32_0 = arith.constant 0 : i32
    return %c0_i32, %arg2 : i32, i32
  }
  func.func @transform_13(%arg0: i32, %arg1: i32, %arg2: i32) -> (i32, i32) {
    %c0_i32 = arith.constant 0 : i32
    %c0_i32_0 = arith.constant 0 : i32
    return %c0_i32, %arg2 : i32, i32
  }
  func.func @transform_14(%arg0: i32, %arg1: i32, %arg2: i32) -> (i32, i32) {
    %c0_i32 = arith.constant 0 : i32
    %c0_i32_0 = arith.constant 0 : i32
    return %arg2, %c0_i32 : i32, i32
  }
  func.func @transform_15(%arg0: i32, %arg1: i32, %arg2: i32) -> (i32, i32) {
    %c0_i32 = arith.constant 0 : i32
    %c0_i32_0 = arith.constant 0 : i32
    %c0_i32_1 = arith.constant 0 : i32
    return %c0_i32, %c0_i32_0 : i32, i32
  }
  func.func @transform_16(%arg0: i32, %arg1: i32, %arg2: i32) -> (i32, i32) {
    %c0_i32 = arith.constant 0 : i32
    %c0_i32_0 = arith.constant 0 : i32
    %c0_i32_1 = arith.constant 0 : i32
    return %c0_i32, %c0_i32_0 : i32, i32
  }
  func.func @transform_17(%arg0: i32, %arg1: i32, %arg2: i32) -> (i32, i32) {
    %c0_i32 = arith.constant 0 : i32
    %c0_i32_0 = arith.constant 0 : i32
    %c0_i32_1 = arith.constant 0 : i32
    return %c0_i32, %c0_i32_0 : i32, i32
  }
  func.func @transform_18(%arg0: i32, %arg1: i32, %arg2: i32) -> (i32, i32, i32) {
    %c0_i32 = arith.constant 0 : i32
    %c0_i32_0 = arith.constant 0 : i32
    return %arg0, %arg1, %c0_i32 : i32, i32, i32
  }
}

module attributes {stable_mosaic.version = 11 : i64} {
  func.func @encoder_block_kernel(%arg0: i32, %arg1: i32, %arg2: i32, %arg3: memref<1x8x32xf32, #tpu.memory_space<vmem>>, %arg4: memref<1x8x32xbf16, #tpu.memory_space<vmem>>, %arg5: memref<32x32xbf16, #tpu.memory_space<vmem>>, %arg6: memref<1x32xf32, #tpu.memory_space<vmem>>, %arg7: memref<32x32xbf16, #tpu.memory_space<vmem>>, %arg8: memref<1x32xf32, #tpu.memory_space<vmem>>, %arg9: memref<32x32xbf16, #tpu.memory_space<vmem>>, %arg10: memref<1x32xf32, #tpu.memory_space<vmem>>, %arg11: memref<32x32xbf16, #tpu.memory_space<vmem>>, %arg12: memref<1x32xf32, #tpu.memory_space<vmem>>, %arg13: memref<1x32xf32, #tpu.memory_space<vmem>>, %arg14: memref<1x32xf32, #tpu.memory_space<vmem>>, %arg15: memref<32x64xbf16, #tpu.memory_space<vmem>>, %arg16: memref<1x64xf32, #tpu.memory_space<vmem>>, %arg17: memref<64x32xbf16, #tpu.memory_space<vmem>>, %arg18: memref<1x32xf32, #tpu.memory_space<vmem>>, %arg19: memref<1x32xf32, #tpu.memory_space<vmem>>, %arg20: memref<1x32xf32, #tpu.memory_space<vmem>>, %arg21: memref<1x8x32xf32, #tpu.memory_space<vmem>>, %arg22: memref<8x32xbf16, #tpu.memory_space<vmem>>, %arg23: memref<8x32xbf16, #tpu.memory_space<vmem>>, %arg24: memref<8x32xf32, #tpu.memory_space<vmem>>, %arg25: memref<8x32xf32, #tpu.memory_space<vmem>>) attributes {dimension_semantics = [#tpu.dimension_semantics<parallel>, #tpu.dimension_semantics<arbitrary>, #tpu.dimension_semantics<arbitrary>], iteration_bounds = array<i64: 2, 1, 1>, scalar_prefetch = 0 : i64, scratch_operands = 4 : i64, tpu.core_type = #tpu.core_type<tc>, window_params = [{transform_indices = @transform_0, window_bounds = array<i64: 1, 8, 32>}, {transform_indices = @transform_1, window_bounds = array<i64: 1, 8, 32>}, {pipeline_mode = #tpu.pipeline_mode<synchronous>, transform_indices = @transform_2, window_bounds = array<i64: 32, 32>}, {pipeline_mode = #tpu.pipeline_mode<synchronous>, transform_indices = @transform_3, window_bounds = array<i64: 1, 32>}, {pipeline_mode = #tpu.pipeline_mode<synchronous>, transform_indices = @transform_4, window_bounds = array<i64: 32, 32>}, {pipeline_mode = #tpu.pipeline_mode<synchronous>, transform_indices = @transform_5, window_bounds = array<i64: 1, 32>}, {pipeline_mode = #tpu.pipeline_mode<synchronous>, transform_indices = @transform_6, window_bounds = array<i64: 32, 32>}, {pipeline_mode = #tpu.pipeline_mode<synchronous>, transform_indices = @transform_7, window_bounds = array<i64: 1, 32>}, {pipeline_mode = #tpu.pipeline_mode<synchronous>, transform_indices = @transform_8, window_bounds = array<i64: 32, 32>}, {pipeline_mode = #tpu.pipeline_mode<synchronous>, transform_indices = @transform_9, window_bounds = array<i64: 1, 32>}, {pipeline_mode = #tpu.pipeline_mode<synchronous>, transform_indices = @transform_10, window_bounds = array<i64: 1, 32>}, {pipeline_mode = #tpu.pipeline_mode<synchronous>, transform_indices = @transform_11, window_bounds = array<i64: 1, 32>}, {transform_indices = @transform_12, window_bounds = array<i64: 32, 64>}, {transform_indices = @transform_13, window_bounds = array<i64: 1, 64>}, {transform_indices = @transform_14, window_bounds = array<i64: 64, 32>}, {pipeline_mode = #tpu.pipeline_mode<synchronous>, transform_indices = @transform_15, window_bounds = array<i64: 1, 32>}, {pipeline_mode = #tpu.pipeline_mode<synchronous>, transform_indices = @transform_16, window_bounds = array<i64: 1, 32>}, {pipeline_mode = #tpu.pipeline_mode<synchronous>, transform_indices = @transform_17, window_bounds = array<i64: 1, 32>}, {transform_indices = @transform_18, window_bounds = array<i64: 1, 8, 32>}]} {
    %c0_i32 = arith.constant 0 : i32
    %0 = arith.cmpi eq, %arg1, %c0_i32 : i32
    %c0_i32_0 = arith.constant 0 : i32
    %1 = arith.cmpi eq, %arg2, %c0_i32_0 : i32
    %2 = arith.andi %0, %1 : i1
    %3 = arith.extui %2 : i1 to i32
    %c0_i32_1 = arith.constant 0 : i32
    %4 = arith.cmpi ne, %3, %c0_i32_1 : i32
    scf.if %4 {
      %c0_19 = arith.constant 0 : index
      %c0_20 = arith.constant 0 : index
      %c0_21 = arith.constant 0 : index
      %26 = vector.load %arg4[%c0_19, %c0_20, %c0_21] : memref<1x8x32xbf16, #tpu.memory_space<vmem>>, vector<1x8x32xbf16>
      %27 = vector.shape_cast %26 : vector<1x8x32xbf16> to vector<8x32xbf16>
      %c0_22 = arith.constant 0 : index
      %c0_23 = arith.constant 0 : index
      %28 = vector.load %arg7[%c0_22, %c0_23] : memref<32x32xbf16, #tpu.memory_space<vmem>>, vector<32x32xbf16>
      %cst_24 = arith.constant dense<0.000000e+00> : vector<8x32xf32>
      %29 = tpu.matmul %27, %28, %cst_24 {dimension_numbers = #tpu.dot_dimension_numbers<[1], [0], [0], [1], [0, 0, 1, 1], [], []>} : vector<8x32xbf16>, vector<32x32xbf16>, vector<8x32xf32> -> vector<8x32xf32>
      %c0_25 = arith.constant 0 : index
      %c0_26 = arith.constant 0 : index
      %30 = vector.load %arg8[%c0_25, %c0_26] : memref<1x32xf32, #tpu.memory_space<vmem>>, vector<1x32xf32>
      %31 = vector.broadcast %30 : vector<1x32xf32> to vector<8x32xf32>
      %32 = arith.addf %29, %31 : vector<8x32xf32>
      %c0_27 = arith.constant 0 : index
      %c0_28 = arith.constant 0 : index
      %33 = vector.load %arg9[%c0_27, %c0_28] : memref<32x32xbf16, #tpu.memory_space<vmem>>, vector<32x32xbf16>
      %cst_29 = arith.constant dense<0.000000e+00> : vector<8x32xf32>
      %34 = tpu.matmul %27, %33, %cst_29 {dimension_numbers = #tpu.dot_dimension_numbers<[1], [0], [0], [1], [0, 0, 1, 1], [], []>} : vector<8x32xbf16>, vector<32x32xbf16>, vector<8x32xf32> -> vector<8x32xf32>
      %c0_30 = arith.constant 0 : index
      %c0_31 = arith.constant 0 : index
      %35 = vector.load %arg10[%c0_30, %c0_31] : memref<1x32xf32, #tpu.memory_space<vmem>>, vector<1x32xf32>
      %36 = vector.broadcast %35 : vector<1x32xf32> to vector<8x32xf32>
      %37 = arith.addf %34, %36 : vector<8x32xf32>
      %38 = arith.truncf %32 : vector<8x32xf32> to vector<8x32xbf16>
      %c0_32 = arith.constant 0 : index
      %c0_33 = arith.constant 0 : index
      %39 = vector.load %arg22[%c0_32, %c0_33] : memref<8x32xbf16, #tpu.memory_space<vmem>>, vector<8x32xbf16>
      tpu.vector_store %arg22[%c0_32, %c0_33], %38 {strides = array<i32>} : memref<8x32xbf16, #tpu.memory_space<vmem>>, vector<8x32xbf16>,
      %40 = arith.truncf %37 : vector<8x32xf32> to vector<8x32xbf16>
      %c0_34 = arith.constant 0 : index
      %c0_35 = arith.constant 0 : index
      %41 = vector.load %arg23[%c0_34, %c0_35] : memref<8x32xbf16, #tpu.memory_space<vmem>>, vector<8x32xbf16>
      tpu.vector_store %arg23[%c0_34, %c0_35], %40 {strides = array<i32>} : memref<8x32xbf16, #tpu.memory_space<vmem>>, vector<8x32xbf16>,
    } else {
    }
    %c0_i32_2 = arith.constant 0 : i32
    %5 = arith.cmpi eq, %arg2, %c0_i32_2 : i32
    %6 = arith.extui %5 : i1 to i32
    %c0_i32_3 = arith.constant 0 : i32
    %7 = arith.cmpi ne, %6, %c0_i32_3 : i32
    scf.if %7 {
      %c0_19 = arith.constant 0 : index
      %c0_20 = arith.constant 0 : index
      %c0_21 = arith.constant 0 : index
      %26 = vector.load %arg3[%c0_19, %c0_20, %c0_21] : memref<1x8x32xf32, #tpu.memory_space<vmem>>, vector<1x8x32xf32>
      %27 = vector.shape_cast %26 : vector<1x8x32xf32> to vector<8x32xf32>
      %28 = arith.truncf %27 : vector<8x32xf32> to vector<8x32xbf16>
      %c0_22 = arith.constant 0 : index
      %c0_23 = arith.constant 0 : index
      %29 = vector.load %arg5[%c0_22, %c0_23] : memref<32x32xbf16, #tpu.memory_space<vmem>>, vector<32x32xbf16>
      %cst_24 = arith.constant dense<0.000000e+00> : vector<8x32xf32>
      %30 = tpu.matmul %28, %29, %cst_24 {dimension_numbers = #tpu.dot_dimension_numbers<[1], [0], [0], [1], [0, 0, 1, 1], [], []>} : vector<8x32xbf16>, vector<32x32xbf16>, vector<8x32xf32> -> vector<8x32xf32>
      %c0_25 = arith.constant 0 : index
      %c0_26 = arith.constant 0 : index
      %31 = vector.load %arg6[%c0_25, %c0_26] : memref<1x32xf32, #tpu.memory_space<vmem>>, vector<1x32xf32>
      %32 = vector.broadcast %31 : vector<1x32xf32> to vector<8x32xf32>
      %33 = arith.addf %30, %32 : vector<8x32xf32>
      %cst_27 = arith.constant 0.353553385 : f32
      %34 = vector.broadcast %cst_27 : f32 to vector<8x32xf32>
      %35 = arith.mulf %33, %34 : vector<8x32xf32>
      %36 = arith.truncf %35 : vector<8x32xf32> to vector<8x32xbf16>
      %c0_28 = arith.constant 0 : index
      %c0_29 = arith.constant 0 : index
      %37 = vector.load %arg22[%c0_28, %c0_29] : memref<8x32xbf16, #tpu.memory_space<vmem>>, vector<8x32xbf16>
      %c0_30 = arith.constant 0 : index
      %c0_31 = arith.constant 0 : index
      %38 = vector.load %arg23[%c0_30, %c0_31] : memref<8x32xbf16, #tpu.memory_space<vmem>>, vector<8x32xbf16>
      %39 = vector.extract_strided_slice %36 {offsets = [0, 0], sizes = [8, 8], strides = [1, 1]} : vector<8x32xbf16> to vector<8x8xbf16>
      %40 = vector.extract_strided_slice %37 {offsets = [0, 0], sizes = [8, 8], strides = [1, 1]} : vector<8x32xbf16> to vector<8x8xbf16>
      %cst_32 = arith.constant dense<0.000000e+00> : vector<8x8xf32>
      %41 = tpu.matmul %39, %40, %cst_32 {dimension_numbers = #tpu.dot_dimension_numbers<[1], [1], [0], [0], [0, 0, 1, 0], [], []>} : vector<8x8xbf16>, vector<8x8xbf16>, vector<8x8xf32> -> vector<8x8xf32>
      %cst_33 = arith.constant dense<0xFF800000> : vector<8xf32>
      %42 = vector.multi_reduction <maximumf>, %41, %cst_33 [1] : vector<8x8xf32> to vector<8xf32>
      %43 = vector.shape_cast %42 : vector<8xf32> to vector<8x1xf32>
      %44 = vector.broadcast %43 : vector<8x1xf32> to vector<8x8xf32>
      %45 = arith.subf %41, %44 : vector<8x8xf32>
      %46 = math.exp %45 : vector<8x8xf32>
      %cst_34 = arith.constant dense<0.000000e+00> : vector<8xf32>
      %47 = vector.multi_reduction <add>, %46, %cst_34 [1] : vector<8x8xf32> to vector<8xf32>
      %48 = vector.shape_cast %47 : vector<8xf32> to vector<8x1xf32>
      %49 = arith.truncf %46 : vector<8x8xf32> to vector<8x8xbf16>
      %50 = vector.extract_strided_slice %38 {offsets = [0, 0], sizes = [8, 8], strides = [1, 1]} : vector<8x32xbf16> to vector<8x8xbf16>
      %cst_35 = arith.constant dense<0.000000e+00> : vector<8x8xf32>
      %51 = tpu.matmul %49, %50, %cst_35 {dimension_numbers = #tpu.dot_dimension_numbers<[1], [0], [0], [1], [0, 0, 1, 1], [], []>} : vector<8x8xbf16>, vector<8x8xbf16>, vector<8x8xf32> -> vector<8x8xf32>
      %52 = tpu.reciprocal %48 {approx = true} : vector<8x1xf32> -> vector<8x1xf32>
      %53 = vector.broadcast %52 : vector<8x1xf32> to vector<8x8xf32>
      %54 = arith.mulf %51, %53 : vector<8x8xf32>
      %55 = vector.extract_strided_slice %36 {offsets = [0, 8], sizes = [8, 8], strides = [1, 1]} : vector<8x32xbf16> to vector<8x8xbf16>
      %56 = vector.extract_strided_slice %37 {offsets = [0, 8], sizes = [8, 8], strides = [1, 1]} : vector<8x32xbf16> to vector<8x8xbf16>
      %cst_36 = arith.constant dense<0.000000e+00> : vector<8x8xf32>
      %57 = tpu.matmul %55, %56, %cst_36 {dimension_numbers = #tpu.dot_dimension_numbers<[1], [1], [0], [0], [0, 0, 1, 0], [], []>} : vector<8x8xbf16>, vector<8x8xbf16>, vector<8x8xf32> -> vector<8x8xf32>
      %cst_37 = arith.constant dense<0xFF800000> : vector<8xf32>
      %58 = vector.multi_reduction <maximumf>, %57, %cst_37 [1] : vector<8x8xf32> to vector<8xf32>
      %59 = vector.shape_cast %58 : vector<8xf32> to vector<8x1xf32>
      %60 = vector.broadcast %59 : vector<8x1xf32> to vector<8x8xf32>
      %61 = arith.subf %57, %60 : vector<8x8xf32>
      %62 = math.exp %61 : vector<8x8xf32>
      %cst_38 = arith.constant dense<0.000000e+00> : vector<8xf32>
      %63 = vector.multi_reduction <add>, %62, %cst_38 [1] : vector<8x8xf32> to vector<8xf32>
      %64 = vector.shape_cast %63 : vector<8xf32> to vector<8x1xf32>
      %65 = arith.truncf %62 : vector<8x8xf32> to vector<8x8xbf16>
      %66 = vector.extract_strided_slice %38 {offsets = [0, 8], sizes = [8, 8], strides = [1, 1]} : vector<8x32xbf16> to vector<8x8xbf16>
      %cst_39 = arith.constant dense<0.000000e+00> : vector<8x8xf32>
      %67 = tpu.matmul %65, %66, %cst_39 {dimension_numbers = #tpu.dot_dimension_numbers<[1], [0], [0], [1], [0, 0, 1, 1], [], []>} : vector<8x8xbf16>, vector<8x8xbf16>, vector<8x8xf32> -> vector<8x8xf32>
      %68 = tpu.reciprocal %64 {approx = true} : vector<8x1xf32> -> vector<8x1xf32>
      %69 = vector.broadcast %68 : vector<8x1xf32> to vector<8x8xf32>
      %70 = arith.mulf %67, %69 : vector<8x8xf32>
      %71 = vector.extract_strided_slice %36 {offsets = [0, 16], sizes = [8, 8], strides = [1, 1]} : vector<8x32xbf16> to vector<8x8xbf16>
      %72 = vector.extract_strided_slice %37 {offsets = [0, 16], sizes = [8, 8], strides = [1, 1]} : vector<8x32xbf16> to vector<8x8xbf16>
      %cst_40 = arith.constant dense<0.000000e+00> : vector<8x8xf32>
      %73 = tpu.matmul %71, %72, %cst_40 {dimension_numbers = #tpu.dot_dimension_numbers<[1], [1], [0], [0], [0, 0, 1, 0], [], []>} : vector<8x8xbf16>, vector<8x8xbf16>, vector<8x8xf32> -> vector<8x8xf32>
      %cst_41 = arith.constant dense<0xFF800000> : vector<8xf32>
      %74 = vector.multi_reduction <maximumf>, %73, %cst_41 [1] : vector<8x8xf32> to vector<8xf32>
      %75 = vector.shape_cast %74 : vector<8xf32> to vector<8x1xf32>
      %76 = vector.broadcast %75 : vector<8x1xf32> to vector<8x8xf32>
      %77 = arith.subf %73, %76 : vector<8x8xf32>
      %78 = math.exp %77 : vector<8x8xf32>
      %cst_42 = arith.constant dense<0.000000e+00> : vector<8xf32>
      %79 = vector.multi_reduction <add>, %78, %cst_42 [1] : vector<8x8xf32> to vector<8xf32>
      %80 = vector.shape_cast %79 : vector<8xf32> to vector<8x1xf32>
      %81 = arith.truncf %78 : vector<8x8xf32> to vector<8x8xbf16>
      %82 = vector.extract_strided_slice %38 {offsets = [0, 16], sizes = [8, 8], strides = [1, 1]} : vector<8x32xbf16> to vector<8x8xbf16>
      %cst_43 = arith.constant dense<0.000000e+00> : vector<8x8xf32>
      %83 = tpu.matmul %81, %82, %cst_43 {dimension_numbers = #tpu.dot_dimension_numbers<[1], [0], [0], [1], [0, 0, 1, 1], [], []>} : vector<8x8xbf16>, vector<8x8xbf16>, vector<8x8xf32> -> vector<8x8xf32>
      %84 = tpu.reciprocal %80 {approx = true} : vector<8x1xf32> -> vector<8x1xf32>
      %85 = vector.broadcast %84 : vector<8x1xf32> to vector<8x8xf32>
      %86 = arith.mulf %83, %85 : vector<8x8xf32>
      %87 = vector.extract_strided_slice %36 {offsets = [0, 24], sizes = [8, 8], strides = [1, 1]} : vector<8x32xbf16> to vector<8x8xbf16>
      %88 = vector.extract_strided_slice %37 {offsets = [0, 24], sizes = [8, 8], strides = [1, 1]} : vector<8x32xbf16> to vector<8x8xbf16>
      %cst_44 = arith.constant dense<0.000000e+00> : vector<8x8xf32>
      %89 = tpu.matmul %87, %88, %cst_44 {dimension_numbers = #tpu.dot_dimension_numbers<[1], [1], [0], [0], [0, 0, 1, 0], [], []>} : vector<8x8xbf16>, vector<8x8xbf16>, vector<8x8xf32> -> vector<8x8xf32>
      %cst_45 = arith.constant dense<0xFF800000> : vector<8xf32>
      %90 = vector.multi_reduction <maximumf>, %89, %cst_45 [1] : vector<8x8xf32> to vector<8xf32>
      %91 = vector.shape_cast %90 : vector<8xf32> to vector<8x1xf32>
      %92 = vector.broadcast %91 : vector<8x1xf32> to vector<8x8xf32>
      %93 = arith.subf %89, %92 : vector<8x8xf32>
      %94 = math.exp %93 : vector<8x8xf32>
      %cst_46 = arith.constant dense<0.000000e+00> : vector<8xf32>
      %95 = vector.multi_reduction <add>, %94, %cst_46 [1] : vector<8x8xf32> to vector<8xf32>
      %96 = vector.shape_cast %95 : vector<8xf32> to vector<8x1xf32>
      %97 = arith.truncf %94 : vector<8x8xf32> to vector<8x8xbf16>
      %98 = vector.extract_strided_slice %38 {offsets = [0, 24], sizes = [8, 8], strides = [1, 1]} : vector<8x32xbf16> to vector<8x8xbf16>
      %cst_47 = arith.constant dense<0.000000e+00> : vector<8x8xf32>
      %99 = tpu.matmul %97, %98, %cst_47 {dimension_numbers = #tpu.dot_dimension_numbers<[1], [0], [0], [1], [0, 0, 1, 1], [], []>} : vector<8x8xbf16>, vector<8x8xbf16>, vector<8x8xf32> -> vector<8x8xf32>
      %100 = tpu.reciprocal %96 {approx = true} : vector<8x1xf32> -> vector<8x1xf32>
      %101 = vector.broadcast %100 : vector<8x1xf32> to vector<8x8xf32>
      %102 = arith.mulf %99, %101 : vector<8x8xf32>
      %103 = tpu.concatenate %54, %70, %86, %102 in 1 : vector<8x8xf32>, vector<8x8xf32>, vector<8x8xf32>, vector<8x8xf32> -> vector<8x32xf32>
      %104 = arith.truncf %103 : vector<8x32xf32> to vector<8x32xbf16>
      %c0_48 = arith.constant 0 : index
      %c0_49 = arith.constant 0 : index
      %105 = vector.load %arg11[%c0_48, %c0_49] : memref<32x32xbf16, #tpu.memory_space<vmem>>, vector<32x32xbf16>
      %cst_50 = arith.constant dense<0.000000e+00> : vector<8x32xf32>
      %106 = tpu.matmul %104, %105, %cst_50 {dimension_numbers = #tpu.dot_dimension_numbers<[1], [0], [0], [1], [0, 0, 1, 1], [], []>} : vector<8x32xbf16>, vector<32x32xbf16>, vector<8x32xf32> -> vector<8x32xf32>
      %c0_51 = arith.constant 0 : index
      %c0_52 = arith.constant 0 : index
      %107 = vector.load %arg12[%c0_51, %c0_52] : memref<1x32xf32, #tpu.memory_space<vmem>>, vector<1x32xf32>
      %108 = vector.broadcast %107 : vector<1x32xf32> to vector<8x32xf32>
      %109 = arith.addf %106, %108 : vector<8x32xf32>
      %110 = arith.addf %27, %109 : vector<8x32xf32>
      %c0_53 = arith.constant 0 : index
      %c0_54 = arith.constant 0 : index
      %111 = vector.load %arg13[%c0_53, %c0_54] : memref<1x32xf32, #tpu.memory_space<vmem>>, vector<1x32xf32>
      %c0_55 = arith.constant 0 : index
      %c0_56 = arith.constant 0 : index
      %112 = vector.load %arg14[%c0_55, %c0_56] : memref<1x32xf32, #tpu.memory_space<vmem>>, vector<1x32xf32>
      %cst_57 = arith.constant dense<0.000000e+00> : vector<8xf32>
      %113 = vector.multi_reduction <add>, %110, %cst_57 [1] : vector<8x32xf32> to vector<8xf32>
      %114 = vector.shape_cast %113 : vector<8xf32> to vector<8x1xf32>
      %cst_58 = arith.constant 3.200000e+01 : f32
      %115 = vector.broadcast %cst_58 : f32 to vector<8x1xf32>
      %116 = arith.divf %114, %115 : vector<8x1xf32>
      %117 = vector.broadcast %116 : vector<8x1xf32> to vector<8x32xf32>
      %118 = arith.subf %110, %117 : vector<8x32xf32>
      %119 = arith.mulf %118, %118 : vector<8x32xf32>
      %cst_59 = arith.constant dense<0.000000e+00> : vector<8xf32>
      %120 = vector.multi_reduction <add>, %119, %cst_59 [1] : vector<8x32xf32> to vector<8xf32>
      %121 = vector.shape_cast %120 : vector<8xf32> to vector<8x1xf32>
      %cst_60 = arith.constant 3.200000e+01 : f32
      %122 = vector.broadcast %cst_60 : f32 to vector<8x1xf32>
      %123 = arith.divf %121, %122 : vector<8x1xf32>
      %124 = vector.broadcast %116 : vector<8x1xf32> to vector<8x32xf32>
      %125 = arith.subf %110, %124 : vector<8x32xf32>
      %cst_61 = arith.constant 9.99999974E-6 : f32
      %126 = vector.broadcast %cst_61 : f32 to vector<8x1xf32>
      %127 = arith.addf %123, %126 : vector<8x1xf32>
      %128 = math.rsqrt %127 : vector<8x1xf32>
      %129 = vector.broadcast %128 : vector<8x1xf32> to vector<8x32xf32>
      %130 = arith.mulf %125, %129 : vector<8x32xf32>
      %131 = vector.broadcast %111 : vector<1x32xf32> to vector<8x32xf32>
      %132 = arith.mulf %130, %131 : vector<8x32xf32>
      %133 = vector.broadcast %112 : vector<1x32xf32> to vector<8x32xf32>
      %134 = arith.addf %132, %133 : vector<8x32xf32>
      %c0_62 = arith.constant 0 : index
      %c0_63 = arith.constant 0 : index
      %135 = vector.load %arg24[%c0_62, %c0_63] : memref<8x32xf32, #tpu.memory_space<vmem>>, vector<8x32xf32>
      tpu.vector_store %arg24[%c0_62, %c0_63], %134 {strides = array<i32>} : memref<8x32xf32, #tpu.memory_space<vmem>>, vector<8x32xf32>,
      %cst_64 = arith.constant 0.000000e+00 : f32
      %136 = vector.broadcast %cst_64 : f32 to vector<8x32xf32>
      %c0_65 = arith.constant 0 : index
      %c0_66 = arith.constant 0 : index
      %137 = vector.load %arg25[%c0_65, %c0_66] : memref<8x32xf32, #tpu.memory_space<vmem>>, vector<8x32xf32>
      tpu.vector_store %arg25[%c0_65, %c0_66], %136 {strides = array<i32>} : memref<8x32xf32, #tpu.memory_space<vmem>>, vector<8x32xf32>,
    } else {
    }
    %c0 = arith.constant 0 : index
    %c0_4 = arith.constant 0 : index
    %8 = vector.load %arg24[%c0, %c0_4] : memref<8x32xf32, #tpu.memory_space<vmem>>, vector<8x32xf32>
    %9 = arith.truncf %8 : vector<8x32xf32> to vector<8x32xbf16>
    %c0_5 = arith.constant 0 : index
    %c0_6 = arith.constant 0 : index
    %10 = vector.load %arg15[%c0_5, %c0_6] : memref<32x64xbf16, #tpu.memory_space<vmem>>, vector<32x64xbf16>
    %cst = arith.constant dense<0.000000e+00> : vector<8x64xf32>
    %11 = tpu.matmul %9, %10, %cst {dimension_numbers = #tpu.dot_dimension_numbers<[1], [0], [0], [1], [0, 0, 1, 1], [], []>} : vector<8x32xbf16>, vector<32x64xbf16>, vector<8x64xf32> -> vector<8x64xf32>
    %c0_7 = arith.constant 0 : index
    %c0_8 = arith.constant 0 : index
    %12 = vector.load %arg16[%c0_7, %c0_8] : memref<1x64xf32, #tpu.memory_space<vmem>>, vector<1x64xf32>
    %13 = vector.broadcast %12 : vector<1x64xf32> to vector<8x64xf32>
    %14 = arith.addf %11, %13 : vector<8x64xf32>
    %cst_9 = arith.constant 0.000000e+00 : f32
    %15 = vector.broadcast %cst_9 : f32 to vector<8x64xf32>
    %16 = arith.maximumf %14, %15 : vector<8x64xf32>
    %17 = arith.truncf %16 : vector<8x64xf32> to vector<8x64xbf16>
    %c0_10 = arith.constant 0 : index
    %c0_11 = arith.constant 0 : index
    %18 = vector.load %arg25[%c0_10, %c0_11] : memref<8x32xf32, #tpu.memory_space<vmem>>, vector<8x32xf32>
    %c0_12 = arith.constant 0 : index
    %c0_13 = arith.constant 0 : index
    %19 = vector.load %arg17[%c0_12, %c0_13] : memref<64x32xbf16, #tpu.memory_space<vmem>>, vector<64x32xbf16>
    %cst_14 = arith.constant dense<0.000000e+00> : vector<8x32xf32>
    %20 = tpu.matmul %17, %19, %cst_14 {dimension_numbers = #tpu.dot_dimension_numbers<[1], [0], [0], [1], [0, 0, 1, 1], [], []>} : vector<8x64xbf16>, vector<64x32xbf16>, vector<8x32xf32> -> vector<8x32xf32>
    %21 = arith.addf %18, %20 : vector<8x32xf32>
    %c0_15 = arith.constant 0 : index
    %c0_16 = arith.constant 0 : index
    %22 = vector.load %arg25[%c0_15, %c0_16] : memref<8x32xf32, #tpu.memory_space<vmem>>, vector<8x32xf32>
    tpu.vector_store %arg25[%c0_15, %c0_16], %21 {strides = array<i32>} : memref<8x32xf32, #tpu.memory_space<vmem>>, vector<8x32xf32>,
    %c0_i32_17 = arith.constant 0 : i32
    %23 = arith.cmpi eq, %arg2, %c0_i32_17 : i32
    %24 = arith.extui %23 : i1 to i32
    %c0_i32_18 = arith.constant 0 : i32
    %25 = arith.cmpi ne, %24, %c0_i32_18 : i32
    scf.if %25 {
      %c0_19 = arith.constant 0 : index
      %c0_20 = arith.constant 0 : index
      %26 = vector.load %arg25[%c0_19, %c0_20] : memref<8x32xf32, #tpu.memory_space<vmem>>, vector<8x32xf32>
      %c0_21 = arith.constant 0 : index
      %c0_22 = arith.constant 0 : index
      %27 = vector.load %arg18[%c0_21, %c0_22] : memref<1x32xf32, #tpu.memory_space<vmem>>, vector<1x32xf32>
      %28 = vector.broadcast %27 : vector<1x32xf32> to vector<8x32xf32>
      %29 = arith.addf %26, %28 : vector<8x32xf32>
      %c0_23 = arith.constant 0 : index
      %c0_24 = arith.constant 0 : index
      %30 = vector.load %arg24[%c0_23, %c0_24] : memref<8x32xf32, #tpu.memory_space<vmem>>, vector<8x32xf32>
      %31 = arith.addf %30, %29 : vector<8x32xf32>
      %c0_25 = arith.constant 0 : index
      %c0_26 = arith.constant 0 : index
      %32 = vector.load %arg19[%c0_25, %c0_26] : memref<1x32xf32, #tpu.memory_space<vmem>>, vector<1x32xf32>
      %c0_27 = arith.constant 0 : index
      %c0_28 = arith.constant 0 : index
      %33 = vector.load %arg20[%c0_27, %c0_28] : memref<1x32xf32, #tpu.memory_space<vmem>>, vector<1x32xf32>
      %cst_29 = arith.constant dense<0.000000e+00> : vector<8xf32>
      %34 = vector.multi_reduction <add>, %31, %cst_29 [1] : vector<8x32xf32> to vector<8xf32>
      %35 = vector.shape_cast %34 : vector<8xf32> to vector<8x1xf32>
      %cst_30 = arith.constant 3.200000e+01 : f32
      %36 = vector.broadcast %cst_30 : f32 to vector<8x1xf32>
      %37 = arith.divf %35, %36 : vector<8x1xf32>
      %38 = vector.broadcast %37 : vector<8x1xf32> to vector<8x32xf32>
      %39 = arith.subf %31, %38 : vector<8x32xf32>
      %40 = arith.mulf %39, %39 : vector<8x32xf32>
      %cst_31 = arith.constant dense<0.000000e+00> : vector<8xf32>
      %41 = vector.multi_reduction <add>, %40, %cst_31 [1] : vector<8x32xf32> to vector<8xf32>
      %42 = vector.shape_cast %41 : vector<8xf32> to vector<8x1xf32>
      %cst_32 = arith.constant 3.200000e+01 : f32
      %43 = vector.broadcast %cst_32 : f32 to vector<8x1xf32>
      %44 = arith.divf %42, %43 : vector<8x1xf32>
      %45 = vector.broadcast %37 : vector<8x1xf32> to vector<8x32xf32>
      %46 = arith.subf %31, %45 : vector<8x32xf32>
      %cst_33 = arith.constant 9.99999974E-6 : f32
      %47 = vector.broadcast %cst_33 : f32 to vector<8x1xf32>
      %48 = arith.addf %44, %47 : vector<8x1xf32>
      %49 = math.rsqrt %48 : vector<8x1xf32>
      %50 = vector.broadcast %49 : vector<8x1xf32> to vector<8x32xf32>
      %51 = arith.mulf %46, %50 : vector<8x32xf32>
      %52 = vector.broadcast %32 : vector<1x32xf32> to vector<8x32xf32>
      %53 = arith.mulf %51, %52 : vector<8x32xf32>
      %54 = vector.broadcast %33 : vector<1x32xf32> to vector<8x32xf32>
      %55 = arith.addf %53, %54 : vector<8x32xf32>
      %c0_34 = arith.constant 0 : index
      %c0_35 = arith.constant 0 : index
      %c0_36 = arith.constant 0 : index
      %56 = vector.load %arg21[%c0_34, %c0_35, %c0_36] : memref<1x8x32xf32, #tpu.memory_space<vmem>>, vector<1x8x32xf32>
      %57 = vector.shape_cast %56 : vector<1x8x32xf32> to vector<8x32xf32>
      %58 = vector.shape_cast %55 : vector<8x32xf32> to vector<1x8x32xf32>
      tpu.vector_store %arg21[%c0_34, %c0_35, %c0_36], %58 {strides = array<i32>} : memref<1x8x32xf32, #tpu.memory_space<vmem>>, vector<1x8x32xf32>,
    } else {
    }
    return
  }
  func.func @transform_0(%arg0: i32, %arg1: i32, %arg2: i32) -> (i32, i32, i32) {
    %c0_i32 = arith.constant 0 : i32
    %c0_i32_0 = arith.constant 0 : i32
    return %arg0, %arg1, %c0_i32 : i32, i32, i32
  }
  func.func @transform_1(%arg0: i32, %arg1: i32, %arg2: i32) -> (i32, i32, i32) {
    %c0_i32 = arith.constant 0 : i32
    %c0_i32_0 = arith.constant 0 : i32
    %c0_i32_1 = arith.constant 0 : i32
    return %arg0, %c0_i32, %c0_i32_0 : i32, i32, i32
  }
  func.func @transform_2(%arg0: i32, %arg1: i32, %arg2: i32) -> (i32, i32) {
    %c0_i32 = arith.constant 0 : i32
    %c0_i32_0 = arith.constant 0 : i32
    %c0_i32_1 = arith.constant 0 : i32
    return %c0_i32, %c0_i32_0 : i32, i32
  }
  func.func @transform_3(%arg0: i32, %arg1: i32, %arg2: i32) -> (i32, i32) {
    %c0_i32 = arith.constant 0 : i32
    %c0_i32_0 = arith.constant 0 : i32
    %c0_i32_1 = arith.constant 0 : i32
    return %c0_i32, %c0_i32_0 : i32, i32
  }
  func.func @transform_4(%arg0: i32, %arg1: i32, %arg2: i32) -> (i32, i32) {
    %c0_i32 = arith.constant 0 : i32
    %c0_i32_0 = arith.constant 0 : i32
    %c0_i32_1 = arith.constant 0 : i32
    return %c0_i32, %c0_i32_0 : i32, i32
  }
  func.func @transform_5(%arg0: i32, %arg1: i32, %arg2: i32) -> (i32, i32) {
    %c0_i32 = arith.constant 0 : i32
    %c0_i32_0 = arith.constant 0 : i32
    %c0_i32_1 = arith.constant 0 : i32
    return %c0_i32, %c0_i32_0 : i32, i32
  }
  func.func @transform_6(%arg0: i32, %arg1: i32, %arg2: i32) -> (i32, i32) {
    %c0_i32 = arith.constant 0 : i32
    %c0_i32_0 = arith.constant 0 : i32
    %c0_i32_1 = arith.constant 0 : i32
    return %c0_i32, %c0_i32_0 : i32, i32
  }
  func.func @transform_7(%arg0: i32, %arg1: i32, %arg2: i32) -> (i32, i32) {
    %c0_i32 = arith.constant 0 : i32
    %c0_i32_0 = arith.constant 0 : i32
    %c0_i32_1 = arith.constant 0 : i32
    return %c0_i32, %c0_i32_0 : i32, i32
  }
  func.func @transform_8(%arg0: i32, %arg1: i32, %arg2: i32) -> (i32, i32) {
    %c0_i32 = arith.constant 0 : i32
    %c0_i32_0 = arith.constant 0 : i32
    %c0_i32_1 = arith.constant 0 : i32
    return %c0_i32, %c0_i32_0 : i32, i32
  }
  func.func @transform_9(%arg0: i32, %arg1: i32, %arg2: i32) -> (i32, i32) {
    %c0_i32 = arith.constant 0 : i32
    %c0_i32_0 = arith.constant 0 : i32
    %c0_i32_1 = arith.constant 0 : i32
    return %c0_i32, %c0_i32_0 : i32, i32
  }
  func.func @transform_10(%arg0: i32, %arg1: i32, %arg2: i32) -> (i32, i32) {
    %c0_i32 = arith.constant 0 : i32
    %c0_i32_0 = arith.constant 0 : i32
    %c0_i32_1 = arith.constant 0 : i32
    return %c0_i32, %c0_i32_0 : i32, i32
  }
  func.func @transform_11(%arg0: i32, %arg1: i32, %arg2: i32) -> (i32, i32) {
    %c0_i32 = arith.constant 0 : i32
    %c0_i32_0 = arith.constant 0 : i32
    %c0_i32_1 = arith.constant 0 : i32
    return %c0_i32, %c0_i32_0 : i32, i32
  }
  func.func @transform_12(%arg0: i32, %arg1: i32, %arg2: i32) -> (i32, i32) {
    %c0_i32 = arith.constant 0 : i32
    %c0_i32_0 = arith.constant 0 : i32
    return %c0_i32, %arg2 : i32, i32
  }
  func.func @transform_13(%arg0: i32, %arg1: i32, %arg2: i32) -> (i32, i32) {
    %c0_i32 = arith.constant 0 : i32
    %c0_i32_0 = arith.constant 0 : i32
    return %c0_i32, %arg2 : i32, i32
  }
  func.func @transform_14(%arg0: i32, %arg1: i32, %arg2: i32) -> (i32, i32) {
    %c0_i32 = arith.constant 0 : i32
    %c0_i32_0 = arith.constant 0 : i32
    return %arg2, %c0_i32 : i32, i32
  }
  func.func @transform_15(%arg0: i32, %arg1: i32, %arg2: i32) -> (i32, i32) {
    %c0_i32 = arith.constant 0 : i32
    %c0_i32_0 = arith.constant 0 : i32
    %c0_i32_1 = arith.constant 0 : i32
    return %c0_i32, %c0_i32_0 : i32, i32
  }
  func.func @transform_16(%arg0: i32, %arg1: i32, %arg2: i32) -> (i32, i32) {
    %c0_i32 = arith.constant 0 : i32
    %c0_i32_0 = arith.constant 0 : i32
    %c0_i32_1 = arith.constant 0 : i32
    return %c0_i32, %c0_i32_0 : i32, i32
  }
  func.func @transform_17(%arg0: i32, %arg1: i32, %arg2: i32) -> (i32, i32) {
    %c0_i32 = arith.constant 0 : i32
    %c0_i32_0 = arith.constant 0 : i32
    %c0_i32_1 = arith.constant 0 : i32
    return %c0_i32, %c0_i32_0 : i32, i32
  }
  func.func @transform_18(%arg0: i32, %arg1: i32, %arg2: i32) -> (i32, i32, i32) {
    %c0_i32 = arith.constant 0 : i32
    %c0_i32_0 = arith.constant 0 : i32
    return %arg0, %arg1, %c0_i32 : i32, i32, i32
  }
}

</mosaic_0001>

<llo_original>
// kernel: tpu_custom_call.1
$region0: #{tpu_custom_call.1}
  #allocation0 [shape = 'u32[]', space=smem, size = 0x4, offset = 0x4, fixed_abs, tag = 'smem constant byte address 0x4 - core index']
  #allocation1 [shape = 'u32[144,128]{1,0:T(1,128)}', space=vmem, size = 0x12000, scoped, tag = 'internal scratch']
  #allocation2 [shape = 'bf16[8,32]{1,0:T(8,128)(2,1)}', space=vmem, size = 0x800, scoped, tag = 'scratch operand']
  #allocation3 [shape = 'bf16[8,32]{1,0:T(8,128)(2,1)}', space=vmem, size = 0x800, scoped, tag = 'scratch operand']
  #allocation4 [shape = 'f32[8,32]{1,0:T(8,128)}', space=vmem, size = 0x1000, scoped, tag = 'scratch operand']
  #allocation5 [shape = 'f32[8,32]{1,0:T(8,128)}', space=vmem, size = 0x1000, scoped, tag = 'scratch operand']
  %s0 = inlined_call_operand.vmem [shape: f32[2,8,32], index: 0, kind: input, shape index: {}]
  %s1 = inlined_call_operand.hbm [shape: bf16[2,8,32], index: 1, kind: input, shape index: {}]
  %s2 = inlined_call_operand.vmem [shape: bf16[32,32], index: 2, kind: input, shape index: {}]
  %s3 = inlined_call_operand.vmem [shape: f32[1,32], index: 3, kind: input, shape index: {}]
  %s4 = inlined_call_operand.vmem [shape: bf16[32,32], index: 4, kind: input, shape index: {}]
  %s5 = inlined_call_operand.vmem [shape: f32[1,32], index: 5, kind: input, shape index: {}]
  %s6 = inlined_call_operand.hbm [shape: bf16[32,32], index: 6, kind: input, shape index: {}]
  %s7 = inlined_call_operand.hbm [shape: f32[1,32], index: 7, kind: input, shape index: {}]
  %s8 = inlined_call_operand.hbm [shape: bf16[32,32], index: 8, kind: input, shape index: {}]
  %s9 = inlined_call_operand.hbm [shape: f32[1,32], index: 9, kind: input, shape index: {}]
  %s10 = inlined_call_operand.vmem [shape: f32[1,32], index: 10, kind: input, shape index: {}]
  %s11 = inlined_call_operand.vmem [shape: f32[1,32], index: 11, kind: input, shape index: {}]
  %s12 = inlined_call_operand.vmem [shape: bf16[32,64], index: 12, kind: input, shape index: {}]
  %s13 = inlined_call_operand.vmem [shape: f32[1,64], index: 13, kind: input, shape index: {}]
  %s14 = inlined_call_operand.vmem [shape: bf16[64,32], index: 14, kind: input, shape index: {}]
  %s15 = inlined_call_operand.vmem [shape: f32[1,32], index: 15, kind: input, shape index: {}]
  %s16 = inlined_call_operand.vmem [shape: f32[1,32], index: 16, kind: input, shape index: {}]
  %s17 = inlined_call_operand.vmem [shape: f32[1,32], index: 17, kind: input, shape index: {}]
  %s18 = inlined_call_operand.hbm [shape: f32[2,8,32], index: 18, kind: output, shape index: {}]
  %s19 = sld [smem:[#allocation0]]
  $region137: #{tpu_custom_call.1} parent=0
    _
  %s21 = ssub.s32 1, %s19
  %s22 = scalar_select 0, %s21, %s19
  $region1: #{tpu_custom_call.1} parent=0
    #allocation6 [shape = 'u8[4096]{0}', space=vmem, size = 0x1000, scoped, tag = 'input window, operand 1']
    #allocation7 [shape = 's32[2]{0}', space=sflag, size = 0x8, scoped, tag = 'scoped memory for tpu_custom_call.1']
    #allocation8 [shape = 's32[2]{0}', space=sflag, size = 0x8, scoped, tag = 'scoped memory for tpu_custom_call.1']
    #allocation9 [shape = 'u8[8192]{0}', space=vmem, size = 0x2000, scoped, tag = 'input window, operand 6, single buffered']
    #allocation10 [shape = 's32[1]{0}', space=sflag, size = 0x4, scoped, tag = 'scoped memory for tpu_custom_call.1']
    #allocation11 [shape = 'u8[512]{0}', space=vmem, size = 0x400, scoped, tag = 'input window, operand 7, single buffered']
    #allocation12 [shape = 'u8[8192]{0}', space=vmem, size = 0x2000, scoped, tag = 'input window, operand 8, single buffered']
    #allocation13 [shape = 's32[1]{0}', space=sflag, size = 0x4, scoped, tag = 'scoped memory for tpu_custom_call.1']
    #allocation14 [shape = 'u8[512]{0}', space=vmem, size = 0x400, scoped, tag = 'input window, operand 9, single buffered']
    #allocation15 [shape = 'u8[8192]{0}', space=vmem, size = 0x2000, scoped, tag = 'output window, operand 0']
    %23 = vsyncpa [#allocation7], 0
    %s24 = scalar_lea.sflag [#allocation7], 1
    %25 = vsyncpa %s24, 0
    %26 = vsyncpa [#allocation10], 0
    %27 = vsyncpa [#allocation13], 0
    %28 = vsyncpa [#allocation8], 0
    %s29 = scalar_lea.sflag [#allocation8], 1
    %30 = vsyncpa %s29, 0
    loop: start=0, step=1, limit=4
    $region2: #{tpu_custom_call.1} parent=1 // loop_pre_header
      _
    $region3: #{tpu_custom_call.1} parent=1 // loop_header
      %s32 = sphi 0, %s36
      %p33 = scmp.ge.s32.totalorder %s32, 4
      %s39 = sphi 0, %s58
      %s40 = sphi 0, %s54
      %s41 = sphi 0, %s50
      %s42 = sphi 0, %s39
      %s43 = sphi 0, %s40
      %s44 = sphi 0, %s41
      %s45 = sphi 0, %s42
      %s46 = sphi 0, %s43
      %s47 = sphi 0, %s44
      %s63 = sphi 0, %s65
      %s66 = sphi 0, %s63
      %s67 = sphi 0, %s66
      %s83 = sphi 0, %s67
      %s89 = sphi 0, %s91
      %s92 = sphi 0, %s89
      %s93 = sphi 0, %s92
      %s109 = sphi 0, %s93
      %s113 = sphi 0, %s113
      %s115 = sphi 0, %s113
      %s116 = sphi 0, %s115
      %s130 = sphi 0, %s116
      %s134 = sphi 0, %s134
      %s136 = sphi 0, %s134
      %s137 = sphi 0, %s136
      %s151 = sphi 0, %s137
      %s155 = sphi 0, %s155
      %s157 = sphi 0, %s155
      %s158 = sphi 0, %s157
      %s172 = sphi 0, %s158
      %s176 = sphi 0, %s176
      %s178 = sphi 0, %s176
      %s179 = sphi 0, %s178
      %s193 = sphi 0, %s179
      %s197 = sphi 0, %s197
      %s199 = sphi 0, %s197
      %s200 = sphi 0, %s199
      %s214 = sphi 0, %s200
      %s218 = sphi 0, %s218
      %s220 = sphi 0, %s218
      %s221 = sphi 0, %s220
      %s235 = sphi 0, %s221
      %s239 = sphi 0, %s239
      %s241 = sphi 0, %s239
      %s242 = sphi 0, %s241
      %s256 = sphi 0, %s242
      %s260 = sphi 0, %s260
      %s262 = sphi 0, %s260
      %s263 = sphi 0, %s262
      %s277 = sphi 0, %s263
      %s281 = sphi 0, %s281
      %s283 = sphi 0, %s281
      %s284 = sphi 0, %s283
      %s298 = sphi 0, %s284
      %s302 = sphi 0, %s302
      %s304 = sphi 0, %s302
      %s305 = sphi 0, %s304
      %s319 = sphi 0, %s305
      %s325 = sphi 0, %s327
      %s328 = sphi 0, %s325
      %s329 = sphi 0, %s328
      %s345 = sphi 0, %s329
      %s351 = sphi 0, %s353
      %s354 = sphi 0, %s351
      %s355 = sphi 0, %s354
      %s371 = sphi 0, %s355
      %s377 = sphi 0, %s379
      %s380 = sphi 0, %s377
      %s381 = sphi 0, %s380
      %s397 = sphi 0, %s381
      %s401 = sphi 0, %s401
      %s403 = sphi 0, %s401
      %s404 = sphi 0, %s403
      %s418 = sphi 0, %s404
      %s422 = sphi 0, %s422
      %s424 = sphi 0, %s422
      %s425 = sphi 0, %s424
      %s439 = sphi 0, %s425
      %s443 = sphi 0, %s443
      %s445 = sphi 0, %s443
      %s446 = sphi 0, %s445
      %s460 = sphi 0, %s446
      %s468 = sphi 0, %s470
      %s471 = sphi 0, %s468
      %s472 = sphi 0, %s471
      %s488 = sphi 0, %s472
    $region4: #{tpu_custom_call.1} parent=1 // loop_header_branch
      %35 = sbr.rel (%p33) target = $region8
    $region5: #{tpu_custom_call.1} parent=1 // loop_body
      %s37 = ssub.s32 %s32, 1
      %s38 = ssub.s32 %s32, 2
      %s48 = sadd.s32 1, %s41
      %p49 = scmp.ge.s32.totalorder %s48, 1
      %s50 = scalar_select %p49, 0, %s48
      %s51 = sadd.s32 1, %s40
      %s52 = scalar_select %p49, %s51, %s40
      %p53 = scmp.ge.s32.totalorder %s52, 1
      %s54 = scalar_select %p53, 0, %s52
      %s55 = sadd.s32 1, %s39
      %s56 = scalar_select %p53, %s55, %s39
      %p57 = scmp.ge.s32.totalorder %s56, 2
      %s58 = scalar_select %p57, 0, %s56
      %s59 = ssub.s32 %s39, %s58
      %s60 = ssub.s32 %s40, %s54
      %s61 = sor.u32 %s59, %s60
      %p62 = scmp.eq.s32.totalorder %s61, 0
      %s64 = sadd.s32 %s63, 1
      %s65 = scalar_select %p62, %s63, %s64
      %p68 = pneg %p62
      %p69 = scmp.eq.s32.totalorder %s32, 1
      %p70 = por %p68, %p69
      %p71 = scmp.ne.s32.totalorder %s63, %s66
      %p72 = scmp.eq.s32.totalorder %s32, 0
      %p73 = por %p71, %p72
      %p74 = scmp.ne.s32.totalorder %s63, %s66
      %p75 = scmp.eq.s32.totalorder %s37, 1
      %p76 = por %p74, %p75
      %p77 = scmp.ne.s32.totalorder %s66, %s67
      %p78 = scmp.eq.s32.totalorder %s37, 0
      %p79 = por %p77, %p78
      %p80 = scmp.ne.s32.totalorder %s66, %s67
      %p81 = scmp.eq.s32.totalorder %s38, 1
      %p82 = por %p80, %p81
      %p84 = scmp.ne.s32.totalorder %s67, %s83
      %p85 = scmp.eq.s32.totalorder %s38, 0
      %p86 = por %p84, %p85
      %s87 = ssub.s32 %s39, %s58
      %p88 = scmp.eq.s32.totalorder %s87, 0
      %s90 = sadd.s32 %s89, 1
      %s91 = scalar_select %p88, %s89, %s90
      %p94 = pneg %p88
      %p95 = scmp.eq.s32.totalorder %s32, 1
      %p96 = por %p94, %p95
      %p97 = scmp.ne.s32.totalorder %s89, %s92
      %p98 = scmp.eq.s32.totalorder %s32, 0
      %p99 = por %p97, %p98
      %p100 = scmp.ne.s32.totalorder %s89, %s92
      %p101 = scmp.eq.s32.totalorder %s37, 1
      %p102 = por %p100, %p101
      %p103 = scmp.ne.s32.totalorder %s92, %s93
      %p104 = scmp.eq.s32.totalorder %s37, 0
      %p105 = por %p103, %p104
      %p106 = scmp.ne.s32.totalorder %s92, %s93
      %p107 = scmp.eq.s32.totalorder %s38, 1
      %p108 = por %p106, %p107
      %p110 = scmp.ne.s32.totalorder %s93, %s109
      %p111 = scmp.eq.s32.totalorder %s38, 0
      %p112 = por %p110, %p111
      %s114 = sadd.s32 %s113, 1
      %p117 = scmp.eq.s32.totalorder %s32, 1
      %p118 = scmp.ne.s32.totalorder %s113, %s115
      %p119 = scmp.eq.s32.totalorder %s32, 0
      %p120 = por %p118, %p119
      %p121 = scmp.ne.s32.totalorder %s113, %s115
      %p122 = scmp.eq.s32.totalorder %s37, 1
      %p123 = por %p121, %p122
      %p124 = scmp.ne.s32.totalorder %s115, %s116
      %p125 = scmp.eq.s32.totalorder %s37, 0
      %p126 = por %p124, %p125
      %p127 = scmp.ne.s32.totalorder %s115, %s116
      %p128 = scmp.eq.s32.totalorder %s38, 1
      %p129 = por %p127, %p128
      %p131 = scmp.ne.s32.totalorder %s116, %s130
      %p132 = scmp.eq.s32.totalorder %s38, 0
      %p133 = por %p131, %p132
      %s135 = sadd.s32 %s134, 1
      %p138 = scmp.eq.s32.totalorder %s32, 1
      %p139 = scmp.ne.s32.totalorder %s134, %s136
      %p140 = scmp.eq.s32.totalorder %s32, 0
      %p141 = por %p139, %p140
      %p142 = scmp.ne.s32.totalorder %s134, %s136
      %p143 = scmp.eq.s32.totalorder %s37, 1
      %p144 = por %p142, %p143
      %p145 = scmp.ne.s32.totalorder %s136, %s137
      %p146 = scmp.eq.s32.totalorder %s37, 0
      %p147 = por %p145, %p146
      %p148 = scmp.ne.s32.totalorder %s136, %s137
      %p149 = scmp.eq.s32.totalorder %s38, 1
      %p150 = por %p148, %p149
      %p152 = scmp.ne.s32.totalorder %s137, %s151
      %p153 = scmp.eq.s32.totalorder %s38, 0
      %p154 = por %p152, %p153
      %s156 = sadd.s32 %s155, 1
      %p159 = scmp.eq.s32.totalorder %s32, 1
      %p160 = scmp.ne.s32.totalorder %s155, %s157
      %p161 = scmp.eq.s32.totalorder %s32, 0
      %p162 = por %p160, %p161
      %p163 = scmp.ne.s32.totalorder %s155, %s157
      %p164 = scmp.eq.s32.totalorder %s37, 1
      %p165 = por %p163, %p164
      %p166 = scmp.ne.s32.totalorder %s157, %s158
      %p167 = scmp.eq.s32.totalorder %s37, 0
      %p168 = por %p166, %p167
      %p169 = scmp.ne.s32.totalorder %s157, %s158
      %p170 = scmp.eq.s32.totalorder %s38, 1
      %p171 = por %p169, %p170
      %p173 = scmp.ne.s32.totalorder %s158, %s172
      %p174 = scmp.eq.s32.totalorder %s38, 0
      %p175 = por %p173, %p174
      %s177 = sadd.s32 %s176, 1
      %p180 = scmp.eq.s32.totalorder %s32, 1
      %p181 = scmp.ne.s32.totalorder %s176, %s178
      %p182 = scmp.eq.s32.totalorder %s32, 0
      %p183 = por %p181, %p182
      %p184 = scmp.ne.s32.totalorder %s176, %s178
      %p185 = scmp.eq.s32.totalorder %s37, 1
      %p186 = por %p184, %p185
      %p187 = scmp.ne.s32.totalorder %s178, %s179
      %p188 = scmp.eq.s32.totalorder %s37, 0
      %p189 = por %p187, %p188
      %p190 = scmp.ne.s32.totalorder %s178, %s179
      %p191 = scmp.eq.s32.totalorder %s38, 1
      %p192 = por %p190, %p191
      %p194 = scmp.ne.s32.totalorder %s179, %s193
      %p195 = scmp.eq.s32.totalorder %s38, 0
      %p196 = por %p194, %p195
      %s198 = sadd.s32 %s197, 1
      %p201 = scmp.eq.s32.totalorder %s32, 1
      %p202 = scmp.ne.s32.totalorder %s197, %s199
      %p203 = scmp.eq.s32.totalorder %s32, 0
      %p204 = por %p202, %p203
      %p205 = scmp.ne.s32.totalorder %s197, %s199
      %p206 = scmp.eq.s32.totalorder %s37, 1
      %p207 = por %p205, %p206
      %p208 = scmp.ne.s32.totalorder %s199, %s200
      %p209 = scmp.eq.s32.totalorder %s37, 0
      %p210 = por %p208, %p209
      %p211 = scmp.ne.s32.totalorder %s199, %s200
      %p212 = scmp.eq.s32.totalorder %s38, 1
      %p213 = por %p211, %p212
      %p215 = scmp.ne.s32.totalorder %s200, %s214
      %p216 = scmp.eq.s32.totalorder %s38, 0
      %p217 = por %p215, %p216
      %s219 = sadd.s32 %s218, 1
      %p222 = scmp.eq.s32.totalorder %s32, 1
      %p223 = scmp.ne.s32.totalorder %s218, %s220
      %p224 = scmp.eq.s32.totalorder %s32, 0
      %p225 = por %p223, %p224
      %p226 = scmp.ne.s32.totalorder %s218, %s220
      %p227 = scmp.eq.s32.totalorder %s37, 1
      %p228 = por %p226, %p227
      %p229 = scmp.ne.s32.totalorder %s220, %s221
      %p230 = scmp.eq.s32.totalorder %s37, 0
      %p231 = por %p229, %p230
      %p232 = scmp.ne.s32.totalorder %s220, %s221
      %p233 = scmp.eq.s32.totalorder %s38, 1
      %p234 = por %p232, %p233
      %p236 = scmp.ne.s32.totalorder %s221, %s235
      %p237 = scmp.eq.s32.totalorder %s38, 0
      %p238 = por %p236, %p237
      %s240 = sadd.s32 %s239, 1
      %p243 = scmp.eq.s32.totalorder %s32, 1
      %p244 = scmp.ne.s32.totalorder %s239, %s241
      %p245 = scmp.eq.s32.totalorder %s32, 0
      %p246 = por %p244, %p245
      %p247 = scmp.ne.s32.totalorder %s239, %s241
      %p248 = scmp.eq.s32.totalorder %s37, 1
      %p249 = por %p247, %p248
      %p250 = scmp.ne.s32.totalorder %s241, %s242
      %p251 = scmp.eq.s32.totalorder %s37, 0
      %p252 = por %p250, %p251
      %p253 = scmp.ne.s32.totalorder %s241, %s242
      %p254 = scmp.eq.s32.totalorder %s38, 1
      %p255 = por %p253, %p254
      %p257 = scmp.ne.s32.totalorder %s242, %s256
      %p258 = scmp.eq.s32.totalorder %s38, 0
      %p259 = por %p257, %p258
      %s261 = sadd.s32 %s260, 1
      %p264 = scmp.eq.s32.totalorder %s32, 1
      %p265 = scmp.ne.s32.totalorder %s260, %s262
      %p266 = scmp.eq.s32.totalorder %s32, 0
      %p267 = por %p265, %p266
      %p268 = scmp.ne.s32.totalorder %s260, %s262
      %p269 = scmp.eq.s32.totalorder %s37, 1
      %p270 = por %p268, %p269
      %p271 = scmp.ne.s32.totalorder %s262, %s263
      %p272 = scmp.eq.s32.totalorder %s37, 0
      %p273 = por %p271, %p272
      %p274 = scmp.ne.s32.totalorder %s262, %s263
      %p275 = scmp.eq.s32.totalorder %s38, 1
      %p276 = por %p274, %p275
      %p278 = scmp.ne.s32.totalorder %s263, %s277
      %p279 = scmp.eq.s32.totalorder %s38, 0
      %p280 = por %p278, %p279
      %s282 = sadd.s32 %s281, 1
      %p285 = scmp.eq.s32.totalorder %s32, 1
      %p286 = scmp.ne.s32.totalorder %s281, %s283
      %p287 = scmp.eq.s32.totalorder %s32, 0
      %p288 = por %p286, %p287
      %p289 = scmp.ne.s32.totalorder %s281, %s283
      %p290 = scmp.eq.s32.totalorder %s37, 1
      %p291 = por %p289, %p290
      %p292 = scmp.ne.s32.totalorder %s283, %s284
      %p293 = scmp.eq.s32.totalorder %s37, 0
      %p294 = por %p292, %p293
      %p295 = scmp.ne.s32.totalorder %s283, %s284
      %p296 = scmp.eq.s32.totalorder %s38, 1
      %p297 = por %p295, %p296
      %p299 = scmp.ne.s32.totalorder %s284, %s298
      %p300 = scmp.eq.s32.totalorder %s38, 0
      %p301 = por %p299, %p300
      %s303 = sadd.s32 %s302, 1
      %p306 = scmp.eq.s32.totalorder %s32, 1
      %p307 = scmp.ne.s32.totalorder %s302, %s304
      %p308 = scmp.eq.s32.totalorder %s32, 0
      %p309 = por %p307, %p308
      %p310 = scmp.ne.s32.totalorder %s302, %s304
      %p311 = scmp.eq.s32.totalorder %s37, 1
      %p312 = por %p310, %p311
      %p313 = scmp.ne.s32.totalorder %s304, %s305
      %p314 = scmp.eq.s32.totalorder %s37, 0
      %p315 = por %p313, %p314
      %p316 = scmp.ne.s32.totalorder %s304, %s305
      %p317 = scmp.eq.s32.totalorder %s38, 1
      %p318 = por %p316, %p317
      %p320 = scmp.ne.s32.totalorder %s305, %s319
      %p321 = scmp.eq.s32.totalorder %s38, 0
      %p322 = por %p320, %p321
      %s323 = ssub.s32 %s41, %s50
      %p324 = scmp.eq.s32.totalorder %s323, 0
      %s326 = sadd.s32 %s325, 1
      %s327 = scalar_select %p324, %s325, %s326
      %p330 = pneg %p324
      %p331 = scmp.eq.s32.totalorder %s32, 1
      %p332 = por %p330, %p331
      %p333 = scmp.ne.s32.totalorder %s325, %s328
      %p334 = scmp.eq.s32.totalorder %s32, 0
      %p335 = por %p333, %p334
      %p336 = scmp.ne.s32.totalorder %s325, %s328
      %p337 = scmp.eq.s32.totalorder %s37, 1
      %p338 = por %p336, %p337
      %p339 = scmp.ne.s32.totalorder %s328, %s329
      %p340 = scmp.eq.s32.totalorder %s37, 0
      %p341 = por %p339, %p340
      %p342 = scmp.ne.s32.totalorder %s328, %s329
      %p343 = scmp.eq.s32.totalorder %s38, 1
      %p344 = por %p342, %p343
      %p346 = scmp.ne.s32.totalorder %s329, %s345
      %p347 = scmp.eq.s32.totalorder %s38, 0
      %p348 = por %p346, %p347
      %s349 = ssub.s32 %s41, %s50
      %p350 = scmp.eq.s32.totalorder %s349, 0
      %s352 = sadd.s32 %s351, 1
      %s353 = scalar_select %p350, %s351, %s352
      %p356 = pneg %p350
      %p357 = scmp.eq.s32.totalorder %s32, 1
      %p358 = por %p356, %p357
      %p359 = scmp.ne.s32.totalorder %s351, %s354
      %p360 = scmp.eq.s32.totalorder %s32, 0
      %p361 = por %p359, %p360
      %p362 = scmp.ne.s32.totalorder %s351, %s354
      %p363 = scmp.eq.s32.totalorder %s37, 1
      %p364 = por %p362, %p363
      %p365 = scmp.ne.s32.totalorder %s354, %s355
      %p366 = scmp.eq.s32.totalorder %s37, 0
      %p367 = por %p365, %p366
      %p368 = scmp.ne.s32.totalorder %s354, %s355
      %p369 = scmp.eq.s32.totalorder %s38, 1
      %p370 = por %p368, %p369
      %p372 = scmp.ne.s32.totalorder %s355, %s371
      %p373 = scmp.eq.s32.totalorder %s38, 0
      %p374 = por %p372, %p373
      %s375 = ssub.s32 %s41, %s50
      %p376 = scmp.eq.s32.totalorder %s375, 0
      %s378 = sadd.s32 %s377, 1
      %s379 = scalar_select %p376, %s377, %s378
      %p382 = pneg %p376
      %p383 = scmp.eq.s32.totalorder %s32, 1
      %p384 = por %p382, %p383
      %p385 = scmp.ne.s32.totalorder %s377, %s380
      %p386 = scmp.eq.s32.totalorder %s32, 0
      %p387 = por %p385, %p386
      %p388 = scmp.ne.s32.totalorder %s377, %s380
      %p389 = scmp.eq.s32.totalorder %s37, 1
      %p390 = por %p388, %p389
      %p391 = scmp.ne.s32.totalorder %s380, %s381
      %p392 = scmp.eq.s32.totalorder %s37, 0
      %p393 = por %p391, %p392
      %p394 = scmp.ne.s32.totalorder %s380, %s381
      %p395 = scmp.eq.s32.totalorder %s38, 1
      %p396 = por %p394, %p395
      %p398 = scmp.ne.s32.totalorder %s381, %s397
      %p399 = scmp.eq.s32.totalorder %s38, 0
      %p400 = por %p398, %p399
      %s402 = sadd.s32 %s401, 1
      %p405 = scmp.eq.s32.totalorder %s32, 1
      %p406 = scmp.ne.s32.totalorder %s401, %s403
      %p407 = scmp.eq.s32.totalorder %s32, 0
      %p408 = por %p406, %p407
      %p409 = scmp.ne.s32.totalorder %s401, %s403
      %p410 = scmp.eq.s32.totalorder %s37, 1
      %p411 = por %p409, %p410
      %p412 = scmp.ne.s32.totalorder %s403, %s404
      %p413 = scmp.eq.s32.totalorder %s37, 0
      %p414 = por %p412, %p413
      %p415 = scmp.ne.s32.totalorder %s403, %s404
      %p416 = scmp.eq.s32.totalorder %s38, 1
      %p417 = por %p415, %p416
      %p419 = scmp.ne.s32.totalorder %s404, %s418
      %p420 = scmp.eq.s32.totalorder %s38, 0
      %p421 = por %p419, %p420
      %s423 = sadd.s32 %s422, 1
      %p426 = scmp.eq.s32.totalorder %s32, 1
      %p427 = scmp.ne.s32.totalorder %s422, %s424
      %p428 = scmp.eq.s32.totalorder %s32, 0
      %p429 = por %p427, %p428
      %p430 = scmp.ne.s32.totalorder %s422, %s424
      %p431 = scmp.eq.s32.totalorder %s37, 1
      %p432 = por %p430, %p431
      %p433 = scmp.ne.s32.totalorder %s424, %s425
      %p434 = scmp.eq.s32.totalorder %s37, 0
      %p435 = por %p433, %p434
      %p436 = scmp.ne.s32.totalorder %s424, %s425
      %p437 = scmp.eq.s32.totalorder %s38, 1
      %p438 = por %p436, %p437
      %p440 = scmp.ne.s32.totalorder %s425, %s439
      %p441 = scmp.eq.s32.totalorder %s38, 0
      %p442 = por %p440, %p441
      %s444 = sadd.s32 %s443, 1
      %p447 = scmp.eq.s32.totalorder %s32, 1
      %p448 = scmp.ne.s32.totalorder %s443, %s445
      %p449 = scmp.eq.s32.totalorder %s32, 0
      %p450 = por %p448, %p449
      %p451 = scmp.ne.s32.totalorder %s443, %s445
      %p452 = scmp.eq.s32.totalorder %s37, 1
      %p453 = por %p451, %p452
      %p454 = scmp.ne.s32.totalorder %s445, %s446
      %p455 = scmp.eq.s32.totalorder %s37, 0
      %p456 = por %p454, %p455
      %p457 = scmp.ne.s32.totalorder %s445, %s446
      %p458 = scmp.eq.s32.totalorder %s38, 1
      %p459 = por %p457, %p458
      %p461 = scmp.ne.s32.totalorder %s446, %s460
      %p462 = scmp.eq.s32.totalorder %s38, 0
      %p463 = por %p461, %p462
      %s464 = ssub.s32 %s39, %s58
      %s465 = ssub.s32 %s40, %s54
      %s466 = sor.u32 %s464, %s465
      %p467 = scmp.eq.s32.totalorder %s466, 0
      %s469 = sadd.s32 %s468, 1
      %s470 = scalar_select %p467, %s468, %s469
      %p473 = pneg %p467
      %p474 = scmp.eq.s32.totalorder %s32, 1
      %p475 = por %p473, %p474
      %p476 = scmp.ne.s32.totalorder %s468, %s471
      %p477 = scmp.eq.s32.totalorder %s32, 0
      %p478 = por %p476, %p477
      %p479 = scmp.ne.s32.totalorder %s468, %s471
      %p480 = scmp.eq.s32.totalorder %s37, 1
      %p481 = por %p479, %p480
      %p482 = scmp.ne.s32.totalorder %s471, %s472
      %p483 = scmp.eq.s32.totalorder %s37, 0
      %p484 = por %p482, %p483
      %p485 = scmp.ne.s32.totalorder %s471, %s472
      %p486 = scmp.eq.s32.totalorder %s38, 1
      %p487 = por %p485, %p486
      %p489 = scmp.ne.s32.totalorder %s472, %s488
      %p490 = scmp.eq.s32.totalorder %s38, 0
      %p491 = por %p489, %p490
      %p492 = scmp.le.s32.totalorder 1, %s32
      %p493 = scmp.lt.s32.totalorder %s32, 3
      %p494 = pnand %p492, %p493
      %p495 = pneg %p494
      // Predicated region
      $region9: #{tpu_custom_call.1} parent=5 // pred_check
        _
      $region10: #{tpu_custom_call.1} parent=5 // pred_check_branch
        %497 = sbr.rel (%p494) target = $region12
      $region11: #{tpu_custom_call.1} parent=5 // pred_region
        %s498 = ssub.s32 %s32, 1
        // Predicated region
        $region13: #{tpu_custom_call.1} parent=11 // pred_check
          %p499 = pneg %p126
        $region14: #{tpu_custom_call.1} parent=11 // pred_check_branch
          %501 = sbr.rel (%p499) target = $region16
        $region15: #{tpu_custom_call.1} parent=11 // pred_region
          _
        $region16: #{tpu_custom_call.1} parent=11 // pred_fallthru
          _
        // Predicated region
        $region17: #{tpu_custom_call.1} parent=11 // pred_check
          %p502 = pneg %p147
        $region18: #{tpu_custom_call.1} parent=11 // pred_check_branch
          %504 = sbr.rel (%p502) target = $region20
        $region19: #{tpu_custom_call.1} parent=11 // pred_region
          _
        $region20: #{tpu_custom_call.1} parent=11 // pred_fallthru
          _
        // Predicated region
        $region21: #{tpu_custom_call.1} parent=11 // pred_check
          %p505 = pneg %p168
        $region22: #{tpu_custom_call.1} parent=11 // pred_check_branch
          %507 = sbr.rel (%p505) target = $region24
        $region23: #{tpu_custom_call.1} parent=11 // pred_region
          _
        $region24: #{tpu_custom_call.1} parent=11 // pred_fallthru
          _
        // Predicated region
        $region25: #{tpu_custom_call.1} parent=11 // pred_check
          %p508 = pneg %p189
        $region26: #{tpu_custom_call.1} parent=11 // pred_check_branch
          %510 = sbr.rel (%p508) target = $region28
        $region27: #{tpu_custom_call.1} parent=11 // pred_region
          _
        $region28: #{tpu_custom_call.1} parent=11 // pred_fallthru
          _
        // Predicated region
        $region29: #{tpu_custom_call.1} parent=11 // pred_check
          %p511 = pneg %p210
        $region30: #{tpu_custom_call.1} parent=11 // pred_check_branch
          %513 = sbr.rel (%p511) target = $region32
        $region31: #{tpu_custom_call.1} parent=11 // pred_region
          %s515 = ssub.s32 256, 256
          %516 = vsyncadd [#allocation10], %s515
          %s517 = sshll.u32 [#allocation9], 4
          %s518 = int_to_ptr.vmem [resolvable:$true] %s517
          %523 = dma.hbm_to_vmem [thread:$0]  %s6, 256, %s518, [#allocation10], 64, 64, 4
        $region32: #{tpu_custom_call.1} parent=11 // pred_fallthru
          _
        // Predicated region
        $region33: #{tpu_custom_call.1} parent=11 // pred_check
          %p524 = pneg %p231
        $region34: #{tpu_custom_call.1} parent=11 // pred_check_branch
          %526 = sbr.rel (%p524) target = $region36
        $region35: #{tpu_custom_call.1} parent=11 // pred_region
          %s528 = ssub.s32 16, 16
          %529 = vsyncadd [#allocation10], %s528
          %s531 = sshll.u32 [#allocation11], 4
          %s532 = int_to_ptr.vmem [resolvable:$true] %s531
          %534 = dma.hbm_to_vmem [thread:$0]  %s7, 16, %s532, [#allocation10]
        $region36: #{tpu_custom_call.1} parent=11 // pred_fallthru
          _
        // Predicated region
        $region37: #{tpu_custom_call.1} parent=11 // pred_check
          %p535 = pneg %p252
        $region38: #{tpu_custom_call.1} parent=11 // pred_check_branch
          %537 = sbr.rel (%p535) target = $region40
        $region39: #{tpu_custom_call.1} parent=11 // pred_region
          %s539 = ssub.s32 256, 256
          %540 = vsyncadd [#allocation13], %s539
          %s541 = sshll.u32 [#allocation12], 4
          %s542 = int_to_ptr.vmem [resolvable:$true] %s541
          %547 = dma.hbm_to_vmem [thread:$0]  %s8, 256, %s542, [#allocation13], 64, 64, 4
        $region40: #{tpu_custom_call.1} parent=11 // pred_fallthru
          _
        // Predicated region
        $region41: #{tpu_custom_call.1} parent=11 // pred_check
          %p548 = pneg %p273
        $region42: #{tpu_custom_call.1} parent=11 // pred_check_branch
          %550 = sbr.rel (%p548) target = $region44
        $region43: #{tpu_custom_call.1} parent=11 // pred_region
          %s552 = ssub.s32 16, 16
          %553 = vsyncadd [#allocation13], %s552
          %s555 = sshll.u32 [#allocation14], 4
          %s556 = int_to_ptr.vmem [resolvable:$true] %s555
          %558 = dma.hbm_to_vmem [thread:$0]  %s9, 16, %s556, [#allocation13]
        $region44: #{tpu_custom_call.1} parent=11 // pred_fallthru
          _
        // Predicated region
        $region45: #{tpu_custom_call.1} parent=11 // pred_check
          %p559 = pneg %p294
        $region46: #{tpu_custom_call.1} parent=11 // pred_check_branch
          %561 = sbr.rel (%p559) target = $region48
        $region47: #{tpu_custom_call.1} parent=11 // pred_region
          _
        $region48: #{tpu_custom_call.1} parent=11 // pred_fallthru
          _
        // Predicated region
        $region49: #{tpu_custom_call.1} parent=11 // pred_check
          %p562 = pneg %p315
        $region50: #{tpu_custom_call.1} parent=11 // pred_check_branch
          %564 = sbr.rel (%p562) target = $region52
        $region51: #{tpu_custom_call.1} parent=11 // pred_region
          _
        $region52: #{tpu_custom_call.1} parent=11 // pred_fallthru
          _
        // Predicated region
        $region53: #{tpu_custom_call.1} parent=11 // pred_check
          %p565 = pneg %p341
        $region54: #{tpu_custom_call.1} parent=11 // pred_check_branch
          %567 = sbr.rel (%p565) target = $region56
        $region55: #{tpu_custom_call.1} parent=11 // pred_region
          %p568 = scmp.lt.s32.totalorder %s44, 0
          %s569 = scalar_select %p568, %s44, 0
          %s570 = smul.addr %s569, 4
          %s571 = scalar_lea.vmem %s12, %s570
        $region56: #{tpu_custom_call.1} parent=11 // pred_fallthru
          _
        // Predicated region
        $region57: #{tpu_custom_call.1} parent=11 // pred_check
          %p572 = pneg %p367
        $region58: #{tpu_custom_call.1} parent=11 // pred_check_branch
          %574 = sbr.rel (%p572) target = $region60
        $region59: #{tpu_custom_call.1} parent=11 // pred_region
          %p575 = scmp.lt.s32.totalorder %s44, 0
          %s576 = scalar_select %p575, %s44, 0
          %s577 = scalar_lea.vmem %s13, %s576
        $region60: #{tpu_custom_call.1} parent=11 // pred_fallthru
          _
        // Predicated region
        $region61: #{tpu_custom_call.1} parent=11 // pred_check
          %p578 = pneg %p393
        $region62: #{tpu_custom_call.1} parent=11 // pred_check_branch
          %580 = sbr.rel (%p578) target = $region64
        $region63: #{tpu_custom_call.1} parent=11 // pred_region
          %s581 = smul.u32 8, %s44
          %p582 = scmp.lt.s32.totalorder %s581, 7
          %s583 = scalar_select %p582, %s581, 7
          %s584 = smul.addr %s583, 4
          %s585 = scalar_lea.vmem %s14, %s584
          %s586 = smul.u32 8, %s44
        $region64: #{tpu_custom_call.1} parent=11 // pred_fallthru
          _
        // Predicated region
        $region65: #{tpu_custom_call.1} parent=11 // pred_check
          %p587 = pneg %p414
        $region66: #{tpu_custom_call.1} parent=11 // pred_check_branch
          %589 = sbr.rel (%p587) target = $region68
        $region67: #{tpu_custom_call.1} parent=11 // pred_region
          _
        $region68: #{tpu_custom_call.1} parent=11 // pred_fallthru
          _
        // Predicated region
        $region69: #{tpu_custom_call.1} parent=11 // pred_check
          %p590 = pneg %p435
        $region70: #{tpu_custom_call.1} parent=11 // pred_check_branch
          %592 = sbr.rel (%p590) target = $region72
        $region71: #{tpu_custom_call.1} parent=11 // pred_region
          _
        $region72: #{tpu_custom_call.1} parent=11 // pred_fallthru
          _
        // Predicated region
        $region73: #{tpu_custom_call.1} parent=11 // pred_check
          %p593 = pneg %p456
        $region74: #{tpu_custom_call.1} parent=11 // pred_check_branch
          %595 = sbr.rel (%p593) target = $region76
        $region75: #{tpu_custom_call.1} parent=11 // pred_region
          _
        $region76: #{tpu_custom_call.1} parent=11 // pred_fallthru
          _
      $region12: #{tpu_custom_call.1} parent=5 // pred_fallthru
        _
      %p596 = scmp.lt.s32.totalorder %s32, 2
      // Predicated region
      $region77: #{tpu_custom_call.1} parent=5 // pred_check
        %p597 = pneg %p596
      $region78: #{tpu_custom_call.1} parent=5 // pred_check_branch
        %599 = sbr.rel (%p597) target = $region80
      $region79: #{tpu_custom_call.1} parent=5 // pred_region
        // Predicated region
        $region81: #{tpu_custom_call.1} parent=79 // pred_check
          %p600 = pneg %p73
        $region82: #{tpu_custom_call.1} parent=79 // pred_check_branch
          %602 = sbr.rel (%p600) target = $region84
        $region83: #{tpu_custom_call.1} parent=79 // pred_region
          %p603 = scmp.lt.s32.totalorder %s39, 1
          %s604 = scalar_select %p603, %s39, 1
          %p605 = scmp.lt.s32.totalorder %s40, 0
          %s606 = scalar_select %p605, %s40, 0
          %s607 = sadd.s32 %s606, %s604
          %s608 = smul.addr %s607, 8
          %s609 = scalar_lea.vmem %s0, %s608
        $region84: #{tpu_custom_call.1} parent=79 // pred_fallthru
          _
        // Predicated region
        $region85: #{tpu_custom_call.1} parent=79 // pred_check
          %p610 = pneg %p99
        $region86: #{tpu_custom_call.1} parent=79 // pred_check_branch
          %612 = sbr.rel (%p610) target = $region88
        $region87: #{tpu_custom_call.1} parent=79 // pred_region
          %s613 = sand.u32 %s89, 1
          %s614 = scalar_lea.sflag [#allocation7], %s613
          %s615 = sand.u32 %s89, 1
          %s616 = smul.addr %s615, 4
          %s617 = scalar_lea.vmem [#allocation6], %s616
          %s619 = ssub.s32 64, 64
          %620 = vsyncadd %s614, %s619
          %s621 = smul.addr %s39, 64
          %s622 = scalar_lea.hbm %s1, %s621
          %s624 = sshll.u32 %s617, 4
          %s625 = int_to_ptr.vmem [resolvable:$true] %s624
          %627 = dma.hbm_to_vmem [thread:$0]  %s622, 64, %s625, %s614
        $region88: #{tpu_custom_call.1} parent=79 // pred_fallthru
          _
      $region80: #{tpu_custom_call.1} parent=5 // pred_fallthru
        _
      %p628 = scmp.le.s32.totalorder 1, %s32
      %p629 = scmp.lt.s32.totalorder %s32, 3
      %p630 = pnand %p628, %p629
      %p631 = pneg %p630
      // Predicated region
      $region89: #{tpu_custom_call.1} parent=5 // pred_check
        _
      $region90: #{tpu_custom_call.1} parent=5 // pred_check_branch
        %633 = sbr.rel (%p630) target = $region92
      $region91: #{tpu_custom_call.1} parent=5 // pred_region
        %s634 = ssub.s32 %s32, 1
        %s635 = sand.u32 %s92, 1
        %s636 = scalar_lea.sflag [#allocation7], %s635
        %s637 = sand.u32 %s92, 1
        %s638 = smul.addr %s637, 4
        %s639 = scalar_lea.vmem [#allocation6], %s638
        // Predicated region
        $region93: #{tpu_custom_call.1} parent=91 // pred_check
          %p640 = pneg %p105
        $region94: #{tpu_custom_call.1} parent=91 // pred_check_branch
          %642 = sbr.rel (%p640) target = $region96
        $region95: #{tpu_custom_call.1} parent=91 // pred_region
          %643 = dma.done %s636, 64
        $region96: #{tpu_custom_call.1} parent=91 // pred_fallthru
          _
        // Predicated region
        $region97: #{tpu_custom_call.1} parent=91 // pred_check
          %p644 = pneg %p210
        $region98: #{tpu_custom_call.1} parent=91 // pred_check_branch
          %646 = sbr.rel (%p644) target = $region100
        $region99: #{tpu_custom_call.1} parent=91 // pred_region
          %647 = dma.done [#allocation10], 256
        $region100: #{tpu_custom_call.1} parent=91 // pred_fallthru
          _
        // Predicated region
        $region101: #{tpu_custom_call.1} parent=91 // pred_check
          %p648 = pneg %p231
        $region102: #{tpu_custom_call.1} parent=91 // pred_check_branch
          %650 = sbr.rel (%p648) target = $region104
        $region103: #{tpu_custom_call.1} parent=91 // pred_region
          %651 = dma.done [#allocation10], 16
        $region104: #{tpu_custom_call.1} parent=91 // pred_fallthru
          _
        // Predicated region
        $region105: #{tpu_custom_call.1} parent=91 // pred_check
          %p652 = pneg %p252
        $region106: #{tpu_custom_call.1} parent=91 // pred_check_branch
          %654 = sbr.rel (%p652) target = $region108
        $region107: #{tpu_custom_call.1} parent=91 // pred_region
          %655 = dma.done [#allocation13], 256
        $region108: #{tpu_custom_call.1} parent=91 // pred_fallthru
          _
        // Predicated region
        $region109: #{tpu_custom_call.1} parent=91 // pred_check
          %p656 = pneg %p273
        $region110: #{tpu_custom_call.1} parent=91 // pred_check_branch
          %658 = sbr.rel (%p656) target = $region112
        $region111: #{tpu_custom_call.1} parent=91 // pred_region
          %659 = dma.done [#allocation13], 16
        $region112: #{tpu_custom_call.1} parent=91 // pred_fallthru
          _
        %p660 = scmp.lt.s32.totalorder %s42, 1
        %s661 = scalar_select %p660, %s42, 1
        %p662 = scmp.lt.s32.totalorder %s43, 0
        %s663 = scalar_select %p662, %s43, 0
        %s664 = sadd.s32 %s663, %s661
        %s665 = smul.addr %s664, 8
        %s666 = scalar_lea.vmem %s0, %s665
        %p667 = pneg %p79
        %p668 = pneg %p76
        %s669 = sand.u32 %s92, 1
        %s670 = scalar_lea.sflag [#allocation7], %s669
        %s671 = sand.u32 %s92, 1
        %s672 = smul.addr %s671, 4
        %s673 = scalar_lea.vmem [#allocation6], %s672
        %p674 = pneg %p105
        %p675 = pneg %p102
        %p676 = pneg %p126
        %p677 = pneg %p123
        %p678 = pneg %p147
        %p679 = pneg %p144
        %p680 = pneg %p168
        %p681 = pneg %p165
        %p682 = pneg %p189
        %p683 = pneg %p186
        %p684 = pneg %p210
        %p685 = pneg %p207
        %p686 = pneg %p231
        %p687 = pneg %p228
        %p688 = pneg %p252
        %p689 = pneg %p249
        %p690 = pneg %p273
        %p691 = pneg %p270
        %p692 = pneg %p294
        %p693 = pneg %p291
        %p694 = pneg %p315
        %p695 = pneg %p312
        %p696 = scmp.lt.s32.totalorder %s44, 0
        %s697 = scalar_select %p696, %s44, 0
        %s698 = smul.addr %s697, 4
        %s699 = scalar_lea.vmem %s12, %s698
        %p700 = pneg %p341
        %p701 = pneg %p338
        %p702 = scmp.lt.s32.totalorder %s44, 0
        %s703 = scalar_select %p702, %s44, 0
        %s704 = scalar_lea.vmem %s13, %s703
        %p705 = pneg %p367
        %p706 = pneg %p364
        %s707 = smul.u32 8, %s44
        %p708 = scmp.lt.s32.totalorder %s707, 7
        %s709 = scalar_select %p708, %s707, 7
        %s710 = smul.addr %s709, 4
        %s711 = scalar_lea.vmem %s14, %s710
        %p712 = pneg %p393
        %p713 = pneg %p390
        %p714 = pneg %p414
        %p715 = pneg %p411
        %p716 = pneg %p435
        %p717 = pneg %p432
        %p718 = pneg %p456
        %p719 = pneg %p453
        %p720 = pneg %p484
        %p721 = pneg %p481
        %s722 = sand.u32 %s471, 1
        %s723 = scalar_lea.sflag [#allocation8], %s722
        %s724 = sand.u32 %s471, 1
        %s725 = smul.addr %s724, 8
        %s726 = scalar_lea.vmem [#allocation15], %s725
        %p727 = scmp.lt.s32.totalorder %s42, 1
        %s728 = scalar_select %p727, %s42, 1
        %p729 = scmp.lt.s32.totalorder %s43, 0
        %s730 = scalar_select %p729, %s43, 0
        %s731 = sadd.s32 %s730, %s728
        %s732 = smul.addr %s731, 8
        %s733 = scalar_lea.vmem %s0, %s732
        %p734 = scmp.lt.s32.totalorder %s44, 0
        %s735 = scalar_select %p734, %s44, 0
        %s736 = smul.addr %s735, 4
        %s737 = scalar_lea.vmem %s12, %s736
        %p738 = scmp.lt.s32.totalorder %s44, 0
        %s739 = scalar_select %p738, %s44, 0
        %s740 = scalar_lea.vmem %s13, %s739
        %s741 = smul.u32 8, %s44
        %p742 = scmp.lt.s32.totalorder %s741, 7
        %s743 = scalar_select %p742, %s741, 7
        %s744 = smul.addr %s743, 4
        %s745 = scalar_lea.vmem %s14, %s744
        %s746 = smul.u32 8, %s44
        %p748 = scmp.eq.s32.totalorder %s43, 0
        %p749 = scmp.eq.s32.totalorder %s44, 0
        %p750 = pnand %p748, %p749
        %p751 = pneg %p750
        // Predicated region
        $region113: #{tpu_custom_call.1} parent=91 // pred_check
          _
        $region114: #{tpu_custom_call.1} parent=91 // pred_check_branch
          %753 = sbr.rel (%p750) target = $region116
        $region115: #{tpu_custom_call.1} parent=91 // pred_region
          %v754 = vld [vmem:[%s639] sm:$0xf]
          %v755 = vld [vmem:[%s4] sm:$0xf]
          %v756 = vld [vmem:[%s4 + $0x4] sm:$0xf]
          %v757 = vld [vmem:[%s4 + $0x8] sm:$0xf]
          %v758 = vld [vmem:[%s4 + $0xc] sm:$0xf]
          %v759 = vld [vmem:[%s5] sm:$0x1]
          %v761 = vlaneseq
          %v762 = vshrl.u32 %v761, 7
          %v763 = vsub.s32 0, %v762
          %v764 = vrot.slane %v759, %v763
          %v770 = vunpack.c.l.b16 %v755
          %v771 = vunpack.c.l.b16 %v756
          %v772 = vunpack.c.l.b16 %v757
          %v773 = vunpack.c.l.b16 %v758
          %v774 = vpack.c.b16 %v771, %v770
          %v775 = vpack.c.b16 %v773, %v772
          %vm778 = vcmask 261120
          %v780 = vsel %vm778, %v754, 0
          %782 = vmatprep.subr.bf16.mxu0 0
          %783 = vmatpush1.bf16.msra.mxu0 %v774
          %784 = vmatprep.subr.bf16.mxu0 0
          %785 = vmatpush1.bf16.msra.mxu0 %v775
          %786 = vmatprep.subr.bf16.mxu0 0
          %787 = vmatpush1.bf16.msra.mxu0 0
          %788 = vmatprep.subr.bf16.mxu0 0
          %789 = vmatpush1.bf16.msra.mxu0 0
          %790 = vmatprep.subr.bf16.mxu0 0
          %791 = vmatpush1.bf16.msra.mxu0 0
          %792 = vmatprep.subr.bf16.mxu0 0
          %793 = vmatpush1.bf16.msra.mxu0 0
          %794 = vmatprep.subr.bf16.mxu0 0
          %795 = vmatpush1.bf16.msra.mxu0 0
          %796 = vmatprep.subr.bf16.mxu0 0
          %797 = vmatpush1.bf16.msra.mxu0 0
          %798 = vmatprep.subr.bf16.mxu0 0
          %799 = vmatpush1.bf16.msra.mxu0 0
          %800 = vmatprep.subr.bf16.mxu0 0
          %801 = vmatpush1.bf16.msra.mxu0 0
          %802 = vmatprep.subr.bf16.mxu0 0
          %803 = vmatpush1.bf16.msra.mxu0 0
          %804 = vmatprep.subr.bf16.mxu0 0
          %805 = vmatpush1.bf16.msra.mxu0 0
          %806 = vmatprep.subr.bf16.mxu0 0
          %807 = vmatpush1.bf16.msra.mxu0 0
          %808 = vmatprep.subr.bf16.mxu0 0
          %809 = vmatpush1.bf16.msra.mxu0 0
          %810 = vmatprep.subr.bf16.mxu0 0
          %811 = vmatpush1.bf16.msra.mxu0 0
          %812 = vmatprep.subr.bf16.mxu0 0
          %813 = vmatpush1.bf16.msra.mxu0 0
          %814 = vmatprep.mubr.bf16.mxu0 0
          %815 = vmatmul.mubr.bf16.gmra.mrb[0].mxu0 %v780
          %v816 = vpop.f32.mrb[0].mxu0
          %v817 = vadd.f32 %v764, %v816
          %v818 = vpop.f32.mrb[0].mxu0
          %v819 = vpop.f32.mrb[0].mxu0
          %v820 = vpop.f32.mrb[0].mxu0
          %821 = vdwg.mxu0
          %v822 = vld [vmem:[#allocation9] sm:$0xf]
          %v823 = vld [vmem:[#allocation9 + $0x4] sm:$0xf]
          %v824 = vld [vmem:[#allocation9 + $0x8] sm:$0xf]
          %v825 = vld [vmem:[#allocation9 + $0xc] sm:$0xf]
          %v826 = vld [vmem:[#allocation11] sm:$0x1]
          %v828 = vlaneseq
          %v829 = vshrl.u32 %v828, 7
          %v830 = vsub.s32 0, %v829
          %v831 = vrot.slane %v826, %v830
          %v837 = vunpack.c.l.b16 %v822
          %v838 = vunpack.c.l.b16 %v823
          %v839 = vunpack.c.l.b16 %v824
          %v840 = vunpack.c.l.b16 %v825
          %v841 = vpack.c.b16 %v838, %v837
          %v842 = vpack.c.b16 %v840, %v839
          %845 = vmatprep.subr.bf16.mxu0 0
          %846 = vmatpush1.bf16.msra.mxu0 %v841
          %847 = vmatprep.subr.bf16.mxu0 0
          %848 = vmatpush1.bf16.msra.mxu0 %v842
          %849 = vmatprep.subr.bf16.mxu0 0
          %850 = vmatpush1.bf16.msra.mxu0 0
          %851 = vmatprep.subr.bf16.mxu0 0
          %852 = vmatpush1.bf16.msra.mxu0 0
          %853 = vmatprep.subr.bf16.mxu0 0
          %854 = vmatpush1.bf16.msra.mxu0 0
          %855 = vmatprep.subr.bf16.mxu0 0
          %856 = vmatpush1.bf16.msra.mxu0 0
          %857 = vmatprep.subr.bf16.mxu0 0
          %858 = vmatpush1.bf16.msra.mxu0 0
          %859 = vmatprep.subr.bf16.mxu0 0
          %860 = vmatpush1.bf16.msra.mxu0 0
          %861 = vmatprep.subr.bf16.mxu0 0
          %862 = vmatpush1.bf16.msra.mxu0 0
          %863 = vmatprep.subr.bf16.mxu0 0
          %864 = vmatpush1.bf16.msra.mxu0 0
          %865 = vmatprep.subr.bf16.mxu0 0
          %866 = vmatpush1.bf16.msra.mxu0 0
          %867 = vmatprep.subr.bf16.mxu0 0
          %868 = vmatpush1.bf16.msra.mxu0 0
          %869 = vmatprep.subr.bf16.mxu0 0
          %870 = vmatpush1.bf16.msra.mxu0 0
          %871 = vmatprep.subr.bf16.mxu0 0
          %872 = vmatpush1.bf16.msra.mxu0 0
          %873 = vmatprep.subr.bf16.mxu0 0
          %874 = vmatpush1.bf16.msra.mxu0 0
          %875 = vmatprep.subr.bf16.mxu0 0
          %876 = vmatpush1.bf16.msra.mxu0 0
          %877 = vmatprep.mubr.bf16.mxu0 0
          %878 = vmatmul.mubr.bf16.gmra.mrb[0].mxu0 %v780
          %v879 = vpop.f32.mrb[0].mxu0
          %v880 = vadd.f32 %v831, %v879
          %v881 = vpop.f32.mrb[0].mxu0
          %v882 = vpop.f32.mrb[0].mxu0
          %v883 = vpop.f32.mrb[0].mxu0
          %884 = vdwg.mxu0
          %v885 = vpack.c.bf16 %v817, %v817
          %vm886 = vcmask 257024
          %887 = vst.msk [vmem:[#allocation2] sm:$0xf] %vm886, %v885
          %v888 = vpack.c.bf16 %v880, %v880
          %889 = vst.msk [vmem:[#allocation3] sm:$0xf] %vm886, %v888
        $region116: #{tpu_custom_call.1} parent=91 // pred_fallthru
          _
        // Predicated region
        $region117: #{tpu_custom_call.1} parent=91 // pred_check
          %p890 = pneg %p749
        $region118: #{tpu_custom_call.1} parent=91 // pred_check_branch
          %892 = sbr.rel (%p890) target = $region120
        $region119: #{tpu_custom_call.1} parent=91 // pred_region
          %v893 = vld [vmem:[%s733] sm:$0xff]
          %v894 = vpack.c.bf16 %v893, %v893
          %v895 = vld [vmem:[%s2] sm:$0xf]
          %v896 = vld [vmem:[%s2 + $0x4] sm:$0xf]
          %v897 = vld [vmem:[%s2 + $0x8] sm:$0xf]
          %v898 = vld [vmem:[%s2 + $0xc] sm:$0xf]
          %v899 = vld [vmem:[%s3] sm:$0x1]
          %v901 = vlaneseq
          %v902 = vshrl.u32 %v901, 7
          %v903 = vsub.s32 0, %v902
          %v904 = vrot.slane %v899, %v903
          %v910 = vunpack.c.l.b16 %v895
          %v911 = vunpack.c.l.b16 %v896
          %v912 = vunpack.c.l.b16 %v897
          %v913 = vunpack.c.l.b16 %v898
          %v914 = vpack.c.b16 %v911, %v910
          %v915 = vpack.c.b16 %v913, %v912
          %vm918 = vcmask 261120
          %v920 = vsel %vm918, %v894, 0
          %922 = vmatprep.subr.bf16.mxu0 0
          %923 = vmatpush1.bf16.msra.mxu0 %v914
          %924 = vmatprep.subr.bf16.mxu0 0
          %925 = vmatpush1.bf16.msra.mxu0 %v915
          %926 = vmatprep.subr.bf16.mxu0 0
          %927 = vmatpush1.bf16.msra.mxu0 0
          %928 = vmatprep.subr.bf16.mxu0 0
          %929 = vmatpush1.bf16.msra.mxu0 0
          %930 = vmatprep.subr.bf16.mxu0 0
          %931 = vmatpush1.bf16.msra.mxu0 0
          %932 = vmatprep.subr.bf16.mxu0 0
          %933 = vmatpush1.bf16.msra.mxu0 0
          %934 = vmatprep.subr.bf16.mxu0 0
          %935 = vmatpush1.bf16.msra.mxu0 0
          %936 = vmatprep.subr.bf16.mxu0 0
          %937 = vmatpush1.bf16.msra.mxu0 0
          %938 = vmatprep.subr.bf16.mxu0 0
          %939 = vmatpush1.bf16.msra.mxu0 0
          %940 = vmatprep.subr.bf16.mxu0 0
          %941 = vmatpush1.bf16.msra.mxu0 0
          %942 = vmatprep.subr.bf16.mxu0 0
          %943 = vmatpush1.bf16.msra.mxu0 0
          %944 = vmatprep.subr.bf16.mxu0 0
          %945 = vmatpush1.bf16.msra.mxu0 0
          %946 = vmatprep.subr.bf16.mxu0 0
          %947 = vmatpush1.bf16.msra.mxu0 0
          %948 = vmatprep.subr.bf16.mxu0 0
          %949 = vmatpush1.bf16.msra.mxu0 0
          %950 = vmatprep.subr.bf16.mxu0 0
          %951 = vmatpush1.bf16.msra.mxu0 0
          %952 = vmatprep.subr.bf16.mxu0 0
          %953 = vmatpush1.bf16.msra.mxu0 0
          %954 = vmatprep.mubr.bf16.mxu0 0
          %955 = vmatmul.mubr.bf16.gmra.mrb[0].mxu0 %v920
          %v956 = vpop.f32.mrb[0].mxu0
          %v957 = vadd.f32 %v904, %v956
          %v958 = vpop.f32.mrb[0].mxu0
          %v959 = vpop.f32.mrb[0].mxu0
          %v960 = vpop.f32.mrb[0].mxu0
          %961 = vdwg.mxu0
          %v962 = vmul.f32 %v957, 0.35355338
          %v963 = vpack.c.bf16 %v962, %v962
          %v964 = vld [vmem:[#allocation2] sm:$0xf]
          %v965 = vld [vmem:[#allocation3] sm:$0xf]
          %vm966 = vcmask 64512
          %v968 = vsel %vm966, %v963, 0
          %v971 = vsel %vm966, %v964, 0
          %973 = vmatprep.subr.bf16.mxu0 0
          %974 = vmatpush1.bf16.xpose.msra.mxu0 %v971
          %975 = vmatprep.subr.bf16.mxu0 0
          %976 = vmatpush1.bf16.xpose.msra.mxu0 0
          %977 = vmatprep.subr.bf16.mxu0 0
          %978 = vmatpush1.bf16.xpose.msra.mxu0 0
          %979 = vmatprep.subr.bf16.mxu0 0
          %980 = vmatpush1.bf16.xpose.msra.mxu0 0
          %981 = vmatprep.subr.bf16.mxu0 0
          %982 = vmatpush1.bf16.xpose.msra.mxu0 0
          %983 = vmatprep.subr.bf16.mxu0 0
          %984 = vmatpush1.bf16.xpose.msra.mxu0 0
          %985 = vmatprep.subr.bf16.mxu0 0
          %986 = vmatpush1.bf16.xpose.msra.mxu0 0
          %987 = vmatprep.subr.bf16.mxu0 0
          %988 = vmatpush1.bf16.xpose.msra.mxu0 0
          %989 = vmatprep.subr.bf16.mxu0 0
          %990 = vmatpush1.bf16.xpose.msra.mxu0 0
          %991 = vmatprep.subr.bf16.mxu0 0
          %992 = vmatpush1.bf16.xpose.msra.mxu0 0
          %993 = vmatprep.subr.bf16.mxu0 0
          %994 = vmatpush1.bf16.xpose.msra.mxu0 0
          %995 = vmatprep.subr.bf16.mxu0 0
          %996 = vmatpush1.bf16.xpose.msra.mxu0 0
          %997 = vmatprep.subr.bf16.mxu0 0
          %998 = vmatpush1.bf16.xpose.msra.mxu0 0
          %999 = vmatprep.subr.bf16.mxu0 0
          %1000 = vmatpush1.bf16.xpose.msra.mxu0 0
          %1001 = vmatprep.subr.bf16.mxu0 0
          %1002 = vmatpush1.bf16.xpose.msra.mxu0 0
          %1003 = vmatprep.subr.bf16.mxu0 0
          %1004 = vmatpush1.bf16.xpose.msra.mxu0 0
          %1005 = vmatprep.mubr.bf16.mxu0 0
          %1006 = vmatmul.mubr.bf16.gmra.mrb[0].mxu0 %v968
          %v1007 = vpop.f32.mrb[0].mxu0
          %v1008 = vadd.f32 0.0, %v1007
          %v1009 = vpop.f32.mrb[0].mxu0
          %v1010 = vpop.f32.mrb[0].mxu0
          %v1011 = vpop.f32.mrb[0].mxu0
          %1012 = vdwg.mxu0
          %v1013 = vsel %vm966, %v1008, -inf
          %1014 = vmax.xlane.f32.xlu0 %v1013
          %v1015 = vpop.xlane.xlu0 %1014
          %v1016 = vsub.f32 %v1008, %v1015
          %v1017 = vmul.f32 %v1016, 1.442695
          %v1018 = vpow.pop %v1017
          %v1019 = vsel %vm966, %v1018, 0.0
          %1020 = vadd.xlane.f32.xlu0 %v1019
          %v1021 = vpop.xlane.xlu0 %1020
          %v1022 = vpack.c.bf16 %v1018, %v1018
          %v1024 = vsel %vm966, %v1022, 0
          %vm1026 = vcmask 1043456
          %v1028 = vsel %vm1026, %v965, 0
          %1030 = vmatprep.subr.bf16.mxu0 0
          %1031 = vmatpush1.bf16.msra.mxu0 %v1028
          %1032 = vmatprep.subr.bf16.mxu0 0
          %1033 = vmatpush1.bf16.msra.mxu0 0
          %1034 = vmatprep.subr.bf16.mxu0 0
          %1035 = vmatpush1.bf16.msra.mxu0 0
          %1036 = vmatprep.subr.bf16.mxu0 0
          %1037 = vmatpush1.bf16.msra.mxu0 0
          %1038 = vmatprep.subr.bf16.mxu0 0
          %1039 = vmatpush1.bf16.msra.mxu0 0
          %1040 = vmatprep.subr.bf16.mxu0 0
          %1041 = vmatpush1.bf16.msra.mxu0 0
          %1042 = vmatprep.subr.bf16.mxu0 0
          %1043 = vmatpush1.bf16.msra.mxu0 0
          %1044 = vmatprep.subr.bf16.mxu0 0
          %1045 = vmatpush1.bf16.msra.mxu0 0
          %1046 = vmatprep.subr.bf16.mxu0 0
          %1047 = vmatpush1.bf16.msra.mxu0 0
          %1048 = vmatprep.subr.bf16.mxu0 0
          %1049 = vmatpush1.bf16.msra.mxu0 0
          %1050 = vmatprep.subr.bf16.mxu0 0
          %1051 = vmatpush1.bf16.msra.mxu0 0
          %1052 = vmatprep.subr.bf16.mxu0 0
          %1053 = vmatpush1.bf16.msra.mxu0 0
          %1054 = vmatprep.subr.bf16.mxu0 0
          %1055 = vmatpush1.bf16.msra.mxu0 0
          %1056 = vmatprep.subr.bf16.mxu0 0
          %1057 = vmatpush1.bf16.msra.mxu0 0
          %1058 = vmatprep.subr.bf16.mxu0 0
          %1059 = vmatpush1.bf16.msra.mxu0 0
          %1060 = vmatprep.subr.bf16.mxu0 0
          %1061 = vmatpush1.bf16.msra.mxu0 0
          %1062 = vmatprep.mubr.bf16.mxu0 0
          %1063 = vmatmul.mubr.bf16.gmra.mrb[0].mxu0 %v1024
          %v1064 = vpop.f32.mrb[0].mxu0
          %v1065 = vadd.f32 0.0, %v1064
          %v1066 = vpop.f32.mrb[0].mxu0
          %v1067 = vpop.f32.mrb[0].mxu0
          %v1068 = vpop.f32.mrb[0].mxu0
          %1069 = vdwg.mxu0
          %v1070 = vrcp.pop %v1021
          %v1071 = vmul.f32 %v1065, %v1070
          %1073 = vrot.lane.b32.xlu0 %v963, 120
          %v1074 = vpop.permute.xlu0 %1073
          %v1076 = vunpack.c.l.b16 %v964
          %v1077 = vpack.c.b16 %v1076, %v1076
          %1078 = vrot.lane.b32.xlu0 %v1077, 120
          %v1079 = vpop.permute.xlu0 %1078
          %v1081 = vsel %vm966, %v1074, 0
          %v1084 = vsel %vm966, %v1079, 0
          %1086 = vmatprep.subr.bf16.mxu0 0
          %1087 = vmatpush1.bf16.xpose.msra.mxu0 %v1084
          %1088 = vmatprep.subr.bf16.mxu0 0
          %1089 = vmatpush1.bf16.xpose.msra.mxu0 0
          %1090 = vmatprep.subr.bf16.mxu0 0
          %1091 = vmatpush1.bf16.xpose.msra.mxu0 0
          %1092 = vmatprep.subr.bf16.mxu0 0
          %1093 = vmatpush1.bf16.xpose.msra.mxu0 0
          %1094 = vmatprep.subr.bf16.mxu0 0
          %1095 = vmatpush1.bf16.xpose.msra.mxu0 0
          %1096 = vmatprep.subr.bf16.mxu0 0
          %1097 = vmatpush1.bf16.xpose.msra.mxu0 0
          %1098 = vmatprep.subr.bf16.mxu0 0
          %1099 = vmatpush1.bf16.xpose.msra.mxu0 0
          %1100 = vmatprep.subr.bf16.mxu0 0
          %1101 = vmatpush1.bf16.xpose.msra.mxu0 0
          %1102 = vmatprep.subr.bf16.mxu0 0
          %1103 = vmatpush1.bf16.xpose.msra.mxu0 0
          %1104 = vmatprep.subr.bf16.mxu0 0
          %1105 = vmatpush1.bf16.xpose.msra.mxu0 0
          %1106 = vmatprep.subr.bf16.mxu0 0
          %1107 = vmatpush1.bf16.xpose.msra.mxu0 0
          %1108 = vmatprep.subr.bf16.mxu0 0
          %1109 = vmatpush1.bf16.xpose.msra.mxu0 0
          %1110 = vmatprep.subr.bf16.mxu0 0
          %1111 = vmatpush1.bf16.xpose.msra.mxu0 0
          %1112 = vmatprep.subr.bf16.mxu0 0
          %1113 = vmatpush1.bf16.xpose.msra.mxu0 0
          %1114 = vmatprep.subr.bf16.mxu0 0
          %1115 = vmatpush1.bf16.xpose.msra.mxu0 0
          %1116 = vmatprep.subr.bf16.mxu0 0
          %1117 = vmatpush1.bf16.xpose.msra.mxu0 0
          %1118 = vmatprep.mubr.bf16.mxu0 0
          %1119 = vmatmul.mubr.bf16.gmra.mrb[0].mxu0 %v1081
          %v1120 = vpop.f32.mrb[0].mxu0
          %v1121 = vadd.f32 0.0, %v1120
          %v1122 = vpop.f32.mrb[0].mxu0
          %v1123 = vpop.f32.mrb[0].mxu0
          %v1124 = vpop.f32.mrb[0].mxu0
          %1125 = vdwg.mxu0
          %v1126 = vsel %vm966, %v1121, -inf
          %1127 = vmax.xlane.f32.xlu0 %v1126
          %v1128 = vpop.xlane.xlu0 %1127
          %v1129 = vsub.f32 %v1121, %v1128
          %v1130 = vmul.f32 %v1129, 1.442695
          %v1131 = vpow.pop %v1130
          %v1132 = vsel %vm966, %v1131, 0.0
          %1133 = vadd.xlane.f32.xlu0 %v1132
          %v1134 = vpop.xlane.xlu0 %1133
          %v1135 = vpack.c.bf16 %v1131, %v1131
          %v1137 = vunpack.c.l.b16 %v965
          %v1138 = vpack.c.b16 %v1137, %v1137
          %1139 = vrot.lane.b32.xlu0 %v1138, 120
          %v1140 = vpop.permute.xlu0 %1139
          %v1142 = vsel %vm966, %v1135, 0
          %v1145 = vsel %vm1026, %v1140, 0
          %1147 = vmatprep.subr.bf16.mxu0 0
          %1148 = vmatpush1.bf16.msra.mxu0 %v1145
          %1149 = vmatprep.subr.bf16.mxu0 0
          %1150 = vmatpush1.bf16.msra.mxu0 0
          %1151 = vmatprep.subr.bf16.mxu0 0
          %1152 = vmatpush1.bf16.msra.mxu0 0
          %1153 = vmatprep.subr.bf16.mxu0 0
          %1154 = vmatpush1.bf16.msra.mxu0 0
          %1155 = vmatprep.subr.bf16.mxu0 0
          %1156 = vmatpush1.bf16.msra.mxu0 0
          %1157 = vmatprep.subr.bf16.mxu0 0
          %1158 = vmatpush1.bf16.msra.mxu0 0
          %1159 = vmatprep.subr.bf16.mxu0 0
          %1160 = vmatpush1.bf16.msra.mxu0 0
          %1161 = vmatprep.subr.bf16.mxu0 0
          %1162 = vmatpush1.bf16.msra.mxu0 0
          %1163 = vmatprep.subr.bf16.mxu0 0
          %1164 = vmatpush1.bf16.msra.mxu0 0
          %1165 = vmatprep.subr.bf16.mxu0 0
          %1166 = vmatpush1.bf16.msra.mxu0 0
          %1167 = vmatprep.subr.bf16.mxu0 0
          %1168 = vmatpush1.bf16.msra.mxu0 0
          %1169 = vmatprep.subr.bf16.mxu0 0
          %1170 = vmatpush1.bf16.msra.mxu0 0
          %1171 = vmatprep.subr.bf16.mxu0 0
          %1172 = vmatpush1.bf16.msra.mxu0 0
          %1173 = vmatprep.subr.bf16.mxu0 0
          %1174 = vmatpush1.bf16.msra.mxu0 0
          %1175 = vmatprep.subr.bf16.mxu0 0
          %1176 = vmatpush1.bf16.msra.mxu0 0
          %1177 = vmatprep.subr.bf16.mxu0 0
          %1178 = vmatpush1.bf16.msra.mxu0 0
          %1179 = vmatprep.mubr.bf16.mxu0 0
          %1180 = vmatmul.mubr.bf16.gmra.mrb[0].mxu0 %v1142
          %v1181 = vpop.f32.mrb[0].mxu0
          %v1182 = vadd.f32 0.0, %v1181
          %v1183 = vpop.f32.mrb[0].mxu0
          %v1184 = vpop.f32.mrb[0].mxu0
          %v1185 = vpop.f32.mrb[0].mxu0
          %1186 = vdwg.mxu0
          %v1187 = vrcp.pop %v1134
          %v1188 = vmul.f32 %v1182, %v1187
          %1189 = vrot.lane.b32.xlu0 %v963, 112
          %v1190 = vpop.permute.xlu0 %1189
          %1191 = vrot.lane.b32.xlu0 %v1077, 112
          %v1192 = vpop.permute.xlu0 %1191
          %v1194 = vsel %vm966, %v1190, 0
          %v1197 = vsel %vm966, %v1192, 0
          %1199 = vmatprep.subr.bf16.mxu0 0
          %1200 = vmatpush1.bf16.xpose.msra.mxu0 %v1197
          %1201 = vmatprep.subr.bf16.mxu0 0
          %1202 = vmatpush1.bf16.xpose.msra.mxu0 0
          %1203 = vmatprep.subr.bf16.mxu0 0
          %1204 = vmatpush1.bf16.xpose.msra.mxu0 0
          %1205 = vmatprep.subr.bf16.mxu0 0
          %1206 = vmatpush1.bf16.xpose.msra.mxu0 0
          %1207 = vmatprep.subr.bf16.mxu0 0
          %1208 = vmatpush1.bf16.xpose.msra.mxu0 0
          %1209 = vmatprep.subr.bf16.mxu0 0
          %1210 = vmatpush1.bf16.xpose.msra.mxu0 0
          %1211 = vmatprep.subr.bf16.mxu0 0
          %1212 = vmatpush1.bf16.xpose.msra.mxu0 0
          %1213 = vmatprep.subr.bf16.mxu0 0
          %1214 = vmatpush1.bf16.xpose.msra.mxu0 0
          %1215 = vmatprep.subr.bf16.mxu0 0
          %1216 = vmatpush1.bf16.xpose.msra.mxu0 0
          %1217 = vmatprep.subr.bf16.mxu0 0
          %1218 = vmatpush1.bf16.xpose.msra.mxu0 0
          %1219 = vmatprep.subr.bf16.mxu0 0
          %1220 = vmatpush1.bf16.xpose.msra.mxu0 0
          %1221 = vmatprep.subr.bf16.mxu0 0
          %1222 = vmatpush1.bf16.xpose.msra.mxu0 0
          %1223 = vmatprep.subr.bf16.mxu0 0
          %1224 = vmatpush1.bf16.xpose.msra.mxu0 0
          %1225 = vmatprep.subr.bf16.mxu0 0
          %1226 = vmatpush1.bf16.xpose.msra.mxu0 0
          %1227 = vmatprep.subr.bf16.mxu0 0
          %1228 = vmatpush1.bf16.xpose.msra.mxu0 0
          %1229 = vmatprep.subr.bf16.mxu0 0
          %1230 = vmatpush1.bf16.xpose.msra.mxu0 0
          %1231 = vmatprep.mubr.bf16.mxu0 0
          %1232 = vmatmul.mubr.bf16.gmra.mrb[0].mxu0 %v1194
          %v1233 = vpop.f32.mrb[0].mxu0
          %v1234 = vadd.f32 0.0, %v1233
          %v1235 = vpop.f32.mrb[0].mxu0
          %v1236 = vpop.f32.mrb[0].mxu0
          %v1237 = vpop.f32.mrb[0].mxu0
          %1238 = vdwg.mxu0
          %v1239 = vsel %vm966, %v1234, -inf
          %1240 = vmax.xlane.f32.xlu0 %v1239
          %v1241 = vpop.xlane.xlu0 %1240
          %v1242 = vsub.f32 %v1234, %v1241
          %v1243 = vmul.f32 %v1242, 1.442695
          %v1244 = vpow.pop %v1243
          %v1245 = vsel %vm966, %v1244, 0.0
          %1246 = vadd.xlane.f32.xlu0 %v1245
          %v1247 = vpop.xlane.xlu0 %1246
          %v1248 = vpack.c.bf16 %v1244, %v1244
          %1249 = vrot.lane.b32.xlu0 %v1138, 112
          %v1250 = vpop.permute.xlu0 %1249
          %v1252 = vsel %vm966, %v1248, 0
          %v1255 = vsel %vm1026, %v1250, 0
          %1257 = vmatprep.subr.bf16.mxu0 0
          %1258 = vmatpush1.bf16.msra.mxu0 %v1255
          %1259 = vmatprep.subr.bf16.mxu0 0
          %1260 = vmatpush1.bf16.msra.mxu0 0
          %1261 = vmatprep.subr.bf16.mxu0 0
          %1262 = vmatpush1.bf16.msra.mxu0 0
          %1263 = vmatprep.subr.bf16.mxu0 0
          %1264 = vmatpush1.bf16.msra.mxu0 0
          %1265 = vmatprep.subr.bf16.mxu0 0
          %1266 = vmatpush1.bf16.msra.mxu0 0
          %1267 = vmatprep.subr.bf16.mxu0 0
          %1268 = vmatpush1.bf16.msra.mxu0 0
          %1269 = vmatprep.subr.bf16.mxu0 0
          %1270 = vmatpush1.bf16.msra.mxu0 0
          %1271 = vmatprep.subr.bf16.mxu0 0
          %1272 = vmatpush1.bf16.msra.mxu0 0
          %1273 = vmatprep.subr.bf16.mxu0 0
          %1274 = vmatpush1.bf16.msra.mxu0 0
          %1275 = vmatprep.subr.bf16.mxu0 0
          %1276 = vmatpush1.bf16.msra.mxu0 0
          %1277 = vmatprep.subr.bf16.mxu0 0
          %1278 = vmatpush1.bf16.msra.mxu0 0
          %1279 = vmatprep.subr.bf16.mxu0 0
          %1280 = vmatpush1.bf16.msra.mxu0 0
          %1281 = vmatprep.subr.bf16.mxu0 0
          %1282 = vmatpush1.bf16.msra.mxu0 0
          %1283 = vmatprep.subr.bf16.mxu0 0
          %1284 = vmatpush1.bf16.msra.mxu0 0
          %1285 = vmatprep.subr.bf16.mxu0 0
          %1286 = vmatpush1.bf16.msra.mxu0 0
          %1287 = vmatprep.subr.bf16.mxu0 0
          %1288 = vmatpush1.bf16.msra.mxu0 0
          %1289 = vmatprep.mubr.bf16.mxu0 0
          %1290 = vmatmul.mubr.bf16.gmra.mrb[0].mxu0 %v1252
          %v1291 = vpop.f32.mrb[0].mxu0
          %v1292 = vadd.f32 0.0, %v1291
          %v1293 = vpop.f32.mrb[0].mxu0
          %v1294 = vpop.f32.mrb[0].mxu0
          %v1295 = vpop.f32.mrb[0].mxu0
          %1296 = vdwg.mxu0
          %v1297 = vrcp.pop %v1247
          %v1298 = vmul.f32 %v1292, %v1297
          %1299 = vrot.lane.b32.xlu0 %v963, 104
          %v1300 = vpop.permute.xlu0 %1299
          %1301 = vrot.lane.b32.xlu0 %v1077, 104
          %v1302 = vpop.permute.xlu0 %1301
          %v1304 = vsel %vm966, %v1300, 0
          %v1307 = vsel %vm966, %v1302, 0
          %1309 = vmatprep.subr.bf16.mxu0 0
          %1310 = vmatpush1.bf16.xpose.msra.mxu0 %v1307
          %1311 = vmatprep.subr.bf16.mxu0 0
          %1312 = vmatpush1.bf16.xpose.msra.mxu0 0
          %1313 = vmatprep.subr.bf16.mxu0 0
          %1314 = vmatpush1.bf16.xpose.msra.mxu0 0
          %1315 = vmatprep.subr.bf16.mxu0 0
          %1316 = vmatpush1.bf16.xpose.msra.mxu0 0
          %1317 = vmatprep.subr.bf16.mxu0 0
          %1318 = vmatpush1.bf16.xpose.msra.mxu0 0
          %1319 = vmatprep.subr.bf16.mxu0 0
          %1320 = vmatpush1.bf16.xpose.msra.mxu0 0
          %1321 = vmatprep.subr.bf16.mxu0 0
          %1322 = vmatpush1.bf16.xpose.msra.mxu0 0
          %1323 = vmatprep.subr.bf16.mxu0 0
          %1324 = vmatpush1.bf16.xpose.msra.mxu0 0
          %1325 = vmatprep.subr.bf16.mxu0 0
          %1326 = vmatpush1.bf16.xpose.msra.mxu0 0
          %1327 = vmatprep.subr.bf16.mxu0 0
          %1328 = vmatpush1.bf16.xpose.msra.mxu0 0
          %1329 = vmatprep.subr.bf16.mxu0 0
          %1330 = vmatpush1.bf16.xpose.msra.mxu0 0
          %1331 = vmatprep.subr.bf16.mxu0 0
          %1332 = vmatpush1.bf16.xpose.msra.mxu0 0
          %1333 = vmatprep.subr.bf16.mxu0 0
          %1334 = vmatpush1.bf16.xpose.msra.mxu0 0
          %1335 = vmatprep.subr.bf16.mxu0 0
          %1336 = vmatpush1.bf16.xpose.msra.mxu0 0
          %1337 = vmatprep.subr.bf16.mxu0 0
          %1338 = vmatpush1.bf16.xpose.msra.mxu0 0
          %1339 = vmatprep.subr.bf16.mxu0 0
          %1340 = vmatpush1.bf16.xpose.msra.mxu0 0
          %1341 = vmatprep.mubr.bf16.mxu0 0
          %1342 = vmatmul.mubr.bf16.gmra.mrb[0].mxu0 %v1304
          %v1343 = vpop.f32.mrb[0].mxu0
          %v1344 = vadd.f32 0.0, %v1343
          %v1345 = vpop.f32.mrb[0].mxu0
          %v1346 = vpop.f32.mrb[0].mxu0
          %v1347 = vpop.f32.mrb[0].mxu0
          %1348 = vdwg.mxu0
          %v1349 = vsel %vm966, %v1344, -inf
          %1350 = vmax.xlane.f32.xlu0 %v1349
          %v1351 = vpop.xlane.xlu0 %1350
          %v1352 = vsub.f32 %v1344, %v1351
          %v1353 = vmul.f32 %v1352, 1.442695
          %v1354 = vpow.pop %v1353
          %v1355 = vsel %vm966, %v1354, 0.0
          %1356 = vadd.xlane.f32.xlu0 %v1355
          %v1357 = vpop.xlane.xlu0 %1356
          %v1358 = vpack.c.bf16 %v1354, %v1354
          %1359 = vrot.lane.b32.xlu0 %v1138, 104
          %v1360 = vpop.permute.xlu0 %1359
          %v1362 = vsel %vm966, %v1358, 0
          %v1365 = vsel %vm1026, %v1360, 0
          %1367 = vmatprep.subr.bf16.mxu0 0
          %1368 = vmatpush1.bf16.msra.mxu0 %v1365
          %1369 = vmatprep.subr.bf16.mxu0 0
          %1370 = vmatpush1.bf16.msra.mxu0 0
          %1371 = vmatprep.subr.bf16.mxu0 0
          %1372 = vmatpush1.bf16.msra.mxu0 0
          %1373 = vmatprep.subr.bf16.mxu0 0
          %1374 = vmatpush1.bf16.msra.mxu0 0
          %1375 = vmatprep.subr.bf16.mxu0 0
          %1376 = vmatpush1.bf16.msra.mxu0 0
          %1377 = vmatprep.subr.bf16.mxu0 0
          %1378 = vmatpush1.bf16.msra.mxu0 0
          %1379 = vmatprep.subr.bf16.mxu0 0
          %1380 = vmatpush1.bf16.msra.mxu0 0
          %1381 = vmatprep.subr.bf16.mxu0 0
          %1382 = vmatpush1.bf16.msra.mxu0 0
          %1383 = vmatprep.subr.bf16.mxu0 0
          %1384 = vmatpush1.bf16.msra.mxu0 0
          %1385 = vmatprep.subr.bf16.mxu0 0
          %1386 = vmatpush1.bf16.msra.mxu0 0
          %1387 = vmatprep.subr.bf16.mxu0 0
          %1388 = vmatpush1.bf16.msra.mxu0 0
          %1389 = vmatprep.subr.bf16.mxu0 0
          %1390 = vmatpush1.bf16.msra.mxu0 0
          %1391 = vmatprep.subr.bf16.mxu0 0
          %1392 = vmatpush1.bf16.msra.mxu0 0
          %1393 = vmatprep.subr.bf16.mxu0 0
          %1394 = vmatpush1.bf16.msra.mxu0 0
          %1395 = vmatprep.subr.bf16.mxu0 0
          %1396 = vmatpush1.bf16.msra.mxu0 0
          %1397 = vmatprep.subr.bf16.mxu0 0
          %1398 = vmatpush1.bf16.msra.mxu0 0
          %1399 = vmatprep.mubr.bf16.mxu0 0
          %1400 = vmatmul.mubr.bf16.gmra.mrb[0].mxu0 %v1362
          %v1401 = vpop.f32.mrb[0].mxu0
          %v1402 = vadd.f32 0.0, %v1401
          %v1403 = vpop.f32.mrb[0].mxu0
          %v1404 = vpop.f32.mrb[0].mxu0
          %v1405 = vpop.f32.mrb[0].mxu0
          %1406 = vdwg.mxu0
          %v1407 = vrcp.pop %v1357
          %v1408 = vmul.f32 %v1402, %v1407
          %1410 = vrot.lane.b32.xlu0 %v1188, 8
          %v1411 = vpop.permute.xlu0 %1410
          %1414 = vrot.lane.b32.xlu0 %v1298, 16
          %v1415 = vpop.permute.xlu0 %1414
          %1418 = vrot.lane.b32.xlu0 %v1408, 24
          %v1419 = vpop.permute.xlu0 %1418
          %v1421 = vsel %vm966, %v1071, %v1411
          %vm1422 = vcmask 130048
          %v1423 = vsel %vm1422, %v1421, %v1415
          %vm1424 = vcmask 195584
          %v1425 = vsel %vm1424, %v1423, %v1419
          %v1426 = vpack.c.bf16 %v1425, %v1425
          %v1427 = vld [vmem:[#allocation12] sm:$0xf]
          %v1428 = vld [vmem:[#allocation12 + $0x4] sm:$0xf]
          %v1429 = vld [vmem:[#allocation12 + $0x8] sm:$0xf]
          %v1430 = vld [vmem:[#allocation12 + $0xc] sm:$0xf]
          %v1431 = vld [vmem:[#allocation14] sm:$0x1]
          %v1433 = vlaneseq
          %v1434 = vshrl.u32 %v1433, 7
          %v1435 = vsub.s32 0, %v1434
          %v1436 = vrot.slane %v1431, %v1435
          %v1442 = vunpack.c.l.b16 %v1427
          %v1443 = vunpack.c.l.b16 %v1428
          %v1444 = vunpack.c.l.b16 %v1429
          %v1445 = vunpack.c.l.b16 %v1430
          %v1446 = vpack.c.b16 %v1443, %v1442
          %v1447 = vpack.c.b16 %v1445, %v1444
          %v1451 = vsel %vm918, %v1426, 0
          %1453 = vmatprep.subr.bf16.mxu0 0
          %1454 = vmatpush1.bf16.msra.mxu0 %v1446
          %1455 = vmatprep.subr.bf16.mxu0 0
          %1456 = vmatpush1.bf16.msra.mxu0 %v1447
          %1457 = vmatprep.subr.bf16.mxu0 0
          %1458 = vmatpush1.bf16.msra.mxu0 0
          %1459 = vmatprep.subr.bf16.mxu0 0
          %1460 = vmatpush1.bf16.msra.mxu0 0
          %1461 = vmatprep.subr.bf16.mxu0 0
          %1462 = vmatpush1.bf16.msra.mxu0 0
          %1463 = vmatprep.subr.bf16.mxu0 0
          %1464 = vmatpush1.bf16.msra.mxu0 0
          %1465 = vmatprep.subr.bf16.mxu0 0
          %1466 = vmatpush1.bf16.msra.mxu0 0
          %1467 = vmatprep.subr.bf16.mxu0 0
          %1468 = vmatpush1.bf16.msra.mxu0 0
          %1469 = vmatprep.subr.bf16.mxu0 0
          %1470 = vmatpush1.bf16.msra.mxu0 0
          %1471 = vmatprep.subr.bf16.mxu0 0
          %1472 = vmatpush1.bf16.msra.mxu0 0
          %1473 = vmatprep.subr.bf16.mxu0 0
          %1474 = vmatpush1.bf16.msra.mxu0 0
          %1475 = vmatprep.subr.bf16.mxu0 0
          %1476 = vmatpush1.bf16.msra.mxu0 0
          %1477 = vmatprep.subr.bf16.mxu0 0
          %1478 = vmatpush1.bf16.msra.mxu0 0
          %1479 = vmatprep.subr.bf16.mxu0 0
          %1480 = vmatpush1.bf16.msra.mxu0 0
          %1481 = vmatprep.subr.bf16.mxu0 0
          %1482 = vmatpush1.bf16.msra.mxu0 0
          %1483 = vmatprep.subr.bf16.mxu0 0
          %1484 = vmatpush1.bf16.msra.mxu0 0
          %1485 = vmatprep.mubr.bf16.mxu0 0
          %1486 = vmatmul.mubr.bf16.gmra.mrb[0].mxu0 %v1451
          %v1487 = vpop.f32.mrb[0].mxu0
          %v1488 = vadd.f32 %v1436, %v1487
          %v1489 = vpop.f32.mrb[0].mxu0
          %v1490 = vpop.f32.mrb[0].mxu0
          %v1491 = vpop.f32.mrb[0].mxu0
          %1492 = vdwg.mxu0
          %v1493 = vadd.f32 %v893, %v1488
          %v1494 = vld [vmem:[%s10] sm:$0x1]
          %v1495 = vld [vmem:[%s11] sm:$0x1]
          %v1496 = vsel %vm918, %v1493, 0.0
          %1497 = vadd.xlane.f32.xlu0 %v1496
          %v1498 = vpop.xlane.xlu0 %1497
          %v1499 = vrcp.pop 32.0
          %v1500 = vmul.f32 %v1498, %v1499
          %v1501 = vsub.f32 %v1493, %v1500
          %v1502 = vmul.f32 %v1501, %v1501
          %v1503 = vsel %vm918, %v1502, 0.0
          %1504 = vadd.xlane.f32.xlu0 %v1503
          %v1505 = vpop.xlane.xlu0 %1504
          %v1506 = vmul.f32 %v1505, %v1499
          %v1507 = vadd.f32 %v1506, 1e-05
          %v1508 = vrsqrt.pop %v1507
          %v1509 = vmul.f32 %v1501, %v1508
          %v1511 = vlaneseq
          %v1512 = vshrl.u32 %v1511, 7
          %v1513 = vsub.s32 0, %v1512
          %v1514 = vrot.slane %v1494, %v1513
          %v1516 = vmul.f32 %v1509, %v1514
          %v1518 = vlaneseq
          %v1519 = vshrl.u32 %v1518, 7
          %v1520 = vsub.s32 0, %v1519
          %v1521 = vrot.slane %v1495, %v1520
          %v1523 = vadd.f32 %v1516, %v1521
          %1524 = vst.msk [vmem:[#allocation4] sm:$0xff] %vm918, %v1523
          %1525 = vst.msk [vmem:[#allocation5] sm:$0xff] %vm918, 0.0
        $region120: #{tpu_custom_call.1} parent=91 // pred_fallthru
          _
        %v1526 = vld [vmem:[#allocation4] sm:$0xff]
        %v1527 = vpack.c.bf16 %v1526, %v1526
        %v1528 = vld [vmem:[%s737] sm:$0xf]
        %v1529 = vld [vmem:[%s737 + $0x4] sm:$0xf]
        %v1530 = vld [vmem:[%s737 + $0x8] sm:$0xf]
        %v1531 = vld [vmem:[%s737 + $0xc] sm:$0xf]
        %v1532 = vld [vmem:[%s740] sm:$0x1]
        %v1534 = vlaneseq
        %v1535 = vshrl.u32 %v1534, 7
        %v1536 = vsub.s32 0, %v1535
        %v1537 = vrot.slane %v1532, %v1536
        %v1543 = vunpack.c.l.b16 %v1528
        %v1544 = vunpack.c.l.b16 %v1529
        %v1545 = vunpack.c.l.b16 %v1530
        %v1546 = vunpack.c.l.b16 %v1531
        %v1547 = vpack.c.b16 %v1544, %v1543
        %v1548 = vpack.c.b16 %v1546, %v1545
        %vm1551 = vcmask 261120
        %v1553 = vsel %vm1551, %v1527, 0
        %1555 = vmatprep.subr.bf16.mxu0 0
        %1556 = vmatpush1.bf16.msra.mxu0 %v1547
        %1557 = vmatprep.subr.bf16.mxu0 0
        %1558 = vmatpush1.bf16.msra.mxu0 %v1548
        %1559 = vmatprep.subr.bf16.mxu0 0
        %1560 = vmatpush1.bf16.msra.mxu0 0
        %1561 = vmatprep.subr.bf16.mxu0 0
        %1562 = vmatpush1.bf16.msra.mxu0 0
        %1563 = vmatprep.subr.bf16.mxu0 0
        %1564 = vmatpush1.bf16.msra.mxu0 0
        %1565 = vmatprep.subr.bf16.mxu0 0
        %1566 = vmatpush1.bf16.msra.mxu0 0
        %1567 = vmatprep.subr.bf16.mxu0 0
        %1568 = vmatpush1.bf16.msra.mxu0 0
        %1569 = vmatprep.subr.bf16.mxu0 0
        %1570 = vmatpush1.bf16.msra.mxu0 0
        %1571 = vmatprep.subr.bf16.mxu0 0
        %1572 = vmatpush1.bf16.msra.mxu0 0
        %1573 = vmatprep.subr.bf16.mxu0 0
        %1574 = vmatpush1.bf16.msra.mxu0 0
        %1575 = vmatprep.subr.bf16.mxu0 0
        %1576 = vmatpush1.bf16.msra.mxu0 0
        %1577 = vmatprep.subr.bf16.mxu0 0
        %1578 = vmatpush1.bf16.msra.mxu0 0
        %1579 = vmatprep.subr.bf16.mxu0 0
        %1580 = vmatpush1.bf16.msra.mxu0 0
        %1581 = vmatprep.subr.bf16.mxu0 0
        %1582 = vmatpush1.bf16.msra.mxu0 0
        %1583 = vmatprep.subr.bf16.mxu0 0
        %1584 = vmatpush1.bf16.msra.mxu0 0
        %1585 = vmatprep.subr.bf16.mxu0 0
        %1586 = vmatpush1.bf16.msra.mxu0 0
        %1587 = vmatprep.mubr.bf16.mxu0 0
        %1588 = vmatmul.mubr.bf16.gmra.mrb[0].mxu0 %v1553
        %v1589 = vpop.f32.mrb[0].mxu0
        %v1590 = vadd.f32 %v1537, %v1589
        %v1591 = vpop.f32.mrb[0].mxu0
        %v1592 = vpop.f32.mrb[0].mxu0
        %v1593 = vpop.f32.mrb[0].mxu0
        %1594 = vdwg.mxu0
        %v1595 = vmax.f32 %v1590, 0.0
        %v1596 = vpack.c.bf16 %v1595, %v1595
        %v1597 = vld [vmem:[#allocation5] sm:$0xff]
        %v1598 = vld [vmem:[%s745] sm:$0xf]
        %v1599 = vld [vmem:[%s745 + $0x4] sm:$0xf]
        %v1600 = vld [vmem:[%s745 + $0x8] sm:$0xf]
        %v1601 = vld [vmem:[%s745 + $0xc] sm:$0xf]
        %v1602 = vld [vmem:[%s745 + $0x10] sm:$0xf]
        %v1603 = vld [vmem:[%s745 + $0x14] sm:$0xf]
        %v1604 = vld [vmem:[%s745 + $0x18] sm:$0xf]
        %v1605 = vld [vmem:[%s745 + $0x1c] sm:$0xf]
        %v1614 = vunpack.c.l.b16 %v1598
        %v1615 = vunpack.c.l.b16 %v1599
        %v1616 = vunpack.c.l.b16 %v1600
        %v1617 = vunpack.c.l.b16 %v1601
        %v1618 = vunpack.c.l.b16 %v1602
        %v1619 = vunpack.c.l.b16 %v1603
        %v1620 = vunpack.c.l.b16 %v1604
        %v1621 = vunpack.c.l.b16 %v1605
        %v1622 = vpack.c.b16 %v1615, %v1614
        %v1623 = vpack.c.b16 %v1617, %v1616
        %v1624 = vpack.c.b16 %v1619, %v1618
        %v1625 = vpack.c.b16 %v1621, %v1620
        %vm1630 = vcmask 523264
        %v1632 = vsel %vm1630, %v1596, 0
        %1634 = vmatprep.subr.bf16.mxu0 0
        %1635 = vmatpush1.bf16.msra.mxu0 %v1622
        %1636 = vmatprep.subr.bf16.mxu0 0
        %1637 = vmatpush1.bf16.msra.mxu0 %v1623
        %1638 = vmatprep.subr.bf16.mxu0 0
        %1639 = vmatpush1.bf16.msra.mxu0 %v1624
        %1640 = vmatprep.subr.bf16.mxu0 0
        %1641 = vmatpush1.bf16.msra.mxu0 %v1625
        %1642 = vmatprep.subr.bf16.mxu0 0
        %1643 = vmatpush1.bf16.msra.mxu0 0
        %1644 = vmatprep.subr.bf16.mxu0 0
        %1645 = vmatpush1.bf16.msra.mxu0 0
        %1646 = vmatprep.subr.bf16.mxu0 0
        %1647 = vmatpush1.bf16.msra.mxu0 0
        %1648 = vmatprep.subr.bf16.mxu0 0
        %1649 = vmatpush1.bf16.msra.mxu0 0
        %1650 = vmatprep.subr.bf16.mxu0 0
        %1651 = vmatpush1.bf16.msra.mxu0 0
        %1652 = vmatprep.subr.bf16.mxu0 0
        %1653 = vmatpush1.bf16.msra.mxu0 0
        %1654 = vmatprep.subr.bf16.mxu0 0
        %1655 = vmatpush1.bf16.msra.mxu0 0
        %1656 = vmatprep.subr.bf16.mxu0 0
        %1657 = vmatpush1.bf16.msra.mxu0 0
        %1658 = vmatprep.subr.bf16.mxu0 0
        %1659 = vmatpush1.bf16.msra.mxu0 0
        %1660 = vmatprep.subr.bf16.mxu0 0
        %1661 = vmatpush1.bf16.msra.mxu0 0
        %1662 = vmatprep.subr.bf16.mxu0 0
        %1663 = vmatpush1.bf16.msra.mxu0 0
        %1664 = vmatprep.subr.bf16.mxu0 0
        %1665 = vmatpush1.bf16.msra.mxu0 0
        %1666 = vmatprep.mubr.bf16.mxu0 0
        %1667 = vmatmul.mubr.bf16.gmra.mrb[0].mxu0 %v1632
        %v1668 = vpop.f32.mrb[0].mxu0
        %v1669 = vadd.f32 0.0, %v1668
        %v1670 = vpop.f32.mrb[0].mxu0
        %v1671 = vpop.f32.mrb[0].mxu0
        %v1672 = vpop.f32.mrb[0].mxu0
        %1673 = vdwg.mxu0
        %v1674 = vadd.f32 %v1597, %v1669
        %1675 = vst.msk [vmem:[#allocation5] sm:$0xff] %vm1551, %v1674
        // Predicated region
        $region121: #{tpu_custom_call.1} parent=91 // pred_check
          %p1676 = pneg %p749
        $region122: #{tpu_custom_call.1} parent=91 // pred_check_branch
          %1678 = sbr.rel (%p1676) target = $region124
        $region123: #{tpu_custom_call.1} parent=91 // pred_region
          %v1679 = vld [vmem:[#allocation5] sm:$0xff]
          %v1680 = vld [vmem:[%s15] sm:$0x1]
          %v1682 = vlaneseq
          %v1683 = vshrl.u32 %v1682, 7
          %v1684 = vsub.s32 0, %v1683
          %v1685 = vrot.slane %v1680, %v1684
          %v1687 = vadd.f32 %v1679, %v1685
          %v1688 = vld [vmem:[#allocation4] sm:$0xff]
          %v1689 = vadd.f32 %v1688, %v1687
          %v1690 = vld [vmem:[%s16] sm:$0x1]
          %v1691 = vld [vmem:[%s17] sm:$0x1]
          %v1692 = vsel %vm1551, %v1689, 0.0
          %1693 = vadd.xlane.f32.xlu0 %v1692
          %v1694 = vpop.xlane.xlu0 %1693
          %v1695 = vrcp.pop 32.0
          %v1696 = vmul.f32 %v1694, %v1695
          %v1697 = vsub.f32 %v1689, %v1696
          %v1698 = vmul.f32 %v1697, %v1697
          %v1699 = vsel %vm1551, %v1698, 0.0
          %1700 = vadd.xlane.f32.xlu0 %v1699
          %v1701 = vpop.xlane.xlu0 %1700
          %v1702 = vmul.f32 %v1701, %v1695
          %v1703 = vadd.f32 %v1702, 1e-05
          %v1704 = vrsqrt.pop %v1703
          %v1705 = vmul.f32 %v1697, %v1704
          %v1707 = vlaneseq
          %v1708 = vshrl.u32 %v1707, 7
          %v1709 = vsub.s32 0, %v1708
          %v1710 = vrot.slane %v1690, %v1709
          %v1712 = vmul.f32 %v1705, %v1710
          %v1714 = vlaneseq
          %v1715 = vshrl.u32 %v1714, 7
          %v1716 = vsub.s32 0, %v1715
          %v1717 = vrot.slane %v1691, %v1716
          %v1719 = vadd.f32 %v1712, %v1717
          %1720 = vst.msk [vmem:[%s726] sm:$0xff] %vm1551, %v1719
        $region124: #{tpu_custom_call.1} parent=91 // pred_fallthru
          _
        %s1721 = sand.u32 %s471, 1
        %s1722 = scalar_lea.sflag [#allocation8], %s1721
        %s1723 = sand.u32 %s471, 1
        %s1724 = smul.addr %s1723, 8
        %s1725 = scalar_lea.vmem [#allocation15], %s1724
        // Predicated region
        $region125: #{tpu_custom_call.1} parent=91 // pred_check
          %p1726 = pneg %p481
        $region126: #{tpu_custom_call.1} parent=91 // pred_check_branch
          %1728 = sbr.rel (%p1726) target = $region128
        $region127: #{tpu_custom_call.1} parent=91 // pred_region
          %s1730 = ssub.s32 128, 128
          %1731 = vsyncadd %s1722, %s1730
          %s1732 = sadd.s32 %s43, %s42
          %s1733 = smul.addr %s1732, 128
          %s1734 = scalar_lea.hbm %s18, %s1733
          %s1736 = sshll.u32 %s1725, 4
          %s1737 = int_to_ptr.vmem [resolvable:$true] %s1736
          %1739 = dma.vmem_to_hbm [thread:$0]  %s1737, 128, %s1734, %s1722
        $region128: #{tpu_custom_call.1} parent=91 // pred_fallthru
          _
      $region92: #{tpu_custom_call.1} parent=5 // pred_fallthru
        _
      %p1740 = scmp.le.s32.totalorder 2, %s32
      // Predicated region
      $region129: #{tpu_custom_call.1} parent=5 // pred_check
        %p1741 = pneg %p1740
      $region130: #{tpu_custom_call.1} parent=5 // pred_check_branch
        %1743 = sbr.rel (%p1741) target = $region132
      $region131: #{tpu_custom_call.1} parent=5 // pred_region
        %s1744 = ssub.s32 %s32, 2
        // Predicated region
        $region133: #{tpu_custom_call.1} parent=131 // pred_check
          %p1745 = pneg %p487
        $region134: #{tpu_custom_call.1} parent=131 // pred_check_branch
          %1747 = sbr.rel (%p1745) target = $region136
        $region135: #{tpu_custom_call.1} parent=131 // pred_region
          %s1748 = sand.u32 %s472, 1
          %s1749 = scalar_lea.sflag [#allocation8], %s1748
          %s1750 = sand.u32 %s472, 1
          %s1751 = smul.addr %s1750, 8
          %s1752 = scalar_lea.vmem [#allocation15], %s1751
          %1753 = dma.done %s1749, 128
        $region136: #{tpu_custom_call.1} parent=131 // pred_fallthru
          _
      $region132: #{tpu_custom_call.1} parent=5 // pred_fallthru
        _
    $region6: #{tpu_custom_call.1} parent=1 // loop_footer
      %s36 = sadd.s32 1, %s32
    $region7: #{tpu_custom_call.1} parent=1 // loop_footer_branch
      %31 = sbr.rel target = $region3
    $region8: #{tpu_custom_call.1} parent=1 // loop_exit
      _
    %1754 = vsyncpa [#allocation7], 1
    %s1755 = scalar_lea.sflag [#allocation7], 1
    %1756 = vsyncpa %s1755, 1
    %1757 = vsyncpa [#allocation10], 1
    %1758 = vsyncpa [#allocation13], 1
    %1759 = vsyncpa [#allocation8], 1
    %s1760 = scalar_lea.sflag [#allocation8], 1
    %1761 = vsyncpa %s1760, 1

// kernel: tpu_custom_call.1
$region0: #{tpu_custom_call.1}
  #allocation0 [shape = 'u32[]', space=smem, size = 0x4, offset = 0x4, fixed_abs, tag = 'smem constant byte address 0x4 - core index']
  #allocation1 [shape = 'u32[144,128]{1,0:T(1,128)}', space=vmem, size = 0x12000, scoped, tag = 'internal scratch']
  #allocation2 [shape = 'bf16[8,32]{1,0:T(8,128)(2,1)}', space=vmem, size = 0x800, scoped, tag = 'scratch operand']
  #allocation3 [shape = 'bf16[8,32]{1,0:T(8,128)(2,1)}', space=vmem, size = 0x800, scoped, tag = 'scratch operand']
  #allocation4 [shape = 'f32[8,32]{1,0:T(8,128)}', space=vmem, size = 0x1000, scoped, tag = 'scratch operand']
  #allocation5 [shape = 'f32[8,32]{1,0:T(8,128)}', space=vmem, size = 0x1000, scoped, tag = 'scratch operand']
  %s0 = inlined_call_operand.vmem [shape: f32[2,8,32], index: 0, kind: input, shape index: {}]
  %s1 = inlined_call_operand.hbm [shape: bf16[2,8,32], index: 1, kind: input, shape index: {}]
  %s2 = inlined_call_operand.vmem [shape: bf16[32,32], index: 2, kind: input, shape index: {}]
  %s3 = inlined_call_operand.vmem [shape: f32[1,32], index: 3, kind: input, shape index: {}]
  %s4 = inlined_call_operand.vmem [shape: bf16[32,32], index: 4, kind: input, shape index: {}]
  %s5 = inlined_call_operand.vmem [shape: f32[1,32], index: 5, kind: input, shape index: {}]
  %s6 = inlined_call_operand.hbm [shape: bf16[32,32], index: 6, kind: input, shape index: {}]
  %s7 = inlined_call_operand.hbm [shape: f32[1,32], index: 7, kind: input, shape index: {}]
  %s8 = inlined_call_operand.hbm [shape: bf16[32,32], index: 8, kind: input, shape index: {}]
  %s9 = inlined_call_operand.hbm [shape: f32[1,32], index: 9, kind: input, shape index: {}]
  %s10 = inlined_call_operand.vmem [shape: f32[1,32], index: 10, kind: input, shape index: {}]
  %s11 = inlined_call_operand.vmem [shape: f32[1,32], index: 11, kind: input, shape index: {}]
  %s12 = inlined_call_operand.vmem [shape: bf16[32,64], index: 12, kind: input, shape index: {}]
  %s13 = inlined_call_operand.vmem [shape: f32[1,64], index: 13, kind: input, shape index: {}]
  %s14 = inlined_call_operand.vmem [shape: bf16[64,32], index: 14, kind: input, shape index: {}]
  %s15 = inlined_call_operand.vmem [shape: f32[1,32], index: 15, kind: input, shape index: {}]
  %s16 = inlined_call_operand.vmem [shape: f32[1,32], index: 16, kind: input, shape index: {}]
  %s17 = inlined_call_operand.vmem [shape: f32[1,32], index: 17, kind: input, shape index: {}]
  %s18 = inlined_call_operand.hbm [shape: f32[2,8,32], index: 18, kind: output, shape index: {}]
  %s19 = sld [smem:[#allocation0]]
  $region137: #{tpu_custom_call.1} parent=0
    _
  %s21 = ssub.s32 1, %s19
  %s22 = scalar_select 0, %s21, %s19
  $region1: #{tpu_custom_call.1} parent=0
    #allocation6 [shape = 'u8[4096]{0}', space=vmem, size = 0x1000, scoped, tag = 'input window, operand 1']
    #allocation7 [shape = 's32[2]{0}', space=sflag, size = 0x8, scoped, tag = 'scoped memory for tpu_custom_call.1']
    #allocation8 [shape = 's32[2]{0}', space=sflag, size = 0x8, scoped, tag = 'scoped memory for tpu_custom_call.1']
    #allocation9 [shape = 'u8[8192]{0}', space=vmem, size = 0x2000, scoped, tag = 'input window, operand 6, single buffered']
    #allocation10 [shape = 's32[1]{0}', space=sflag, size = 0x4, scoped, tag = 'scoped memory for tpu_custom_call.1']
    #allocation11 [shape = 'u8[512]{0}', space=vmem, size = 0x400, scoped, tag = 'input window, operand 7, single buffered']
    #allocation12 [shape = 'u8[8192]{0}', space=vmem, size = 0x2000, scoped, tag = 'input window, operand 8, single buffered']
    #allocation13 [shape = 's32[1]{0}', space=sflag, size = 0x4, scoped, tag = 'scoped memory for tpu_custom_call.1']
    #allocation14 [shape = 'u8[512]{0}', space=vmem, size = 0x400, scoped, tag = 'input window, operand 9, single buffered']
    #allocation15 [shape = 'u8[8192]{0}', space=vmem, size = 0x2000, scoped, tag = 'output window, operand 0']
    %23 = vsyncpa [#allocation7], 0
    %s24 = scalar_lea.sflag [#allocation7], 1
    %25 = vsyncpa %s24, 0
    %26 = vsyncpa [#allocation10], 0
    %27 = vsyncpa [#allocation13], 0
    %28 = vsyncpa [#allocation8], 0
    %s29 = scalar_lea.sflag [#allocation8], 1
    %30 = vsyncpa %s29, 0
    loop: start=0, step=1, limit=4
    $region2: #{tpu_custom_call.1} parent=1 // loop_pre_header
      _
    $region3: #{tpu_custom_call.1} parent=1 // loop_header
      %s32 = sphi 0, %s36
      %p33 = scmp.ge.s32.totalorder %s32, 4
      %s39 = sphi 0, %s58
      %s40 = sphi 0, %s54
      %s41 = sphi 0, %s50
      %s42 = sphi 0, %s39
      %s43 = sphi 0, %s40
      %s44 = sphi 0, %s41
      %s45 = sphi 0, %s42
      %s46 = sphi 0, %s43
      %s47 = sphi 0, %s44
      %s63 = sphi 0, %s65
      %s66 = sphi 0, %s63
      %s67 = sphi 0, %s66
      %s83 = sphi 0, %s67
      %s89 = sphi 0, %s91
      %s92 = sphi 0, %s89
      %s93 = sphi 0, %s92
      %s109 = sphi 0, %s93
      %s113 = sphi 0, %s113
      %s115 = sphi 0, %s113
      %s116 = sphi 0, %s115
      %s130 = sphi 0, %s116
      %s134 = sphi 0, %s134
      %s136 = sphi 0, %s134
      %s137 = sphi 0, %s136
      %s151 = sphi 0, %s137
      %s155 = sphi 0, %s155
      %s157 = sphi 0, %s155
      %s158 = sphi 0, %s157
      %s172 = sphi 0, %s158
      %s176 = sphi 0, %s176
      %s178 = sphi 0, %s176
      %s179 = sphi 0, %s178
      %s193 = sphi 0, %s179
      %s197 = sphi 0, %s197
      %s199 = sphi 0, %s197
      %s200 = sphi 0, %s199
      %s214 = sphi 0, %s200
      %s218 = sphi 0, %s218
      %s220 = sphi 0, %s218
      %s221 = sphi 0, %s220
      %s235 = sphi 0, %s221
      %s239 = sphi 0, %s239
      %s241 = sphi 0, %s239
      %s242 = sphi 0, %s241
      %s256 = sphi 0, %s242
      %s260 = sphi 0, %s260
      %s262 = sphi 0, %s260
      %s263 = sphi 0, %s262
      %s277 = sphi 0, %s263
      %s281 = sphi 0, %s281
      %s283 = sphi 0, %s281
      %s284 = sphi 0, %s283
      %s298 = sphi 0, %s284
      %s302 = sphi 0, %s302
      %s304 = sphi 0, %s302
      %s305 = sphi 0, %s304
      %s319 = sphi 0, %s305
      %s325 = sphi 0, %s327
      %s328 = sphi 0, %s325
      %s329 = sphi 0, %s328
      %s345 = sphi 0, %s329
      %s351 = sphi 0, %s353
      %s354 = sphi 0, %s351
      %s355 = sphi 0, %s354
      %s371 = sphi 0, %s355
      %s377 = sphi 0, %s379
      %s380 = sphi 0, %s377
      %s381 = sphi 0, %s380
      %s397 = sphi 0, %s381
      %s401 = sphi 0, %s401
      %s403 = sphi 0, %s401
      %s404 = sphi 0, %s403
      %s418 = sphi 0, %s404
      %s422 = sphi 0, %s422
      %s424 = sphi 0, %s422
      %s425 = sphi 0, %s424
      %s439 = sphi 0, %s425
      %s443 = sphi 0, %s443
      %s445 = sphi 0, %s443
      %s446 = sphi 0, %s445
      %s460 = sphi 0, %s446
      %s468 = sphi 0, %s470
      %s471 = sphi 0, %s468
      %s472 = sphi 0, %s471
      %s488 = sphi 0, %s472
    $region4: #{tpu_custom_call.1} parent=1 // loop_header_branch
      %35 = sbr.rel (%p33) target = $region8
    $region5: #{tpu_custom_call.1} parent=1 // loop_body
      %s37 = ssub.s32 %s32, 1
      %s38 = ssub.s32 %s32, 2
      %s48 = sadd.s32 1, %s41
      %p49 = scmp.ge.s32.totalorder %s48, 1
      %s50 = scalar_select %p49, 0, %s48
      %s51 = sadd.s32 1, %s40
      %s52 = scalar_select %p49, %s51, %s40
      %p53 = scmp.ge.s32.totalorder %s52, 1
      %s54 = scalar_select %p53, 0, %s52
      %s55 = sadd.s32 1, %s39
      %s56 = scalar_select %p53, %s55, %s39
      %p57 = scmp.ge.s32.totalorder %s56, 2
      %s58 = scalar_select %p57, 0, %s56
      %s59 = ssub.s32 %s39, %s58
      %s60 = ssub.s32 %s40, %s54
      %s61 = sor.u32 %s59, %s60
      %p62 = scmp.eq.s32.totalorder %s61, 0
      %s64 = sadd.s32 %s63, 1
      %s65 = scalar_select %p62, %s63, %s64
      %p68 = pneg %p62
      %p69 = scmp.eq.s32.totalorder %s32, 1
      %p70 = por %p68, %p69
      %p71 = scmp.ne.s32.totalorder %s63, %s66
      %p72 = scmp.eq.s32.totalorder %s32, 0
      %p73 = por %p71, %p72
      %p74 = scmp.ne.s32.totalorder %s63, %s66
      %p75 = scmp.eq.s32.totalorder %s37, 1
      %p76 = por %p74, %p75
      %p77 = scmp.ne.s32.totalorder %s66, %s67
      %p78 = scmp.eq.s32.totalorder %s37, 0
      %p79 = por %p77, %p78
      %p80 = scmp.ne.s32.totalorder %s66, %s67
      %p81 = scmp.eq.s32.totalorder %s38, 1
      %p82 = por %p80, %p81
      %p84 = scmp.ne.s32.totalorder %s67, %s83
      %p85 = scmp.eq.s32.totalorder %s38, 0
      %p86 = por %p84, %p85
      %s87 = ssub.s32 %s39, %s58
      %p88 = scmp.eq.s32.totalorder %s87, 0
      %s90 = sadd.s32 %s89, 1
      %s91 = scalar_select %p88, %s89, %s90
      %p94 = pneg %p88
      %p95 = scmp.eq.s32.totalorder %s32, 1
      %p96 = por %p94, %p95
      %p97 = scmp.ne.s32.totalorder %s89, %s92
      %p98 = scmp.eq.s32.totalorder %s32, 0
      %p99 = por %p97, %p98
      %p100 = scmp.ne.s32.totalorder %s89, %s92
      %p101 = scmp.eq.s32.totalorder %s37, 1
      %p102 = por %p100, %p101
      %p103 = scmp.ne.s32.totalorder %s92, %s93
      %p104 = scmp.eq.s32.totalorder %s37, 0
      %p105 = por %p103, %p104
      %p106 = scmp.ne.s32.totalorder %s92, %s93
      %p107 = scmp.eq.s32.totalorder %s38, 1
      %p108 = por %p106, %p107
      %p110 = scmp.ne.s32.totalorder %s93, %s109
      %p111 = scmp.eq.s32.totalorder %s38, 0
      %p112 = por %p110, %p111
      %s114 = sadd.s32 %s113, 1
      %p117 = scmp.eq.s32.totalorder %s32, 1
      %p118 = scmp.ne.s32.totalorder %s113, %s115
      %p119 = scmp.eq.s32.totalorder %s32, 0
      %p120 = por %p118, %p119
      %p121 = scmp.ne.s32.totalorder %s113, %s115
      %p122 = scmp.eq.s32.totalorder %s37, 1
      %p123 = por %p121, %p122
      %p124 = scmp.ne.s32.totalorder %s115, %s116
      %p125 = scmp.eq.s32.totalorder %s37, 0
      %p126 = por %p124, %p125
      %p127 = scmp.ne.s32.totalorder %s115, %s116
      %p128 = scmp.eq.s32.totalorder %s38, 1
      %p129 = por %p127, %p128
      %p131 = scmp.ne.s32.totalorder %s116, %s130
      %p132 = scmp.eq.s32.totalorder %s38, 0
      %p133 = por %p131, %p132
      %s135 = sadd.s32 %s134, 1
      %p138 = scmp.eq.s32.totalorder %s32, 1
      %p139 = scmp.ne.s32.totalorder %s134, %s136
      %p140 = scmp.eq.s32.totalorder %s32, 0
      %p141 = por %p139, %p140
      %p142 = scmp.ne.s32.totalorder %s134, %s136
      %p143 = scmp.eq.s32.totalorder %s37, 1
      %p144 = por %p142, %p143
      %p145 = scmp.ne.s32.totalorder %s136, %s137
      %p146 = scmp.eq.s32.totalorder %s37, 0
      %p147 = por %p145, %p146
      %p148 = scmp.ne.s32.totalorder %s136, %s137
      %p149 = scmp.eq.s32.totalorder %s38, 1
      %p150 = por %p148, %p149
      %p152 = scmp.ne.s32.totalorder %s137, %s151
      %p153 = scmp.eq.s32.totalorder %s38, 0
      %p154 = por %p152, %p153
      %s156 = sadd.s32 %s155, 1
      %p159 = scmp.eq.s32.totalorder %s32, 1
      %p160 = scmp.ne.s32.totalorder %s155, %s157
      %p161 = scmp.eq.s32.totalorder %s32, 0
      %p162 = por %p160, %p161
      %p163 = scmp.ne.s32.totalorder %s155, %s157
      %p164 = scmp.eq.s32.totalorder %s37, 1
      %p165 = por %p163, %p164
      %p166 = scmp.ne.s32.totalorder %s157, %s158
      %p167 = scmp.eq.s32.totalorder %s37, 0
      %p168 = por %p166, %p167
      %p169 = scmp.ne.s32.totalorder %s157, %s158
      %p170 = scmp.eq.s32.totalorder %s38, 1
      %p171 = por %p169, %p170
      %p173 = scmp.ne.s32.totalorder %s158, %s172
      %p174 = scmp.eq.s32.totalorder %s38, 0
      %p175 = por %p173, %p174
      %s177 = sadd.s32 %s176, 1
      %p180 = scmp.eq.s32.totalorder %s32, 1
      %p181 = scmp.ne.s32.totalorder %s176, %s178
      %p182 = scmp.eq.s32.totalorder %s32, 0
      %p183 = por %p181, %p182
      %p184 = scmp.ne.s32.totalorder %s176, %s178
      %p185 = scmp.eq.s32.totalorder %s37, 1
      %p186 = por %p184, %p185
      %p187 = scmp.ne.s32.totalorder %s178, %s179
      %p188 = scmp.eq.s32.totalorder %s37, 0
      %p189 = por %p187, %p188
      %p190 = scmp.ne.s32.totalorder %s178, %s179
      %p191 = scmp.eq.s32.totalorder %s38, 1
      %p192 = por %p190, %p191
      %p194 = scmp.ne.s32.totalorder %s179, %s193
      %p195 = scmp.eq.s32.totalorder %s38, 0
      %p196 = por %p194, %p195
      %s198 = sadd.s32 %s197, 1
      %p201 = scmp.eq.s32.totalorder %s32, 1
      %p202 = scmp.ne.s32.totalorder %s197, %s199
      %p203 = scmp.eq.s32.totalorder %s32, 0
      %p204 = por %p202, %p203
      %p205 = scmp.ne.s32.totalorder %s197, %s199
      %p206 = scmp.eq.s32.totalorder %s37, 1
      %p207 = por %p205, %p206
      %p208 = scmp.ne.s32.totalorder %s199, %s200
      %p209 = scmp.eq.s32.totalorder %s37, 0
      %p210 = por %p208, %p209
      %p211 = scmp.ne.s32.totalorder %s199, %s200
      %p212 = scmp.eq.s32.totalorder %s38, 1
      %p213 = por %p211, %p212
      %p215 = scmp.ne.s32.totalorder %s200, %s214
      %p216 = scmp.eq.s32.totalorder %s38, 0
      %p217 = por %p215, %p216
      %s219 = sadd.s32 %s218, 1
      %p222 = scmp.eq.s32.totalorder %s32, 1
      %p223 = scmp.ne.s32.totalorder %s218, %s220
      %p224 = scmp.eq.s32.totalorder %s32, 0
      %p225 = por %p223, %p224
      %p226 = scmp.ne.s32.totalorder %s218, %s220
      %p227 = scmp.eq.s32.totalorder %s37, 1
      %p228 = por %p226, %p227
      %p229 = scmp.ne.s32.totalorder %s220, %s221
      %p230 = scmp.eq.s32.totalorder %s37, 0
      %p231 = por %p229, %p230
      %p232 = scmp.ne.s32.totalorder %s220, %s221
      %p233 = scmp.eq.s32.totalorder %s38, 1
      %p234 = por %p232, %p233
      %p236 = scmp.ne.s32.totalorder %s221, %s235
      %p237 = scmp.eq.s32.totalorder %s38, 0
      %p238 = por %p236, %p237
      %s240 = sadd.s32 %s239, 1
      %p243 = scmp.eq.s32.totalorder %s32, 1
      %p244 = scmp.ne.s32.totalorder %s239, %s241
      %p245 = scmp.eq.s32.totalorder %s32, 0
      %p246 = por %p244, %p245
      %p247 = scmp.ne.s32.totalorder %s239, %s241
      %p248 = scmp.eq.s32.totalorder %s37, 1
      %p249 = por %p247, %p248
      %p250 = scmp.ne.s32.totalorder %s241, %s242
      %p251 = scmp.eq.s32.totalorder %s37, 0
      %p252 = por %p250, %p251
      %p253 = scmp.ne.s32.totalorder %s241, %s242
      %p254 = scmp.eq.s32.totalorder %s38, 1
      %p255 = por %p253, %p254
      %p257 = scmp.ne.s32.totalorder %s242, %s256
      %p258 = scmp.eq.s32.totalorder %s38, 0
      %p259 = por %p257, %p258
      %s261 = sadd.s32 %s260, 1
      %p264 = scmp.eq.s32.totalorder %s32, 1
      %p265 = scmp.ne.s32.totalorder %s260, %s262
      %p266 = scmp.eq.s32.totalorder %s32, 0
      %p267 = por %p265, %p266
      %p268 = scmp.ne.s32.totalorder %s260, %s262
      %p269 = scmp.eq.s32.totalorder %s37, 1
      %p270 = por %p268, %p269
      %p271 = scmp.ne.s32.totalorder %s262, %s263
      %p272 = scmp.eq.s32.totalorder %s37, 0
      %p273 = por %p271, %p272
      %p274 = scmp.ne.s32.totalorder %s262, %s263
      %p275 = scmp.eq.s32.totalorder %s38, 1
      %p276 = por %p274, %p275
      %p278 = scmp.ne.s32.totalorder %s263, %s277
      %p279 = scmp.eq.s32.totalorder %s38, 0
      %p280 = por %p278, %p279
      %s282 = sadd.s32 %s281, 1
      %p285 = scmp.eq.s32.totalorder %s32, 1
      %p286 = scmp.ne.s32.totalorder %s281, %s283
      %p287 = scmp.eq.s32.totalorder %s32, 0
      %p288 = por %p286, %p287
      %p289 = scmp.ne.s32.totalorder %s281, %s283
      %p290 = scmp.eq.s32.totalorder %s37, 1
      %p291 = por %p289, %p290
      %p292 = scmp.ne.s32.totalorder %s283, %s284
      %p293 = scmp.eq.s32.totalorder %s37, 0
      %p294 = por %p292, %p293
      %p295 = scmp.ne.s32.totalorder %s283, %s284
      %p296 = scmp.eq.s32.totalorder %s38, 1
      %p297 = por %p295, %p296
      %p299 = scmp.ne.s32.totalorder %s284, %s298
      %p300 = scmp.eq.s32.totalorder %s38, 0
      %p301 = por %p299, %p300
      %s303 = sadd.s32 %s302, 1
      %p306 = scmp.eq.s32.totalorder %s32, 1
      %p307 = scmp.ne.s32.totalorder %s302, %s304
      %p308 = scmp.eq.s32.totalorder %s32, 0
      %p309 = por %p307, %p308
      %p310 = scmp.ne.s32.totalorder %s302, %s304
      %p311 = scmp.eq.s32.totalorder %s37, 1
      %p312 = por %p310, %p311
      %p313 = scmp.ne.s32.totalorder %s304, %s305
      %p314 = scmp.eq.s32.totalorder %s37, 0
      %p315 = por %p313, %p314
      %p316 = scmp.ne.s32.totalorder %s304, %s305
      %p317 = scmp.eq.s32.totalorder %s38, 1
      %p318 = por %p316, %p317
      %p320 = scmp.ne.s32.totalorder %s305, %s319
      %p321 = scmp.eq.s32.totalorder %s38, 0
      %p322 = por %p320, %p321
      %s323 = ssub.s32 %s41, %s50
      %p324 = scmp.eq.s32.totalorder %s323, 0
      %s326 = sadd.s32 %s325, 1
      %s327 = scalar_select %p324, %s325, %s326
      %p330 = pneg %p324
      %p331 = scmp.eq.s32.totalorder %s32, 1
      %p332 = por %p330, %p331
      %p333 = scmp.ne.s32.totalorder %s325, %s328
      %p334 = scmp.eq.s32.totalorder %s32, 0
      %p335 = por %p333, %p334
      %p336 = scmp.ne.s32.totalorder %s325, %s328
      %p337 = scmp.eq.s32.totalorder %s37, 1
      %p338 = por %p336, %p337
      %p339 = scmp.ne.s32.totalorder %s328, %s329
      %p340 = scmp.eq.s32.totalorder %s37, 0
      %p341 = por %p339, %p340
      %p342 = scmp.ne.s32.totalorder %s328, %s329
      %p343 = scmp.eq.s32.totalorder %s38, 1
      %p344 = por %p342, %p343
      %p346 = scmp.ne.s32.totalorder %s329, %s345
      %p347 = scmp.eq.s32.totalorder %s38, 0
      %p348 = por %p346, %p347
      %s349 = ssub.s32 %s41, %s50
      %p350 = scmp.eq.s32.totalorder %s349, 0
      %s352 = sadd.s32 %s351, 1
      %s353 = scalar_select %p350, %s351, %s352
      %p356 = pneg %p350
      %p357 = scmp.eq.s32.totalorder %s32, 1
      %p358 = por %p356, %p357
      %p359 = scmp.ne.s32.totalorder %s351, %s354
      %p360 = scmp.eq.s32.totalorder %s32, 0
      %p361 = por %p359, %p360
      %p362 = scmp.ne.s32.totalorder %s351, %s354
      %p363 = scmp.eq.s32.totalorder %s37, 1
      %p364 = por %p362, %p363
      %p365 = scmp.ne.s32.totalorder %s354, %s355
      %p366 = scmp.eq.s32.totalorder %s37, 0
      %p367 = por %p365, %p366
      %p368 = scmp.ne.s32.totalorder %s354, %s355
      %p369 = scmp.eq.s32.totalorder %s38, 1
      %p370 = por %p368, %p369
      %p372 = scmp.ne.s32.totalorder %s355, %s371
      %p373 = scmp.eq.s32.totalorder %s38, 0
      %p374 = por %p372, %p373
      %s375 = ssub.s32 %s41, %s50
      %p376 = scmp.eq.s32.totalorder %s375, 0
      %s378 = sadd.s32 %s377, 1
      %s379 = scalar_select %p376, %s377, %s378
      %p382 = pneg %p376
      %p383 = scmp.eq.s32.totalorder %s32, 1
      %p384 = por %p382, %p383
      %p385 = scmp.ne.s32.totalorder %s377, %s380
      %p386 = scmp.eq.s32.totalorder %s32, 0
      %p387 = por %p385, %p386
      %p388 = scmp.ne.s32.totalorder %s377, %s380
      %p389 = scmp.eq.s32.totalorder %s37, 1
      %p390 = por %p388, %p389
      %p391 = scmp.ne.s32.totalorder %s380, %s381
      %p392 = scmp.eq.s32.totalorder %s37, 0
      %p393 = por %p391, %p392
      %p394 = scmp.ne.s32.totalorder %s380, %s381
      %p395 = scmp.eq.s32.totalorder %s38, 1
      %p396 = por %p394, %p395
      %p398 = scmp.ne.s32.totalorder %s381, %s397
      %p399 = scmp.eq.s32.totalorder %s38, 0
      %p400 = por %p398, %p399
      %s402 = sadd.s32 %s401, 1
      %p405 = scmp.eq.s32.totalorder %s32, 1
      %p406 = scmp.ne.s32.totalorder %s401, %s403
      %p407 = scmp.eq.s32.totalorder %s32, 0
      %p408 = por %p406, %p407
      %p409 = scmp.ne.s32.totalorder %s401, %s403
      %p410 = scmp.eq.s32.totalorder %s37, 1
      %p411 = por %p409, %p410
      %p412 = scmp.ne.s32.totalorder %s403, %s404
      %p413 = scmp.eq.s32.totalorder %s37, 0
      %p414 = por %p412, %p413
      %p415 = scmp.ne.s32.totalorder %s403, %s404
      %p416 = scmp.eq.s32.totalorder %s38, 1
      %p417 = por %p415, %p416
      %p419 = scmp.ne.s32.totalorder %s404, %s418
      %p420 = scmp.eq.s32.totalorder %s38, 0
      %p421 = por %p419, %p420
      %s423 = sadd.s32 %s422, 1
      %p426 = scmp.eq.s32.totalorder %s32, 1
      %p427 = scmp.ne.s32.totalorder %s422, %s424
      %p428 = scmp.eq.s32.totalorder %s32, 0
      %p429 = por %p427, %p428
      %p430 = scmp.ne.s32.totalorder %s422, %s424
      %p431 = scmp.eq.s32.totalorder %s37, 1
      %p432 = por %p430, %p431
      %p433 = scmp.ne.s32.totalorder %s424, %s425
      %p434 = scmp.eq.s32.totalorder %s37, 0
      %p435 = por %p433, %p434
      %p436 = scmp.ne.s32.totalorder %s424, %s425
      %p437 = scmp.eq.s32.totalorder %s38, 1
      %p438 = por %p436, %p437
      %p440 = scmp.ne.s32.totalorder %s425, %s439
      %p441 = scmp.eq.s32.totalorder %s38, 0
      %p442 = por %p440, %p441
      %s444 = sadd.s32 %s443, 1
      %p447 = scmp.eq.s32.totalorder %s32, 1
      %p448 = scmp.ne.s32.totalorder %s443, %s445
      %p449 = scmp.eq.s32.totalorder %s32, 0
      %p450 = por %p448, %p449
      %p451 = scmp.ne.s32.totalorder %s443, %s445
      %p452 = scmp.eq.s32.totalorder %s37, 1
      %p453 = por %p451, %p452
      %p454 = scmp.ne.s32.totalorder %s445, %s446
      %p455 = scmp.eq.s32.totalorder %s37, 0
      %p456 = por %p454, %p455
      %p457 = scmp.ne.s32.totalorder %s445, %s446
      %p458 = scmp.eq.s32.totalorder %s38, 1
      %p459 = por %p457, %p458
      %p461 = scmp.ne.s32.totalorder %s446, %s460
      %p462 = scmp.eq.s32.totalorder %s38, 0
      %p463 = por %p461, %p462
      %s464 = ssub.s32 %s39, %s58
      %s465 = ssub.s32 %s40, %s54
      %s466 = sor.u32 %s464, %s465
      %p467 = scmp.eq.s32.totalorder %s466, 0
      %s469 = sadd.s32 %s468, 1
      %s470 = scalar_select %p467, %s468, %s469
      %p473 = pneg %p467
      %p474 = scmp.eq.s32.totalorder %s32, 1
      %p475 = por %p473, %p474
      %p476 = scmp.ne.s32.totalorder %s468, %s471
      %p477 = scmp.eq.s32.totalorder %s32, 0
      %p478 = por %p476, %p477
      %p479 = scmp.ne.s32.totalorder %s468, %s471
      %p480 = scmp.eq.s32.totalorder %s37, 1
      %p481 = por %p479, %p480
      %p482 = scmp.ne.s32.totalorder %s471, %s472
      %p483 = scmp.eq.s32.totalorder %s37, 0
      %p484 = por %p482, %p483
      %p485 = scmp.ne.s32.totalorder %s471, %s472
      %p486 = scmp.eq.s32.totalorder %s38, 1
      %p487 = por %p485, %p486
      %p489 = scmp.ne.s32.totalorder %s472, %s488
      %p490 = scmp.eq.s32.totalorder %s38, 0
      %p491 = por %p489, %p490
      %p492 = scmp.le.s32.totalorder 1, %s32
      %p493 = scmp.lt.s32.totalorder %s32, 3
      %p494 = pnand %p492, %p493
      %p495 = pneg %p494
      // Predicated region
      $region9: #{tpu_custom_call.1} parent=5 // pred_check
        _
      $region10: #{tpu_custom_call.1} parent=5 // pred_check_branch
        %497 = sbr.rel (%p494) target = $region12
      $region11: #{tpu_custom_call.1} parent=5 // pred_region
        %s498 = ssub.s32 %s32, 1
        // Predicated region
        $region13: #{tpu_custom_call.1} parent=11 // pred_check
          %p499 = pneg %p126
        $region14: #{tpu_custom_call.1} parent=11 // pred_check_branch
          %501 = sbr.rel (%p499) target = $region16
        $region15: #{tpu_custom_call.1} parent=11 // pred_region
          _
        $region16: #{tpu_custom_call.1} parent=11 // pred_fallthru
          _
        // Predicated region
        $region17: #{tpu_custom_call.1} parent=11 // pred_check
          %p502 = pneg %p147
        $region18: #{tpu_custom_call.1} parent=11 // pred_check_branch
          %504 = sbr.rel (%p502) target = $region20
        $region19: #{tpu_custom_call.1} parent=11 // pred_region
          _
        $region20: #{tpu_custom_call.1} parent=11 // pred_fallthru
          _
        // Predicated region
        $region21: #{tpu_custom_call.1} parent=11 // pred_check
          %p505 = pneg %p168
        $region22: #{tpu_custom_call.1} parent=11 // pred_check_branch
          %507 = sbr.rel (%p505) target = $region24
        $region23: #{tpu_custom_call.1} parent=11 // pred_region
          _
        $region24: #{tpu_custom_call.1} parent=11 // pred_fallthru
          _
        // Predicated region
        $region25: #{tpu_custom_call.1} parent=11 // pred_check
          %p508 = pneg %p189
        $region26: #{tpu_custom_call.1} parent=11 // pred_check_branch
          %510 = sbr.rel (%p508) target = $region28
        $region27: #{tpu_custom_call.1} parent=11 // pred_region
          _
        $region28: #{tpu_custom_call.1} parent=11 // pred_fallthru
          _
        // Predicated region
        $region29: #{tpu_custom_call.1} parent=11 // pred_check
          %p511 = pneg %p210
        $region30: #{tpu_custom_call.1} parent=11 // pred_check_branch
          %513 = sbr.rel (%p511) target = $region32
        $region31: #{tpu_custom_call.1} parent=11 // pred_region
          %s515 = ssub.s32 256, 256
          %516 = vsyncadd [#allocation10], %s515
          %s517 = sshll.u32 [#allocation9], 4
          %s518 = int_to_ptr.vmem [resolvable:$true] %s517
          %523 = dma.hbm_to_vmem [thread:$0]  %s6, 256, %s518, [#allocation10], 64, 64, 4
        $region32: #{tpu_custom_call.1} parent=11 // pred_fallthru
          _
        // Predicated region
        $region33: #{tpu_custom_call.1} parent=11 // pred_check
          %p524 = pneg %p231
        $region34: #{tpu_custom_call.1} parent=11 // pred_check_branch
          %526 = sbr.rel (%p524) target = $region36
        $region35: #{tpu_custom_call.1} parent=11 // pred_region
          %s528 = ssub.s32 16, 16
          %529 = vsyncadd [#allocation10], %s528
          %s531 = sshll.u32 [#allocation11], 4
          %s532 = int_to_ptr.vmem [resolvable:$true] %s531
          %534 = dma.hbm_to_vmem [thread:$0]  %s7, 16, %s532, [#allocation10]
        $region36: #{tpu_custom_call.1} parent=11 // pred_fallthru
          _
        // Predicated region
        $region37: #{tpu_custom_call.1} parent=11 // pred_check
          %p535 = pneg %p252
        $region38: #{tpu_custom_call.1} parent=11 // pred_check_branch
          %537 = sbr.rel (%p535) target = $region40
        $region39: #{tpu_custom_call.1} parent=11 // pred_region
          %s539 = ssub.s32 256, 256
          %540 = vsyncadd [#allocation13], %s539
          %s541 = sshll.u32 [#allocation12], 4
          %s542 = int_to_ptr.vmem [resolvable:$true] %s541
          %547 = dma.hbm_to_vmem [thread:$0]  %s8, 256, %s542, [#allocation13], 64, 64, 4
        $region40: #{tpu_custom_call.1} parent=11 // pred_fallthru
          _
        // Predicated region
        $region41: #{tpu_custom_call.1} parent=11 // pred_check
          %p548 = pneg %p273
        $region42: #{tpu_custom_call.1} parent=11 // pred_check_branch
          %550 = sbr.rel (%p548) target = $region44
        $region43: #{tpu_custom_call.1} parent=11 // pred_region
          %s552 = ssub.s32 16, 16
          %553 = vsyncadd [#allocation13], %s552
          %s555 = sshll.u32 [#allocation14], 4
          %s556 = int_to_ptr.vmem [resolvable:$true] %s555
          %558 = dma.hbm_to_vmem [thread:$0]  %s9, 16, %s556, [#allocation13]
        $region44: #{tpu_custom_call.1} parent=11 // pred_fallthru
          _
        // Predicated region
        $region45: #{tpu_custom_call.1} parent=11 // pred_check
          %p559 = pneg %p294
        $region46: #{tpu_custom_call.1} parent=11 // pred_check_branch
          %561 = sbr.rel (%p559) target = $region48
        $region47: #{tpu_custom_call.1} parent=11 // pred_region
          _
        $region48: #{tpu_custom_call.1} parent=11 // pred_fallthru
          _
        // Predicated region
        $region49: #{tpu_custom_call.1} parent=11 // pred_check
          %p562 = pneg %p315
        $region50: #{tpu_custom_call.1} parent=11 // pred_check_branch
          %564 = sbr.rel (%p562) target = $region52
        $region51: #{tpu_custom_call.1} parent=11 // pred_region
          _
        $region52: #{tpu_custom_call.1} parent=11 // pred_fallthru
          _
        // Predicated region
        $region53: #{tpu_custom_call.1} parent=11 // pred_check
          %p565 = pneg %p341
        $region54: #{tpu_custom_call.1} parent=11 // pred_check_branch
          %567 = sbr.rel (%p565) target = $region56
        $region55: #{tpu_custom_call.1} parent=11 // pred_region
          %p568 = scmp.lt.s32.totalorder %s44, 0
          %s569 = scalar_select %p568, %s44, 0
          %s570 = smul.addr %s569, 4
          %s571 = scalar_lea.vmem %s12, %s570
        $region56: #{tpu_custom_call.1} parent=11 // pred_fallthru
          _
        // Predicated region
        $region57: #{tpu_custom_call.1} parent=11 // pred_check
          %p572 = pneg %p367
        $region58: #{tpu_custom_call.1} parent=11 // pred_check_branch
          %574 = sbr.rel (%p572) target = $region60
        $region59: #{tpu_custom_call.1} parent=11 // pred_region
          %p575 = scmp.lt.s32.totalorder %s44, 0
          %s576 = scalar_select %p575, %s44, 0
          %s577 = scalar_lea.vmem %s13, %s576
        $region60: #{tpu_custom_call.1} parent=11 // pred_fallthru
          _
        // Predicated region
        $region61: #{tpu_custom_call.1} parent=11 // pred_check
          %p578 = pneg %p393
        $region62: #{tpu_custom_call.1} parent=11 // pred_check_branch
          %580 = sbr.rel (%p578) target = $region64
        $region63: #{tpu_custom_call.1} parent=11 // pred_region
          %s581 = smul.u32 8, %s44
          %p582 = scmp.lt.s32.totalorder %s581, 7
          %s583 = scalar_select %p582, %s581, 7
          %s584 = smul.addr %s583, 4
          %s585 = scalar_lea.vmem %s14, %s584
          %s586 = smul.u32 8, %s44
        $region64: #{tpu_custom_call.1} parent=11 // pred_fallthru
          _
        // Predicated region
        $region65: #{tpu_custom_call.1} parent=11 // pred_check
          %p587 = pneg %p414
        $region66: #{tpu_custom_call.1} parent=11 // pred_check_branch
          %589 = sbr.rel (%p587) target = $region68
        $region67: #{tpu_custom_call.1} parent=11 // pred_region
          _
        $region68: #{tpu_custom_call.1} parent=11 // pred_fallthru
          _
        // Predicated region
        $region69: #{tpu_custom_call.1} parent=11 // pred_check
          %p590 = pneg %p435
        $region70: #{tpu_custom_call.1} parent=11 // pred_check_branch
          %592 = sbr.rel (%p590) target = $region72
        $region71: #{tpu_custom_call.1} parent=11 // pred_region
          _
        $region72: #{tpu_custom_call.1} parent=11 // pred_fallthru
          _
        // Predicated region
        $region73: #{tpu_custom_call.1} parent=11 // pred_check
          %p593 = pneg %p456
        $region74: #{tpu_custom_call.1} parent=11 // pred_check_branch
          %595 = sbr.rel (%p593) target = $region76
        $region75: #{tpu_custom_call.1} parent=11 // pred_region
          _
        $region76: #{tpu_custom_call.1} parent=11 // pred_fallthru
          _
      $region12: #{tpu_custom_call.1} parent=5 // pred_fallthru
        _
      %p596 = scmp.lt.s32.totalorder %s32, 2
      // Predicated region
      $region77: #{tpu_custom_call.1} parent=5 // pred_check
        %p597 = pneg %p596
      $region78: #{tpu_custom_call.1} parent=5 // pred_check_branch
        %599 = sbr.rel (%p597) target = $region80
      $region79: #{tpu_custom_call.1} parent=5 // pred_region
        // Predicated region
        $region81: #{tpu_custom_call.1} parent=79 // pred_check
          %p600 = pneg %p73
        $region82: #{tpu_custom_call.1} parent=79 // pred_check_branch
          %602 = sbr.rel (%p600) target = $region84
        $region83: #{tpu_custom_call.1} parent=79 // pred_region
          %p603 = scmp.lt.s32.totalorder %s39, 1
          %s604 = scalar_select %p603, %s39, 1
          %p605 = scmp.lt.s32.totalorder %s40, 0
          %s606 = scalar_select %p605, %s40, 0
          %s607 = sadd.s32 %s606, %s604
          %s608 = smul.addr %s607, 8
          %s609 = scalar_lea.vmem %s0, %s608
        $region84: #{tpu_custom_call.1} parent=79 // pred_fallthru
          _
        // Predicated region
        $region85: #{tpu_custom_call.1} parent=79 // pred_check
          %p610 = pneg %p99
        $region86: #{tpu_custom_call.1} parent=79 // pred_check_branch
          %612 = sbr.rel (%p610) target = $region88
        $region87: #{tpu_custom_call.1} parent=79 // pred_region
          %s613 = sand.u32 %s89, 1
          %s614 = scalar_lea.sflag [#allocation7], %s613
          %s615 = sand.u32 %s89, 1
          %s616 = smul.addr %s615, 4
          %s617 = scalar_lea.vmem [#allocation6], %s616
          %s619 = ssub.s32 64, 64
          %620 = vsyncadd %s614, %s619
          %s621 = smul.addr %s39, 64
          %s622 = scalar_lea.hbm %s1, %s621
          %s624 = sshll.u32 %s617, 4
          %s625 = int_to_ptr.vmem [resolvable:$true] %s624
          %627 = dma.hbm_to_vmem [thread:$0]  %s622, 64, %s625, %s614
        $region88: #{tpu_custom_call.1} parent=79 // pred_fallthru
          _
      $region80: #{tpu_custom_call.1} parent=5 // pred_fallthru
        _
      %p628 = scmp.le.s32.totalorder 1, %s32
      %p629 = scmp.lt.s32.totalorder %s32, 3
      %p630 = pnand %p628, %p629
      %p631 = pneg %p630
      // Predicated region
      $region89: #{tpu_custom_call.1} parent=5 // pred_check
        _
      $region90: #{tpu_custom_call.1} parent=5 // pred_check_branch
        %633 = sbr.rel (%p630) target = $region92
      $region91: #{tpu_custom_call.1} parent=5 // pred_region
        %s634 = ssub.s32 %s32, 1
        %s635 = sand.u32 %s92, 1
        %s636 = scalar_lea.sflag [#allocation7], %s635
        %s637 = sand.u32 %s92, 1
        %s638 = smul.addr %s637, 4
        %s639 = scalar_lea.vmem [#allocation6], %s638
        // Predicated region
        $region93: #{tpu_custom_call.1} parent=91 // pred_check
          %p640 = pneg %p105
        $region94: #{tpu_custom_call.1} parent=91 // pred_check_branch
          %642 = sbr.rel (%p640) target = $region96
        $region95: #{tpu_custom_call.1} parent=91 // pred_region
          %643 = dma.done %s636, 64
        $region96: #{tpu_custom_call.1} parent=91 // pred_fallthru
          _
        // Predicated region
        $region97: #{tpu_custom_call.1} parent=91 // pred_check
          %p644 = pneg %p210
        $region98: #{tpu_custom_call.1} parent=91 // pred_check_branch
          %646 = sbr.rel (%p644) target = $region100
        $region99: #{tpu_custom_call.1} parent=91 // pred_region
          %647 = dma.done [#allocation10], 256
        $region100: #{tpu_custom_call.1} parent=91 // pred_fallthru
          _
        // Predicated region
        $region101: #{tpu_custom_call.1} parent=91 // pred_check
          %p648 = pneg %p231
        $region102: #{tpu_custom_call.1} parent=91 // pred_check_branch
          %650 = sbr.rel (%p648) target = $region104
        $region103: #{tpu_custom_call.1} parent=91 // pred_region
          %651 = dma.done [#allocation10], 16
        $region104: #{tpu_custom_call.1} parent=91 // pred_fallthru
          _
        // Predicated region
        $region105: #{tpu_custom_call.1} parent=91 // pred_check
          %p652 = pneg %p252
        $region106: #{tpu_custom_call.1} parent=91 // pred_check_branch
          %654 = sbr.rel (%p652) target = $region108
        $region107: #{tpu_custom_call.1} parent=91 // pred_region
          %655 = dma.done [#allocation13], 256
        $region108: #{tpu_custom_call.1} parent=91 // pred_fallthru
          _
        // Predicated region
        $region109: #{tpu_custom_call.1} parent=91 // pred_check
          %p656 = pneg %p273
        $region110: #{tpu_custom_call.1} parent=91 // pred_check_branch
          %658 = sbr.rel (%p656) target = $region112
        $region111: #{tpu_custom_call.1} parent=91 // pred_region
          %659 = dma.done [#allocation13], 16
        $region112: #{tpu_custom_call.1} parent=91 // pred_fallthru
          _
        %p660 = scmp.lt.s32.totalorder %s42, 1
        %s661 = scalar_select %p660, %s42, 1
        %p662 = scmp.lt.s32.totalorder %s43, 0
        %s663 = scalar_select %p662, %s43, 0
        %s664 = sadd.s32 %s663, %s661
        %s665 = smul.addr %s664, 8
        %s666 = scalar_lea.vmem %s0, %s665
        %p667 = pneg %p79
        %p668 = pneg %p76
        %s669 = sand.u32 %s92, 1
        %s670 = scalar_lea.sflag [#allocation7], %s669
        %s671 = sand.u32 %s92, 1
        %s672 = smul.addr %s671, 4
        %s673 = scalar_lea.vmem [#allocation6], %s672
        %p674 = pneg %p105
        %p675 = pneg %p102
        %p676 = pneg %p126
        %p677 = pneg %p123
        %p678 = pneg %p147
        %p679 = pneg %p144
        %p680 = pneg %p168
        %p681 = pneg %p165
        %p682 = pneg %p189
        %p683 = pneg %p186
        %p684 = pneg %p210
        %p685 = pneg %p207
        %p686 = pneg %p231
        %p687 = pneg %p228
        %p688 = pneg %p252
        %p689 = pneg %p249
        %p690 = pneg %p273
        %p691 = pneg %p270
        %p692 = pneg %p294
        %p693 = pneg %p291
        %p694 = pneg %p315
        %p695 = pneg %p312
        %p696 = scmp.lt.s32.totalorder %s44, 0
        %s697 = scalar_select %p696, %s44, 0
        %s698 = smul.addr %s697, 4
        %s699 = scalar_lea.vmem %s12, %s698
        %p700 = pneg %p341
        %p701 = pneg %p338
        %p702 = scmp.lt.s32.totalorder %s44, 0
        %s703 = scalar_select %p702, %s44, 0
        %s704 = scalar_lea.vmem %s13, %s703
        %p705 = pneg %p367
        %p706 = pneg %p364
        %s707 = smul.u32 8, %s44
        %p708 = scmp.lt.s32.totalorder %s707, 7
        %s709 = scalar_select %p708, %s707, 7
        %s710 = smul.addr %s709, 4
        %s711 = scalar_lea.vmem %s14, %s710
        %p712 = pneg %p393
        %p713 = pneg %p390
        %p714 = pneg %p414
        %p715 = pneg %p411
        %p716 = pneg %p435
        %p717 = pneg %p432
        %p718 = pneg %p456
        %p719 = pneg %p453
        %p720 = pneg %p484
        %p721 = pneg %p481
        %s722 = sand.u32 %s471, 1
        %s723 = scalar_lea.sflag [#allocation8], %s722
        %s724 = sand.u32 %s471, 1
        %s725 = smul.addr %s724, 8
        %s726 = scalar_lea.vmem [#allocation15], %s725
        %p727 = scmp.lt.s32.totalorder %s42, 1
        %s728 = scalar_select %p727, %s42, 1
        %p729 = scmp.lt.s32.totalorder %s43, 0
        %s730 = scalar_select %p729, %s43, 0
        %s731 = sadd.s32 %s730, %s728
        %s732 = smul.addr %s731, 8
        %s733 = scalar_lea.vmem %s0, %s732
        %p734 = scmp.lt.s32.totalorder %s44, 0
        %s735 = scalar_select %p734, %s44, 0
        %s736 = smul.addr %s735, 4
        %s737 = scalar_lea.vmem %s12, %s736
        %p738 = scmp.lt.s32.totalorder %s44, 0
        %s739 = scalar_select %p738, %s44, 0
        %s740 = scalar_lea.vmem %s13, %s739
        %s741 = smul.u32 8, %s44
        %p742 = scmp.lt.s32.totalorder %s741, 7
        %s743 = scalar_select %p742, %s741, 7
        %s744 = smul.addr %s743, 4
        %s745 = scalar_lea.vmem %s14, %s744
        %s746 = smul.u32 8, %s44
        %p748 = scmp.eq.s32.totalorder %s43, 0
        %p749 = scmp.eq.s32.totalorder %s44, 0
        %p750 = pnand %p748, %p749
        %p751 = pneg %p750
        // Predicated region
        $region113: #{tpu_custom_call.1} parent=91 // pred_check
          _
        $region114: #{tpu_custom_call.1} parent=91 // pred_check_branch
          %753 = sbr.rel (%p750) target = $region116
        $region115: #{tpu_custom_call.1} parent=91 // pred_region
          %v754 = vld [vmem:[%s639] sm:$0xf]
          %v755 = vld [vmem:[%s4] sm:$0xf]
          %v756 = vld [vmem:[%s4 + $0x4] sm:$0xf]
          %v757 = vld [vmem:[%s4 + $0x8] sm:$0xf]
          %v758 = vld [vmem:[%s4 + $0xc] sm:$0xf]
          %v759 = vld [vmem:[%s5] sm:$0x1]
          %v761 = vlaneseq
          %v762 = vshrl.u32 %v761, 7
          %v763 = vsub.s32 0, %v762
          %v764 = vrot.slane %v759, %v763
          %v770 = vunpack.c.l.b16 %v755
          %v771 = vunpack.c.l.b16 %v756
          %v772 = vunpack.c.l.b16 %v757
          %v773 = vunpack.c.l.b16 %v758
          %v774 = vpack.c.b16 %v771, %v770
          %v775 = vpack.c.b16 %v773, %v772
          %vm778 = vcmask 261120
          %v780 = vsel %vm778, %v754, 0
          %782 = vmatprep.subr.bf16.mxu0 0
          %783 = vmatpush1.bf16.msra.mxu0 %v774
          %784 = vmatprep.subr.bf16.mxu0 0
          %785 = vmatpush1.bf16.msra.mxu0 %v775
          %786 = vmatprep.subr.bf16.mxu0 0
          %787 = vmatpush1.bf16.msra.mxu0 0
          %788 = vmatprep.subr.bf16.mxu0 0
          %789 = vmatpush1.bf16.msra.mxu0 0
          %790 = vmatprep.subr.bf16.mxu0 0
          %791 = vmatpush1.bf16.msra.mxu0 0
          %792 = vmatprep.subr.bf16.mxu0 0
          %793 = vmatpush1.bf16.msra.mxu0 0
          %794 = vmatprep.subr.bf16.mxu0 0
          %795 = vmatpush1.bf16.msra.mxu0 0
          %796 = vmatprep.subr.bf16.mxu0 0
          %797 = vmatpush1.bf16.msra.mxu0 0
          %798 = vmatprep.subr.bf16.mxu0 0
          %799 = vmatpush1.bf16.msra.mxu0 0
          %800 = vmatprep.subr.bf16.mxu0 0
          %801 = vmatpush1.bf16.msra.mxu0 0
          %802 = vmatprep.subr.bf16.mxu0 0
          %803 = vmatpush1.bf16.msra.mxu0 0
          %804 = vmatprep.subr.bf16.mxu0 0
          %805 = vmatpush1.bf16.msra.mxu0 0
          %806 = vmatprep.subr.bf16.mxu0 0
          %807 = vmatpush1.bf16.msra.mxu0 0
          %808 = vmatprep.subr.bf16.mxu0 0
          %809 = vmatpush1.bf16.msra.mxu0 0
          %810 = vmatprep.subr.bf16.mxu0 0
          %811 = vmatpush1.bf16.msra.mxu0 0
          %812 = vmatprep.subr.bf16.mxu0 0
          %813 = vmatpush1.bf16.msra.mxu0 0
          %814 = vmatprep.mubr.bf16.mxu0 0
          %815 = vmatmul.mubr.bf16.gmra.mrb[0].mxu0 %v780
          %v816 = vpop.f32.mrb[0].mxu0
          %v817 = vadd.f32 %v764, %v816
          %v818 = vpop.f32.mrb[0].mxu0
          %v819 = vpop.f32.mrb[0].mxu0
          %v820 = vpop.f32.mrb[0].mxu0
          %821 = vdwg.mxu0
          %v822 = vld [vmem:[#allocation9] sm:$0xf]
          %v823 = vld [vmem:[#allocation9 + $0x4] sm:$0xf]
          %v824 = vld [vmem:[#allocation9 + $0x8] sm:$0xf]
          %v825 = vld [vmem:[#allocation9 + $0xc] sm:$0xf]
          %v826 = vld [vmem:[#allocation11] sm:$0x1]
          %v828 = vlaneseq
          %v829 = vshrl.u32 %v828, 7
          %v830 = vsub.s32 0, %v829
          %v831 = vrot.slane %v826, %v830
          %v837 = vunpack.c.l.b16 %v822
          %v838 = vunpack.c.l.b16 %v823
          %v839 = vunpack.c.l.b16 %v824
          %v840 = vunpack.c.l.b16 %v825
          %v841 = vpack.c.b16 %v838, %v837
          %v842 = vpack.c.b16 %v840, %v839
          %845 = vmatprep.subr.bf16.mxu0 0
          %846 = vmatpush1.bf16.msra.mxu0 %v841
          %847 = vmatprep.subr.bf16.mxu0 0
          %848 = vmatpush1.bf16.msra.mxu0 %v842
          %849 = vmatprep.subr.bf16.mxu0 0
          %850 = vmatpush1.bf16.msra.mxu0 0
          %851 = vmatprep.subr.bf16.mxu0 0
          %852 = vmatpush1.bf16.msra.mxu0 0
          %853 = vmatprep.subr.bf16.mxu0 0
          %854 = vmatpush1.bf16.msra.mxu0 0
          %855 = vmatprep.subr.bf16.mxu0 0
          %856 = vmatpush1.bf16.msra.mxu0 0
          %857 = vmatprep.subr.bf16.mxu0 0
          %858 = vmatpush1.bf16.msra.mxu0 0
          %859 = vmatprep.subr.bf16.mxu0 0
          %860 = vmatpush1.bf16.msra.mxu0 0
          %861 = vmatprep.subr.bf16.mxu0 0
          %862 = vmatpush1.bf16.msra.mxu0 0
          %863 = vmatprep.subr.bf16.mxu0 0
          %864 = vmatpush1.bf16.msra.mxu0 0
          %865 = vmatprep.subr.bf16.mxu0 0
          %866 = vmatpush1.bf16.msra.mxu0 0
          %867 = vmatprep.subr.bf16.mxu0 0
          %868 = vmatpush1.bf16.msra.mxu0 0
          %869 = vmatprep.subr.bf16.mxu0 0
          %870 = vmatpush1.bf16.msra.mxu0 0
          %871 = vmatprep.subr.bf16.mxu0 0
          %872 = vmatpush1.bf16.msra.mxu0 0
          %873 = vmatprep.subr.bf16.mxu0 0
          %874 = vmatpush1.bf16.msra.mxu0 0
          %875 = vmatprep.subr.bf16.mxu0 0
          %876 = vmatpush1.bf16.msra.mxu0 0
          %877 = vmatprep.mubr.bf16.mxu0 0
          %878 = vmatmul.mubr.bf16.gmra.mrb[0].mxu0 %v780
          %v879 = vpop.f32.mrb[0].mxu0
          %v880 = vadd.f32 %v831, %v879
          %v881 = vpop.f32.mrb[0].mxu0
          %v882 = vpop.f32.mrb[0].mxu0
          %v883 = vpop.f32.mrb[0].mxu0
          %884 = vdwg.mxu0
          %v885 = vpack.c.bf16 %v817, %v817
          %vm886 = vcmask 257024
          %887 = vst.msk [vmem:[#allocation2] sm:$0xf] %vm886, %v885
          %v888 = vpack.c.bf16 %v880, %v880
          %889 = vst.msk [vmem:[#allocation3] sm:$0xf] %vm886, %v888
        $region116: #{tpu_custom_call.1} parent=91 // pred_fallthru
          _
        // Predicated region
        $region117: #{tpu_custom_call.1} parent=91 // pred_check
          %p890 = pneg %p749
        $region118: #{tpu_custom_call.1} parent=91 // pred_check_branch
          %892 = sbr.rel (%p890) target = $region120
        $region119: #{tpu_custom_call.1} parent=91 // pred_region
          %v893 = vld [vmem:[%s733] sm:$0xff]
          %v894 = vpack.c.bf16 %v893, %v893
          %v895 = vld [vmem:[%s2] sm:$0xf]
          %v896 = vld [vmem:[%s2 + $0x4] sm:$0xf]
          %v897 = vld [vmem:[%s2 + $0x8] sm:$0xf]
          %v898 = vld [vmem:[%s2 + $0xc] sm:$0xf]
          %v899 = vld [vmem:[%s3] sm:$0x1]
          %v901 = vlaneseq
          %v902 = vshrl.u32 %v901, 7
          %v903 = vsub.s32 0, %v902
          %v904 = vrot.slane %v899, %v903
          %v910 = vunpack.c.l.b16 %v895
          %v911 = vunpack.c.l.b16 %v896
          %v912 = vunpack.c.l.b16 %v897
          %v913 = vunpack.c.l.b16 %v898
          %v914 = vpack.c.b16 %v911, %v910
          %v915 = vpack.c.b16 %v913, %v912
          %vm918 = vcmask 261120
          %v920 = vsel %vm918, %v894, 0
          %922 = vmatprep.subr.bf16.mxu0 0
          %923 = vmatpush1.bf16.msra.mxu0 %v914
          %924 = vmatprep.subr.bf16.mxu0 0
          %925 = vmatpush1.bf16.msra.mxu0 %v915
          %926 = vmatprep.subr.bf16.mxu0 0
          %927 = vmatpush1.bf16.msra.mxu0 0
          %928 = vmatprep.subr.bf16.mxu0 0
          %929 = vmatpush1.bf16.msra.mxu0 0
          %930 = vmatprep.subr.bf16.mxu0 0
          %931 = vmatpush1.bf16.msra.mxu0 0
          %932 = vmatprep.subr.bf16.mxu0 0
          %933 = vmatpush1.bf16.msra.mxu0 0
          %934 = vmatprep.subr.bf16.mxu0 0
          %935 = vmatpush1.bf16.msra.mxu0 0
          %936 = vmatprep.subr.bf16.mxu0 0
          %937 = vmatpush1.bf16.msra.mxu0 0
          %938 = vmatprep.subr.bf16.mxu0 0
          %939 = vmatpush1.bf16.msra.mxu0 0
          %940 = vmatprep.subr.bf16.mxu0 0
          %941 = vmatpush1.bf16.msra.mxu0 0
          %942 = vmatprep.subr.bf16.mxu0 0
          %943 = vmatpush1.bf16.msra.mxu0 0
          %944 = vmatprep.subr.bf16.mxu0 0
          %945 = vmatpush1.bf16.msra.mxu0 0
          %946 = vmatprep.subr.bf16.mxu0 0
          %947 = vmatpush1.bf16.msra.mxu0 0
          %948 = vmatprep.subr.bf16.mxu0 0
          %949 = vmatpush1.bf16.msra.mxu0 0
          %950 = vmatprep.subr.bf16.mxu0 0
          %951 = vmatpush1.bf16.msra.mxu0 0
          %952 = vmatprep.subr.bf16.mxu0 0
          %953 = vmatpush1.bf16.msra.mxu0 0
          %954 = vmatprep.mubr.bf16.mxu0 0
          %955 = vmatmul.mubr.bf16.gmra.mrb[0].mxu0 %v920
          %v956 = vpop.f32.mrb[0].mxu0
          %v957 = vadd.f32 %v904, %v956
          %v958 = vpop.f32.mrb[0].mxu0
          %v959 = vpop.f32.mrb[0].mxu0
          %v960 = vpop.f32.mrb[0].mxu0
          %961 = vdwg.mxu0
          %v962 = vmul.f32 %v957, 0.35355338
          %v963 = vpack.c.bf16 %v962, %v962
          %v964 = vld [vmem:[#allocation2] sm:$0xf]
          %v965 = vld [vmem:[#allocation3] sm:$0xf]
          %vm966 = vcmask 64512
          %v968 = vsel %vm966, %v963, 0
          %v971 = vsel %vm966, %v964, 0
          %973 = vmatprep.subr.bf16.mxu0 0
          %974 = vmatpush1.bf16.xpose.msra.mxu0 %v971
          %975 = vmatprep.subr.bf16.mxu0 0
          %976 = vmatpush1.bf16.xpose.msra.mxu0 0
          %977 = vmatprep.subr.bf16.mxu0 0
          %978 = vmatpush1.bf16.xpose.msra.mxu0 0
          %979 = vmatprep.subr.bf16.mxu0 0
          %980 = vmatpush1.bf16.xpose.msra.mxu0 0
          %981 = vmatprep.subr.bf16.mxu0 0
          %982 = vmatpush1.bf16.xpose.msra.mxu0 0
          %983 = vmatprep.subr.bf16.mxu0 0
          %984 = vmatpush1.bf16.xpose.msra.mxu0 0
          %985 = vmatprep.subr.bf16.mxu0 0
          %986 = vmatpush1.bf16.xpose.msra.mxu0 0
          %987 = vmatprep.subr.bf16.mxu0 0
          %988 = vmatpush1.bf16.xpose.msra.mxu0 0
          %989 = vmatprep.subr.bf16.mxu0 0
          %990 = vmatpush1.bf16.xpose.msra.mxu0 0
          %991 = vmatprep.subr.bf16.mxu0 0
          %992 = vmatpush1.bf16.xpose.msra.mxu0 0
          %993 = vmatprep.subr.bf16.mxu0 0
          %994 = vmatpush1.bf16.xpose.msra.mxu0 0
          %995 = vmatprep.subr.bf16.mxu0 0
          %996 = vmatpush1.bf16.xpose.msra.mxu0 0
          %997 = vmatprep.subr.bf16.mxu0 0
          %998 = vmatpush1.bf16.xpose.msra.mxu0 0
          %999 = vmatprep.subr.bf16.mxu0 0
          %1000 = vmatpush1.bf16.xpose.msra.mxu0 0
          %1001 = vmatprep.subr.bf16.mxu0 0
          %1002 = vmatpush1.bf16.xpose.msra.mxu0 0
          %1003 = vmatprep.subr.bf16.mxu0 0
          %1004 = vmatpush1.bf16.xpose.msra.mxu0 0
          %1005 = vmatprep.mubr.bf16.mxu0 0
          %1006 = vmatmul.mubr.bf16.gmra.mrb[0].mxu0 %v968
          %v1007 = vpop.f32.mrb[0].mxu0
          %v1008 = vadd.f32 0.0, %v1007
          %v1009 = vpop.f32.mrb[0].mxu0
          %v1010 = vpop.f32.mrb[0].mxu0
          %v1011 = vpop.f32.mrb[0].mxu0
          %1012 = vdwg.mxu0
          %v1013 = vsel %vm966, %v1008, -inf
          %1014 = vmax.xlane.f32.xlu0 %v1013
          %v1015 = vpop.xlane.xlu0 %1014
          %v1016 = vsub.f32 %v1008, %v1015
          %v1017 = vmul.f32 %v1016, 1.442695
          %v1018 = vpow.pop %v1017
          %v1019 = vsel %vm966, %v1018, 0.0
          %1020 = vadd.xlane.f32.xlu0 %v1019
          %v1021 = vpop.xlane.xlu0 %1020
          %v1022 = vpack.c.bf16 %v1018, %v1018
          %v1024 = vsel %vm966, %v1022, 0
          %vm1026 = vcmask 1043456
          %v1028 = vsel %vm1026, %v965, 0
          %1030 = vmatprep.subr.bf16.mxu0 0
          %1031 = vmatpush1.bf16.msra.mxu0 %v1028
          %1032 = vmatprep.subr.bf16.mxu0 0
          %1033 = vmatpush1.bf16.msra.mxu0 0
          %1034 = vmatprep.subr.bf16.mxu0 0
          %1035 = vmatpush1.bf16.msra.mxu0 0
          %1036 = vmatprep.subr.bf16.mxu0 0
          %1037 = vmatpush1.bf16.msra.mxu0 0
          %1038 = vmatprep.subr.bf16.mxu0 0
          %1039 = vmatpush1.bf16.msra.mxu0 0
          %1040 = vmatprep.subr.bf16.mxu0 0
          %1041 = vmatpush1.bf16.msra.mxu0 0
          %1042 = vmatprep.subr.bf16.mxu0 0
          %1043 = vmatpush1.bf16.msra.mxu0 0
          %1044 = vmatprep.subr.bf16.mxu0 0
          %1045 = vmatpush1.bf16.msra.mxu0 0
          %1046 = vmatprep.subr.bf16.mxu0 0
          %1047 = vmatpush1.bf16.msra.mxu0 0
          %1048 = vmatprep.subr.bf16.mxu0 0
          %1049 = vmatpush1.bf16.msra.mxu0 0
          %1050 = vmatprep.subr.bf16.mxu0 0
          %1051 = vmatpush1.bf16.msra.mxu0 0
          %1052 = vmatprep.subr.bf16.mxu0 0
          %1053 = vmatpush1.bf16.msra.mxu0 0
          %1054 = vmatprep.subr.bf16.mxu0 0
          %1055 = vmatpush1.bf16.msra.mxu0 0
          %1056 = vmatprep.subr.bf16.mxu0 0
          %1057 = vmatpush1.bf16.msra.mxu0 0
          %1058 = vmatprep.subr.bf16.mxu0 0
          %1059 = vmatpush1.bf16.msra.mxu0 0
          %1060 = vmatprep.subr.bf16.mxu0 0
          %1061 = vmatpush1.bf16.msra.mxu0 0
          %1062 = vmatprep.mubr.bf16.mxu0 0
          %1063 = vmatmul.mubr.bf16.gmra.mrb[0].mxu0 %v1024
          %v1064 = vpop.f32.mrb[0].mxu0
          %v1065 = vadd.f32 0.0, %v1064
          %v1066 = vpop.f32.mrb[0].mxu0
          %v1067 = vpop.f32.mrb[0].mxu0
          %v1068 = vpop.f32.mrb[0].mxu0
          %1069 = vdwg.mxu0
          %v1070 = vrcp.pop %v1021
          %v1071 = vmul.f32 %v1065, %v1070
          %1073 = vrot.lane.b32.xlu0 %v963, 120
          %v1074 = vpop.permute.xlu0 %1073
          %v1076 = vunpack.c.l.b16 %v964
          %v1077 = vpack.c.b16 %v1076, %v1076
          %1078 = vrot.lane.b32.xlu0 %v1077, 120
          %v1079 = vpop.permute.xlu0 %1078
          %v1081 = vsel %vm966, %v1074, 0
          %v1084 = vsel %vm966, %v1079, 0
          %1086 = vmatprep.subr.bf16.mxu0 0
          %1087 = vmatpush1.bf16.xpose.msra.mxu0 %v1084
          %1088 = vmatprep.subr.bf16.mxu0 0
          %1089 = vmatpush1.bf16.xpose.msra.mxu0 0
          %1090 = vmatprep.subr.bf16.mxu0 0
          %1091 = vmatpush1.bf16.xpose.msra.mxu0 0
          %1092 = vmatprep.subr.bf16.mxu0 0
          %1093 = vmatpush1.bf16.xpose.msra.mxu0 0
          %1094 = vmatprep.subr.bf16.mxu0 0
          %1095 = vmatpush1.bf16.xpose.msra.mxu0 0
          %1096 = vmatprep.subr.bf16.mxu0 0
          %1097 = vmatpush1.bf16.xpose.msra.mxu0 0
          %1098 = vmatprep.subr.bf16.mxu0 0
          %1099 = vmatpush1.bf16.xpose.msra.mxu0 0
          %1100 = vmatprep.subr.bf16.mxu0 0
          %1101 = vmatpush1.bf16.xpose.msra.mxu0 0
          %1102 = vmatprep.subr.bf16.mxu0 0
          %1103 = vmatpush1.bf16.xpose.msra.mxu0 0
          %1104 = vmatprep.subr.bf16.mxu0 0
          %1105 = vmatpush1.bf16.xpose.msra.mxu0 0
          %1106 = vmatprep.subr.bf16.mxu0 0
          %1107 = vmatpush1.bf16.xpose.msra.mxu0 0
          %1108 = vmatprep.subr.bf16.mxu0 0
          %1109 = vmatpush1.bf16.xpose.msra.mxu0 0
          %1110 = vmatprep.subr.bf16.mxu0 0
          %1111 = vmatpush1.bf16.xpose.msra.mxu0 0
          %1112 = vmatprep.subr.bf16.mxu0 0
          %1113 = vmatpush1.bf16.xpose.msra.mxu0 0
          %1114 = vmatprep.subr.bf16.mxu0 0
          %1115 = vmatpush1.bf16.xpose.msra.mxu0 0
          %1116 = vmatprep.subr.bf16.mxu0 0
          %1117 = vmatpush1.bf16.xpose.msra.mxu0 0
          %1118 = vmatprep.mubr.bf16.mxu0 0
          %1119 = vmatmul.mubr.bf16.gmra.mrb[0].mxu0 %v1081
          %v1120 = vpop.f32.mrb[0].mxu0
          %v1121 = vadd.f32 0.0, %v1120
          %v1122 = vpop.f32.mrb[0].mxu0
          %v1123 = vpop.f32.mrb[0].mxu0
          %v1124 = vpop.f32.mrb[0].mxu0
          %1125 = vdwg.mxu0
          %v1126 = vsel %vm966, %v1121, -inf
          %1127 = vmax.xlane.f32.xlu0 %v1126
          %v1128 = vpop.xlane.xlu0 %1127
          %v1129 = vsub.f32 %v1121, %v1128
          %v1130 = vmul.f32 %v1129, 1.442695
          %v1131 = vpow.pop %v1130
          %v1132 = vsel %vm966, %v1131, 0.0
          %1133 = vadd.xlane.f32.xlu0 %v1132
          %v1134 = vpop.xlane.xlu0 %1133
          %v1135 = vpack.c.bf16 %v1131, %v1131
          %v1137 = vunpack.c.l.b16 %v965
          %v1138 = vpack.c.b16 %v1137, %v1137
          %1139 = vrot.lane.b32.xlu0 %v1138, 120
          %v1140 = vpop.permute.xlu0 %1139
          %v1142 = vsel %vm966, %v1135, 0
          %v1145 = vsel %vm1026, %v1140, 0
          %1147 = vmatprep.subr.bf16.mxu0 0
          %1148 = vmatpush1.bf16.msra.mxu0 %v1145
          %1149 = vmatprep.subr.bf16.mxu0 0
          %1150 = vmatpush1.bf16.msra.mxu0 0
          %1151 = vmatprep.subr.bf16.mxu0 0
          %1152 = vmatpush1.bf16.msra.mxu0 0
          %1153 = vmatprep.subr.bf16.mxu0 0
          %1154 = vmatpush1.bf16.msra.mxu0 0
          %1155 = vmatprep.subr.bf16.mxu0 0
          %1156 = vmatpush1.bf16.msra.mxu0 0
          %1157 = vmatprep.subr.bf16.mxu0 0
          %1158 = vmatpush1.bf16.msra.mxu0 0
          %1159 = vmatprep.subr.bf16.mxu0 0
          %1160 = vmatpush1.bf16.msra.mxu0 0
          %1161 = vmatprep.subr.bf16.mxu0 0
          %1162 = vmatpush1.bf16.msra.mxu0 0
          %1163 = vmatprep.subr.bf16.mxu0 0
          %1164 = vmatpush1.bf16.msra.mxu0 0
          %1165 = vmatprep.subr.bf16.mxu0 0
          %1166 = vmatpush1.bf16.msra.mxu0 0
          %1167 = vmatprep.subr.bf16.mxu0 0
          %1168 = vmatpush1.bf16.msra.mxu0 0
          %1169 = vmatprep.subr.bf16.mxu0 0
          %1170 = vmatpush1.bf16.msra.mxu0 0
          %1171 = vmatprep.subr.bf16.mxu0 0
          %1172 = vmatpush1.bf16.msra.mxu0 0
          %1173 = vmatprep.subr.bf16.mxu0 0
          %1174 = vmatpush1.bf16.msra.mxu0 0
          %1175 = vmatprep.subr.bf16.mxu0 0
          %1176 = vmatpush1.bf16.msra.mxu0 0
          %1177 = vmatprep.subr.bf16.mxu0 0
          %1178 = vmatpush1.bf16.msra.mxu0 0
          %1179 = vmatprep.mubr.bf16.mxu0 0
          %1180 = vmatmul.mubr.bf16.gmra.mrb[0].mxu0 %v1142
          %v1181 = vpop.f32.mrb[0].mxu0
          %v1182 = vadd.f32 0.0, %v1181
          %v1183 = vpop.f32.mrb[0].mxu0
          %v1184 = vpop.f32.mrb[0].mxu0
          %v1185 = vpop.f32.mrb[0].mxu0
          %1186 = vdwg.mxu0
          %v1187 = vrcp.pop %v1134
          %v1188 = vmul.f32 %v1182, %v1187
          %1189 = vrot.lane.b32.xlu0 %v963, 112
          %v1190 = vpop.permute.xlu0 %1189
          %1191 = vrot.lane.b32.xlu0 %v1077, 112
          %v1192 = vpop.permute.xlu0 %1191
          %v1194 = vsel %vm966, %v1190, 0
          %v1197 = vsel %vm966, %v1192, 0
          %1199 = vmatprep.subr.bf16.mxu0 0
          %1200 = vmatpush1.bf16.xpose.msra.mxu0 %v1197
          %1201 = vmatprep.subr.bf16.mxu0 0
          %1202 = vmatpush1.bf16.xpose.msra.mxu0 0
          %1203 = vmatprep.subr.bf16.mxu0 0
          %1204 = vmatpush1.bf16.xpose.msra.mxu0 0
          %1205 = vmatprep.subr.bf16.mxu0 0
          %1206 = vmatpush1.bf16.xpose.msra.mxu0 0
          %1207 = vmatprep.subr.bf16.mxu0 0
          %1208 = vmatpush1.bf16.xpose.msra.mxu0 0
          %1209 = vmatprep.subr.bf16.mxu0 0
          %1210 = vmatpush1.bf16.xpose.msra.mxu0 0
          %1211 = vmatprep.subr.bf16.mxu0 0
          %1212 = vmatpush1.bf16.xpose.msra.mxu0 0
          %1213 = vmatprep.subr.bf16.mxu0 0
          %1214 = vmatpush1.bf16.xpose.msra.mxu0 0
          %1215 = vmatprep.subr.bf16.mxu0 0
          %1216 = vmatpush1.bf16.xpose.msra.mxu0 0
          %1217 = vmatprep.subr.bf16.mxu0 0
          %1218 = vmatpush1.bf16.xpose.msra.mxu0 0
          %1219 = vmatprep.subr.bf16.mxu0 0
          %1220 = vmatpush1.bf16.xpose.msra.mxu0 0
          %1221 = vmatprep.subr.bf16.mxu0 0
          %1222 = vmatpush1.bf16.xpose.msra.mxu0 0
          %1223 = vmatprep.subr.bf16.mxu0 0
          %1224 = vmatpush1.bf16.xpose.msra.mxu0 0
          %1225 = vmatprep.subr.bf16.mxu0 0
          %1226 = vmatpush1.bf16.xpose.msra.mxu0 0
          %1227 = vmatprep.subr.bf16.mxu0 0
          %1228 = vmatpush1.bf16.xpose.msra.mxu0 0
          %1229 = vmatprep.subr.bf16.mxu0 0
          %1230 = vmatpush1.bf16.xpose.msra.mxu0 0
          %1231 = vmatprep.mubr.bf16.mxu0 0
          %1232 = vmatmul.mubr.bf16.gmra.mrb[0].mxu0 %v1194
          %v1233 = vpop.f32.mrb[0].mxu0
          %v1234 = vadd.f32 0.0, %v1233
          %v1235 = vpop.f32.mrb[0].mxu0
          %v1236 = vpop.f32.mrb[0].mxu0
          %v1237 = vpop.f32.mrb[0].mxu0
          %1238 = vdwg.mxu0
          %v1239 = vsel %vm966, %v1234, -inf
          %1240 = vmax.xlane.f32.xlu0 %v1239
          %v1241 = vpop.xlane.xlu0 %1240
          %v1242 = vsub.f32 %v1234, %v1241
          %v1243 = vmul.f32 %v1242, 1.442695
          %v1244 = vpow.pop %v1243
          %v1245 = vsel %vm966, %v1244, 0.0
          %1246 = vadd.xlane.f32.xlu0 %v1245
          %v1247 = vpop.xlane.xlu0 %1246
          %v1248 = vpack.c.bf16 %v1244, %v1244
          %1249 = vrot.lane.b32.xlu0 %v1138, 112
          %v1250 = vpop.permute.xlu0 %1249
          %v1252 = vsel %vm966, %v1248, 0
          %v1255 = vsel %vm1026, %v1250, 0
          %1257 = vmatprep.subr.bf16.mxu0 0
          %1258 = vmatpush1.bf16.msra.mxu0 %v1255
          %1259 = vmatprep.subr.bf16.mxu0 0
          %1260 = vmatpush1.bf16.msra.mxu0 0
          %1261 = vmatprep.subr.bf16.mxu0 0
          %1262 = vmatpush1.bf16.msra.mxu0 0
          %1263 = vmatprep.subr.bf16.mxu0 0
          %1264 = vmatpush1.bf16.msra.mxu0 0
          %1265 = vmatprep.subr.bf16.mxu0 0
          %1266 = vmatpush1.bf16.msra.mxu0 0
          %1267 = vmatprep.subr.bf16.mxu0 0
          %1268 = vmatpush1.bf16.msra.mxu0 0
          %1269 = vmatprep.subr.bf16.mxu0 0
          %1270 = vmatpush1.bf16.msra.mxu0 0
          %1271 = vmatprep.subr.bf16.mxu0 0
          %1272 = vmatpush1.bf16.msra.mxu0 0
          %1273 = vmatprep.subr.bf16.mxu0 0
          %1274 = vmatpush1.bf16.msra.mxu0 0
          %1275 = vmatprep.subr.bf16.mxu0 0
          %1276 = vmatpush1.bf16.msra.mxu0 0
          %1277 = vmatprep.subr.bf16.mxu0 0
          %1278 = vmatpush1.bf16.msra.mxu0 0
          %1279 = vmatprep.subr.bf16.mxu0 0
          %1280 = vmatpush1.bf16.msra.mxu0 0
          %1281 = vmatprep.subr.bf16.mxu0 0
          %1282 = vmatpush1.bf16.msra.mxu0 0
          %1283 = vmatprep.subr.bf16.mxu0 0
          %1284 = vmatpush1.bf16.msra.mxu0 0
          %1285 = vmatprep.subr.bf16.mxu0 0
          %1286 = vmatpush1.bf16.msra.mxu0 0
          %1287 = vmatprep.subr.bf16.mxu0 0
          %1288 = vmatpush1.bf16.msra.mxu0 0
          %1289 = vmatprep.mubr.bf16.mxu0 0
          %1290 = vmatmul.mubr.bf16.gmra.mrb[0].mxu0 %v1252
          %v1291 = vpop.f32.mrb[0].mxu0
          %v1292 = vadd.f32 0.0, %v1291
          %v1293 = vpop.f32.mrb[0].mxu0
          %v1294 = vpop.f32.mrb[0].mxu0
          %v1295 = vpop.f32.mrb[0].mxu0
          %1296 = vdwg.mxu0
          %v1297 = vrcp.pop %v1247
          %v1298 = vmul.f32 %v1292, %v1297
          %1299 = vrot.lane.b32.xlu0 %v963, 104
          %v1300 = vpop.permute.xlu0 %1299
          %1301 = vrot.lane.b32.xlu0 %v1077, 104
          %v1302 = vpop.permute.xlu0 %1301
          %v1304 = vsel %vm966, %v1300, 0
          %v1307 = vsel %vm966, %v1302, 0
          %1309 = vmatprep.subr.bf16.mxu0 0
          %1310 = vmatpush1.bf16.xpose.msra.mxu0 %v1307
          %1311 = vmatprep.subr.bf16.mxu0 0
          %1312 = vmatpush1.bf16.xpose.msra.mxu0 0
          %1313 = vmatprep.subr.bf16.mxu0 0
          %1314 = vmatpush1.bf16.xpose.msra.mxu0 0
          %1315 = vmatprep.subr.bf16.mxu0 0
          %1316 = vmatpush1.bf16.xpose.msra.mxu0 0
          %1317 = vmatprep.subr.bf16.mxu0 0
          %1318 = vmatpush1.bf16.xpose.msra.mxu0 0
          %1319 = vmatprep.subr.bf16.mxu0 0
          %1320 = vmatpush1.bf16.xpose.msra.mxu0 0
          %1321 = vmatprep.subr.bf16.mxu0 0
          %1322 = vmatpush1.bf16.xpose.msra.mxu0 0
          %1323 = vmatprep.subr.bf16.mxu0 0
          %1324 = vmatpush1.bf16.xpose.msra.mxu0 0
          %1325 = vmatprep.subr.bf16.mxu0 0
          %1326 = vmatpush1.bf16.xpose.msra.mxu0 0
          %1327 = vmatprep.subr.bf16.mxu0 0
          %1328 = vmatpush1.bf16.xpose.msra.mxu0 0
          %1329 = vmatprep.subr.bf16.mxu0 0
          %1330 = vmatpush1.bf16.xpose.msra.mxu0 0
          %1331 = vmatprep.subr.bf16.mxu0 0
          %1332 = vmatpush1.bf16.xpose.msra.mxu0 0
          %1333 = vmatprep.subr.bf16.mxu0 0
          %1334 = vmatpush1.bf16.xpose.msra.mxu0 0
          %1335 = vmatprep.subr.bf16.mxu0 0
          %1336 = vmatpush1.bf16.xpose.msra.mxu0 0
          %1337 = vmatprep.subr.bf16.mxu0 0
          %1338 = vmatpush1.bf16.xpose.msra.mxu0 0
          %1339 = vmatprep.subr.bf16.mxu0 0
          %1340 = vmatpush1.bf16.xpose.msra.mxu0 0
          %1341 = vmatprep.mubr.bf16.mxu0 0
          %1342 = vmatmul.mubr.bf16.gmra.mrb[0].mxu0 %v1304
          %v1343 = vpop.f32.mrb[0].mxu0
          %v1344 = vadd.f32 0.0, %v1343
          %v1345 = vpop.f32.mrb[0].mxu0
          %v1346 = vpop.f32.mrb[0].mxu0
          %v1347 = vpop.f32.mrb[0].mxu0
          %1348 = vdwg.mxu0
          %v1349 = vsel %vm966, %v1344, -inf
          %1350 = vmax.xlane.f32.xlu0 %v1349
          %v1351 = vpop.xlane.xlu0 %1350
          %v1352 = vsub.f32 %v1344, %v1351
          %v1353 = vmul.f32 %v1352, 1.442695
          %v1354 = vpow.pop %v1353
          %v1355 = vsel %vm966, %v1354, 0.0
          %1356 = vadd.xlane.f32.xlu0 %v1355
          %v1357 = vpop.xlane.xlu0 %1356
          %v1358 = vpack.c.bf16 %v1354, %v1354
          %1359 = vrot.lane.b32.xlu0 %v1138, 104
          %v1360 = vpop.permute.xlu0 %1359
          %v1362 = vsel %vm966, %v1358, 0
          %v1365 = vsel %vm1026, %v1360, 0
          %1367 = vmatprep.subr.bf16.mxu0 0
          %1368 = vmatpush1.bf16.msra.mxu0 %v1365
          %1369 = vmatprep.subr.bf16.mxu0 0
          %1370 = vmatpush1.bf16.msra.mxu0 0
          %1371 = vmatprep.subr.bf16.mxu0 0
          %1372 = vmatpush1.bf16.msra.mxu0 0
          %1373 = vmatprep.subr.bf16.mxu0 0
          %1374 = vmatpush1.bf16.msra.mxu0 0
          %1375 = vmatprep.subr.bf16.mxu0 0
          %1376 = vmatpush1.bf16.msra.mxu0 0
          %1377 = vmatprep.subr.bf16.mxu0 0
          %1378 = vmatpush1.bf16.msra.mxu0 0
          %1379 = vmatprep.subr.bf16.mxu0 0
          %1380 = vmatpush1.bf16.msra.mxu0 0
          %1381 = vmatprep.subr.bf16.mxu0 0
          %1382 = vmatpush1.bf16.msra.mxu0 0
          %1383 = vmatprep.subr.bf16.mxu0 0
          %1384 = vmatpush1.bf16.msra.mxu0 0
          %1385 = vmatprep.subr.bf16.mxu0 0
          %1386 = vmatpush1.bf16.msra.mxu0 0
          %1387 = vmatprep.subr.bf16.mxu0 0
          %1388 = vmatpush1.bf16.msra.mxu0 0
          %1389 = vmatprep.subr.bf16.mxu0 0
          %1390 = vmatpush1.bf16.msra.mxu0 0
          %1391 = vmatprep.subr.bf16.mxu0 0
          %1392 = vmatpush1.bf16.msra.mxu0 0
          %1393 = vmatprep.subr.bf16.mxu0 0
          %1394 = vmatpush1.bf16.msra.mxu0 0
          %1395 = vmatprep.subr.bf16.mxu0 0
          %1396 = vmatpush1.bf16.msra.mxu0 0
          %1397 = vmatprep.subr.bf16.mxu0 0
          %1398 = vmatpush1.bf16.msra.mxu0 0
          %1399 = vmatprep.mubr.bf16.mxu0 0
          %1400 = vmatmul.mubr.bf16.gmra.mrb[0].mxu0 %v1362
          %v1401 = vpop.f32.mrb[0].mxu0
          %v1402 = vadd.f32 0.0, %v1401
          %v1403 = vpop.f32.mrb[0].mxu0
          %v1404 = vpop.f32.mrb[0].mxu0
          %v1405 = vpop.f32.mrb[0].mxu0
          %1406 = vdwg.mxu0
          %v1407 = vrcp.pop %v1357
          %v1408 = vmul.f32 %v1402, %v1407
          %1410 = vrot.lane.b32.xlu0 %v1188, 8
          %v1411 = vpop.permute.xlu0 %1410
          %1414 = vrot.lane.b32.xlu0 %v1298, 16
          %v1415 = vpop.permute.xlu0 %1414
          %1418 = vrot.lane.b32.xlu0 %v1408, 24
          %v1419 = vpop.permute.xlu0 %1418
          %v1421 = vsel %vm966, %v1071, %v1411
          %vm1422 = vcmask 130048
          %v1423 = vsel %vm1422, %v1421, %v1415
          %vm1424 = vcmask 195584
          %v1425 = vsel %vm1424, %v1423, %v1419
          %v1426 = vpack.c.bf16 %v1425, %v1425
          %v1427 = vld [vmem:[#allocation12] sm:$0xf]
          %v1428 = vld [vmem:[#allocation12 + $0x4] sm:$0xf]
          %v1429 = vld [vmem:[#allocation12 + $0x8] sm:$0xf]
          %v1430 = vld [vmem:[#allocation12 + $0xc] sm:$0xf]
          %v1431 = vld [vmem:[#allocation14] sm:$0x1]
          %v1433 = vlaneseq
          %v1434 = vshrl.u32 %v1433, 7
          %v1435 = vsub.s32 0, %v1434
          %v1436 = vrot.slane %v1431, %v1435
          %v1442 = vunpack.c.l.b16 %v1427
          %v1443 = vunpack.c.l.b16 %v1428
          %v1444 = vunpack.c.l.b16 %v1429
          %v1445 = vunpack.c.l.b16 %v1430
          %v1446 = vpack.c.b16 %v1443, %v1442
          %v1447 = vpack.c.b16 %v1445, %v1444
          %v1451 = vsel %vm918, %v1426, 0
          %1453 = vmatprep.subr.bf16.mxu0 0
          %1454 = vmatpush1.bf16.msra.mxu0 %v1446
          %1455 = vmatprep.subr.bf16.mxu0 0
          %1456 = vmatpush1.bf16.msra.mxu0 %v1447
          %1457 = vmatprep.subr.bf16.mxu0 0
          %1458 = vmatpush1.bf16.msra.mxu0 0
          %1459 = vmatprep.subr.bf16.mxu0 0
          %1460 = vmatpush1.bf16.msra.mxu0 0
          %1461 = vmatprep.subr.bf16.mxu0 0
          %1462 = vmatpush1.bf16.msra.mxu0 0
          %1463 = vmatprep.subr.bf16.mxu0 0
          %1464 = vmatpush1.bf16.msra.mxu0 0
          %1465 = vmatprep.subr.bf16.mxu0 0
          %1466 = vmatpush1.bf16.msra.mxu0 0
          %1467 = vmatprep.subr.bf16.mxu0 0
          %1468 = vmatpush1.bf16.msra.mxu0 0
          %1469 = vmatprep.subr.bf16.mxu0 0
          %1470 = vmatpush1.bf16.msra.mxu0 0
          %1471 = vmatprep.subr.bf16.mxu0 0
          %1472 = vmatpush1.bf16.msra.mxu0 0
          %1473 = vmatprep.subr.bf16.mxu0 0
          %1474 = vmatpush1.bf16.msra.mxu0 0
          %1475 = vmatprep.subr.bf16.mxu0 0
          %1476 = vmatpush1.bf16.msra.mxu0 0
          %1477 = vmatprep.subr.bf16.mxu0 0
          %1478 = vmatpush1.bf16.msra.mxu0 0
          %1479 = vmatprep.subr.bf16.mxu0 0
          %1480 = vmatpush1.bf16.msra.mxu0 0
          %1481 = vmatprep.subr.bf16.mxu0 0
          %1482 = vmatpush1.bf16.msra.mxu0 0
          %1483 = vmatprep.subr.bf16.mxu0 0
          %1484 = vmatpush1.bf16.msra.mxu0 0
          %1485 = vmatprep.mubr.bf16.mxu0 0
          %1486 = vmatmul.mubr.bf16.gmra.mrb[0].mxu0 %v1451
          %v1487 = vpop.f32.mrb[0].mxu0
          %v1488 = vadd.f32 %v1436, %v1487
          %v1489 = vpop.f32.mrb[0].mxu0
          %v1490 = vpop.f32.mrb[0].mxu0
          %v1491 = vpop.f32.mrb[0].mxu0
          %1492 = vdwg.mxu0
          %v1493 = vadd.f32 %v893, %v1488
          %v1494 = vld [vmem:[%s10] sm:$0x1]
          %v1495 = vld [vmem:[%s11] sm:$0x1]
          %v1496 = vsel %vm918, %v1493, 0.0
          %1497 = vadd.xlane.f32.xlu0 %v1496
          %v1498 = vpop.xlane.xlu0 %1497
          %v1499 = vrcp.pop 32.0
          %v1500 = vmul.f32 %v1498, %v1499
          %v1501 = vsub.f32 %v1493, %v1500
          %v1502 = vmul.f32 %v1501, %v1501
          %v1503 = vsel %vm918, %v1502, 0.0
          %1504 = vadd.xlane.f32.xlu0 %v1503
          %v1505 = vpop.xlane.xlu0 %1504
          %v1506 = vmul.f32 %v1505, %v1499
          %v1507 = vadd.f32 %v1506, 1e-05
          %v1508 = vrsqrt.pop %v1507
          %v1509 = vmul.f32 %v1501, %v1508
          %v1511 = vlaneseq
          %v1512 = vshrl.u32 %v1511, 7
          %v1513 = vsub.s32 0, %v1512
          %v1514 = vrot.slane %v1494, %v1513
          %v1516 = vmul.f32 %v1509, %v1514
          %v1518 = vlaneseq
          %v1519 = vshrl.u32 %v1518, 7
          %v1520 = vsub.s32 0, %v1519
          %v1521 = vrot.slane %v1495, %v1520
          %v1523 = vadd.f32 %v1516, %v1521
          %1524 = vst.msk [vmem:[#allocation4] sm:$0xff] %vm918, %v1523
          %1525 = vst.msk [vmem:[#allocation5] sm:$0xff] %vm918, 0.0
        $region120: #{tpu_custom_call.1} parent=91 // pred_fallthru
          _
        %v1526 = vld [vmem:[#allocation4] sm:$0xff]
        %v1527 = vpack.c.bf16 %v1526, %v1526
        %v1528 = vld [vmem:[%s737] sm:$0xf]
        %v1529 = vld [vmem:[%s737 + $0x4] sm:$0xf]
        %v1530 = vld [vmem:[%s737 + $0x8] sm:$0xf]
        %v1531 = vld [vmem:[%s737 + $0xc] sm:$0xf]
        %v1532 = vld [vmem:[%s740] sm:$0x1]
        %v1534 = vlaneseq
        %v1535 = vshrl.u32 %v1534, 7
        %v1536 = vsub.s32 0, %v1535
        %v1537 = vrot.slane %v1532, %v1536
        %v1543 = vunpack.c.l.b16 %v1528
        %v1544 = vunpack.c.l.b16 %v1529
        %v1545 = vunpack.c.l.b16 %v1530
        %v1546 = vunpack.c.l.b16 %v1531
        %v1547 = vpack.c.b16 %v1544, %v1543
        %v1548 = vpack.c.b16 %v1546, %v1545
        %vm1551 = vcmask 261120
        %v1553 = vsel %vm1551, %v1527, 0
        %1555 = vmatprep.subr.bf16.mxu0 0
        %1556 = vmatpush1.bf16.msra.mxu0 %v1547
        %1557 = vmatprep.subr.bf16.mxu0 0
        %1558 = vmatpush1.bf16.msra.mxu0 %v1548
        %1559 = vmatprep.subr.bf16.mxu0 0
        %1560 = vmatpush1.bf16.msra.mxu0 0
        %1561 = vmatprep.subr.bf16.mxu0 0
        %1562 = vmatpush1.bf16.msra.mxu0 0
        %1563 = vmatprep.subr.bf16.mxu0 0
        %1564 = vmatpush1.bf16.msra.mxu0 0
        %1565 = vmatprep.subr.bf16.mxu0 0
        %1566 = vmatpush1.bf16.msra.mxu0 0
        %1567 = vmatprep.subr.bf16.mxu0 0
        %1568 = vmatpush1.bf16.msra.mxu0 0
        %1569 = vmatprep.subr.bf16.mxu0 0
        %1570 = vmatpush1.bf16.msra.mxu0 0
        %1571 = vmatprep.subr.bf16.mxu0 0
        %1572 = vmatpush1.bf16.msra.mxu0 0
        %1573 = vmatprep.subr.bf16.mxu0 0
        %1574 = vmatpush1.bf16.msra.mxu0 0
        %1575 = vmatprep.subr.bf16.mxu0 0
        %1576 = vmatpush1.bf16.msra.mxu0 0
        %1577 = vmatprep.subr.bf16.mxu0 0
        %1578 = vmatpush1.bf16.msra.mxu0 0
        %1579 = vmatprep.subr.bf16.mxu0 0
        %1580 = vmatpush1.bf16.msra.mxu0 0
        %1581 = vmatprep.subr.bf16.mxu0 0
        %1582 = vmatpush1.bf16.msra.mxu0 0
        %1583 = vmatprep.subr.bf16.mxu0 0
        %1584 = vmatpush1.bf16.msra.mxu0 0
        %1585 = vmatprep.subr.bf16.mxu0 0
        %1586 = vmatpush1.bf16.msra.mxu0 0
        %1587 = vmatprep.mubr.bf16.mxu0 0
        %1588 = vmatmul.mubr.bf16.gmra.mrb[0].mxu0 %v1553
        %v1589 = vpop.f32.mrb[0].mxu0
        %v1590 = vadd.f32 %v1537, %v1589
        %v1591 = vpop.f32.mrb[0].mxu0
        %v1592 = vpop.f32.mrb[0].mxu0
        %v1593 = vpop.f32.mrb[0].mxu0
        %1594 = vdwg.mxu0
        %v1595 = vmax.f32 %v1590, 0.0
        %v1596 = vpack.c.bf16 %v1595, %v1595
        %v1597 = vld [vmem:[#allocation5] sm:$0xff]
        %v1598 = vld [vmem:[%s745] sm:$0xf]
        %v1599 = vld [vmem:[%s745 + $0x4] sm:$0xf]
        %v1600 = vld [vmem:[%s745 + $0x8] sm:$0xf]
        %v1601 = vld [vmem:[%s745 + $0xc] sm:$0xf]
        %v1602 = vld [vmem:[%s745 + $0x10] sm:$0xf]
        %v1603 = vld [vmem:[%s745 + $0x14] sm:$0xf]
        %v1604 = vld [vmem:[%s745 + $0x18] sm:$0xf]
        %v1605 = vld [vmem:[%s745 + $0x1c] sm:$0xf]
        %v1614 = vunpack.c.l.b16 %v1598
        %v1615 = vunpack.c.l.b16 %v1599
        %v1616 = vunpack.c.l.b16 %v1600
        %v1617 = vunpack.c.l.b16 %v1601
        %v1618 = vunpack.c.l.b16 %v1602
        %v1619 = vunpack.c.l.b16 %v1603
        %v1620 = vunpack.c.l.b16 %v1604
        %v1621 = vunpack.c.l.b16 %v1605
        %v1622 = vpack.c.b16 %v1615, %v1614
        %v1623 = vpack.c.b16 %v1617, %v1616
        %v1624 = vpack.c.b16 %v1619, %v1618
        %v1625 = vpack.c.b16 %v1621, %v1620
        %vm1630 = vcmask 523264
        %v1632 = vsel %vm1630, %v1596, 0
        %1634 = vmatprep.subr.bf16.mxu0 0
        %1635 = vmatpush1.bf16.msra.mxu0 %v1622
        %1636 = vmatprep.subr.bf16.mxu0 0
        %1637 = vmatpush1.bf16.msra.mxu0 %v1623
        %1638 = vmatprep.subr.bf16.mxu0 0
        %1639 = vmatpush1.bf16.msra.mxu0 %v1624
        %1640 = vmatprep.subr.bf16.mxu0 0
        %1641 = vmatpush1.bf16.msra.mxu0 %v1625
        %1642 = vmatprep.subr.bf16.mxu0 0
        %1643 = vmatpush1.bf16.msra.mxu0 0
        %1644 = vmatprep.subr.bf16.mxu0 0
        %1645 = vmatpush1.bf16.msra.mxu0 0
        %1646 = vmatprep.subr.bf16.mxu0 0
        %1647 = vmatpush1.bf16.msra.mxu0 0
        %1648 = vmatprep.subr.bf16.mxu0 0
        %1649 = vmatpush1.bf16.msra.mxu0 0
        %1650 = vmatprep.subr.bf16.mxu0 0
        %1651 = vmatpush1.bf16.msra.mxu0 0
        %1652 = vmatprep.subr.bf16.mxu0 0
        %1653 = vmatpush1.bf16.msra.mxu0 0
        %1654 = vmatprep.subr.bf16.mxu0 0
        %1655 = vmatpush1.bf16.msra.mxu0 0
        %1656 = vmatprep.subr.bf16.mxu0 0
        %1657 = vmatpush1.bf16.msra.mxu0 0
        %1658 = vmatprep.subr.bf16.mxu0 0
        %1659 = vmatpush1.bf16.msra.mxu0 0
        %1660 = vmatprep.subr.bf16.mxu0 0
        %1661 = vmatpush1.bf16.msra.mxu0 0
        %1662 = vmatprep.subr.bf16.mxu0 0
        %1663 = vmatpush1.bf16.msra.mxu0 0
        %1664 = vmatprep.subr.bf16.mxu0 0
        %1665 = vmatpush1.bf16.msra.mxu0 0
        %1666 = vmatprep.mubr.bf16.mxu0 0
        %1667 = vmatmul.mubr.bf16.gmra.mrb[0].mxu0 %v1632
        %v1668 = vpop.f32.mrb[0].mxu0
        %v1669 = vadd.f32 0.0, %v1668
        %v1670 = vpop.f32.mrb[0].mxu0
        %v1671 = vpop.f32.mrb[0].mxu0
        %v1672 = vpop.f32.mrb[0].mxu0
        %1673 = vdwg.mxu0
        %v1674 = vadd.f32 %v1597, %v1669
        %1675 = vst.msk [vmem:[#allocation5] sm:$0xff] %vm1551, %v1674
        // Predicated region
        $region121: #{tpu_custom_call.1} parent=91 // pred_check
          %p1676 = pneg %p749
        $region122: #{tpu_custom_call.1} parent=91 // pred_check_branch
          %1678 = sbr.rel (%p1676) target = $region124
        $region123: #{tpu_custom_call.1} parent=91 // pred_region
          %v1679 = vld [vmem:[#allocation5] sm:$0xff]
          %v1680 = vld [vmem:[%s15] sm:$0x1]
          %v1682 = vlaneseq
          %v1683 = vshrl.u32 %v1682, 7
          %v1684 = vsub.s32 0, %v1683
          %v1685 = vrot.slane %v1680, %v1684
          %v1687 = vadd.f32 %v1679, %v1685
          %v1688 = vld [vmem:[#allocation4] sm:$0xff]
          %v1689 = vadd.f32 %v1688, %v1687
          %v1690 = vld [vmem:[%s16] sm:$0x1]
          %v1691 = vld [vmem:[%s17] sm:$0x1]
          %v1692 = vsel %vm1551, %v1689, 0.0
          %1693 = vadd.xlane.f32.xlu0 %v1692
          %v1694 = vpop.xlane.xlu0 %1693
          %v1695 = vrcp.pop 32.0
          %v1696 = vmul.f32 %v1694, %v1695
          %v1697 = vsub.f32 %v1689, %v1696
          %v1698 = vmul.f32 %v1697, %v1697
          %v1699 = vsel %vm1551, %v1698, 0.0
          %1700 = vadd.xlane.f32.xlu0 %v1699
          %v1701 = vpop.xlane.xlu0 %1700
          %v1702 = vmul.f32 %v1701, %v1695
          %v1703 = vadd.f32 %v1702, 1e-05
          %v1704 = vrsqrt.pop %v1703
          %v1705 = vmul.f32 %v1697, %v1704
          %v1707 = vlaneseq
          %v1708 = vshrl.u32 %v1707, 7
          %v1709 = vsub.s32 0, %v1708
          %v1710 = vrot.slane %v1690, %v1709
          %v1712 = vmul.f32 %v1705, %v1710
          %v1714 = vlaneseq
          %v1715 = vshrl.u32 %v1714, 7
          %v1716 = vsub.s32 0, %v1715
          %v1717 = vrot.slane %v1691, %v1716
          %v1719 = vadd.f32 %v1712, %v1717
          %1720 = vst.msk [vmem:[%s726] sm:$0xff] %vm1551, %v1719
        $region124: #{tpu_custom_call.1} parent=91 // pred_fallthru
          _
        %s1721 = sand.u32 %s471, 1
        %s1722 = scalar_lea.sflag [#allocation8], %s1721
        %s1723 = sand.u32 %s471, 1
        %s1724 = smul.addr %s1723, 8
        %s1725 = scalar_lea.vmem [#allocation15], %s1724
        // Predicated region
        $region125: #{tpu_custom_call.1} parent=91 // pred_check
          %p1726 = pneg %p481
        $region126: #{tpu_custom_call.1} parent=91 // pred_check_branch
          %1728 = sbr.rel (%p1726) target = $region128
        $region127: #{tpu_custom_call.1} parent=91 // pred_region
          %s1730 = ssub.s32 128, 128
          %1731 = vsyncadd %s1722, %s1730
          %s1732 = sadd.s32 %s43, %s42
          %s1733 = smul.addr %s1732, 128
          %s1734 = scalar_lea.hbm %s18, %s1733
          %s1736 = sshll.u32 %s1725, 4
          %s1737 = int_to_ptr.vmem [resolvable:$true] %s1736
          %1739 = dma.vmem_to_hbm [thread:$0]  %s1737, 128, %s1734, %s1722
        $region128: #{tpu_custom_call.1} parent=91 // pred_fallthru
          _
      $region92: #{tpu_custom_call.1} parent=5 // pred_fallthru
        _
      %p1740 = scmp.le.s32.totalorder 2, %s32
      // Predicated region
      $region129: #{tpu_custom_call.1} parent=5 // pred_check
        %p1741 = pneg %p1740
      $region130: #{tpu_custom_call.1} parent=5 // pred_check_branch
        %1743 = sbr.rel (%p1741) target = $region132
      $region131: #{tpu_custom_call.1} parent=5 // pred_region
        %s1744 = ssub.s32 %s32, 2
        // Predicated region
        $region133: #{tpu_custom_call.1} parent=131 // pred_check
          %p1745 = pneg %p487
        $region134: #{tpu_custom_call.1} parent=131 // pred_check_branch
          %1747 = sbr.rel (%p1745) target = $region136
        $region135: #{tpu_custom_call.1} parent=131 // pred_region
          %s1748 = sand.u32 %s472, 1
          %s1749 = scalar_lea.sflag [#allocation8], %s1748
          %s1750 = sand.u32 %s472, 1
          %s1751 = smul.addr %s1750, 8
          %s1752 = scalar_lea.vmem [#allocation15], %s1751
          %1753 = dma.done %s1749, 128
        $region136: #{tpu_custom_call.1} parent=131 // pred_fallthru
          _
      $region132: #{tpu_custom_call.1} parent=5 // pred_fallthru
        _
    $region6: #{tpu_custom_call.1} parent=1 // loop_footer
      %s36 = sadd.s32 1, %s32
    $region7: #{tpu_custom_call.1} parent=1 // loop_footer_branch
      %31 = sbr.rel target = $region3
    $region8: #{tpu_custom_call.1} parent=1 // loop_exit
      _
    %1754 = vsyncpa [#allocation7], 1
    %s1755 = scalar_lea.sflag [#allocation7], 1
    %1756 = vsyncpa %s1755, 1
    %1757 = vsyncpa [#allocation10], 1
    %1758 = vsyncpa [#allocation13], 1
    %1759 = vsyncpa [#allocation8], 1
    %s1760 = scalar_lea.sflag [#allocation8], 1
    %1761 = vsyncpa %s1760, 1

</llo_original>
